<compile_context>
chip_gen: v6e
topology: v6e:2x2x1
jax: 0.10.0
libtpu: 0.0.40
codegen_flags: <defaults>
</compile_context>

<pallas_src>
import functools
import math

import jax
import jax.numpy as jnp
from jax.experimental import pallas as pl
from jax.experimental.pallas import tpu as pltpu  # noqa: F401  (not needed at this size)


# ----------------------------------------------------------------------------
# Config (synthetic small BERT; classifier widths match the PyTorch script)
# ----------------------------------------------------------------------------
CFG = dict(
    vocab_size=50, max_pos=16, type_vocab=2,
    hidden=32, num_heads=4, head_dim=8, intermediate=64, num_layers=2,
    cls_hidden=500,          # `hidden_size` in the PyTorch script
    cls_hidden_pad=512,      # zero-padded to a lane-dense width (numerics unchanged)
    num_aspect_categories=8, num_polarities=2,
)

# --- packed-slab layout constants (rows of the 32-lane parameter slab) ------
VPAD = 64                                   # vocab padded so the one-hot gather has aligned K
_OFF_WORD = 0
_OFF_POS = _OFF_WORD + VPAD
_OFF_TYPE = _OFF_POS + CFG["max_pos"]
_OFF_ELNG = _OFF_TYPE + CFG["type_vocab"]
_OFF_ELNB = _OFF_ELNG + 1
_OFF_POOLW = _OFF_ELNB + 1
_OFF_POOLB = _OFF_POOLW + CFG["hidden"]
_OFF_LW = _OFF_POOLB + 1                    # row holding pos_weight | CE class weights
_H32_ROWS = _OFF_LW + 1

OUT_ROWS = 8                                # lane-dense (8, 128) fused output slab


def _vmem_full(shape):
    """Full-array VMEM block (grid=()); block_shape == array shape is always legal."""
    n = len(shape)
    return pl.BlockSpec(shape, lambda *_: (0,) * n)


# ----------------------------------------------------------------------------
# In-kernel helpers (pure functions on VMEM-resident values)
# ----------------------------------------------------------------------------
def _layernorm(x, g, b, eps=1e-12):
    mean = jnp.mean(x, axis=-1, keepdims=True)
    var = jnp.mean((x - mean) ** 2, axis=-1, keepdims=True)
    return (x - mean) * jax.lax.rsqrt(var + eps) * g + b


def _gelu(x):
    # TODO(synk): HF BERT uses exact erf-GELU; tanh approximation kept for
    # guaranteed Mosaic lowering (tiny numerical difference vs. PyTorch).
    return jax.nn.gelu(x, approximate=True)


def _log_sigmoid(t):
    # stable: log(sigmoid(t)) = -(max(-t,0) + log(1 + exp(-|t|)))
    return -(jnp.maximum(-t, 0.0) + jnp.log(1.0 + jnp.exp(-jnp.abs(t))))


# ----------------------------------------------------------------------------
# The single fused forward kernel
# ----------------------------------------------------------------------------
def _fused_forward_kernel(
    # packed inputs -------------------------------------------------------
    ids_ref,      # (B*S, 1) int32 token ids
    ibs_ref,      # (B, S+2) int32: [attention_mask | aspect_label | polarity_label]
    h32_ref,      # (_H32_ROWS, H) f32: emb tables | emb LN | pooler | loss weights
    lw_ref,       # (L, H, 3H+H+I+I) f32: wqkv | wo | w1 | w2^T
    lsm_ref,      # (L, 3, 128) f32: per-layer biases / LN params
    cls1_ref,     # (H+1, 2*CHP) f32: fused classifier-1 weight + bias row
    cls2_ref,     # (2*CHP+1, 128) f32: block-diag classifier-2 weight + bias row
    # output ---------------------------------------------------------------
    out_ref,      # (OUT_ROWS, 128) f32: rows 0..B-1 = [ac|pol] logits, [B,0] = loss
    # static config ----------------------------------------------------------
    *, B, S, nH, dH, L, I, A, P, CH2, include_bce, include_ce,
):
    f32 = jnp.float32
    H = nH * dH
    R = B * S
    scale = 1.0 / math.sqrt(dH)

    # ---- in-kernel embedding gather: one-hot iota compare + one matmul ----
    ids = ids_ref[...]                                                  # (R, 1) int32
    word_oh = (jax.lax.broadcasted_iota(jnp.int32, (R, VPAD), 1) == ids).astype(f32)
    word_tab = h32_ref[_OFF_WORD:_OFF_WORD + VPAD, :]                   # (VPAD, H)
    emb = jnp.dot(word_oh, word_tab, preferred_element_type=f32)        # (R, H)
    pos_tab = h32_ref[_OFF_POS:_OFF_POS + S, :]                         # (S, H), ids = arange(S)
    emb = emb + jnp.concatenate([pos_tab] * B, axis=0)
    # TODO(synk): token_type_ids hard-coded to segment 0 (matches default BertModel call).
    emb = emb + h32_ref[_OFF_TYPE:_OFF_TYPE + 1, :]
    h = _layernorm(emb, h32_ref[_OFF_ELNG:_OFF_ELNG + 1, :],
                   h32_ref[_OFF_ELNB:_OFF_ELNB + 1, :])                 # (R, H)

    # ---- additive attention mask built in-kernel from the int mask ----
    mask_add = (1.0 - ibs_ref[:, 0:S].astype(f32)) * -10000.0           # (B, S)
    mask3 = mask_add.reshape(B, 1, S)                                   # broadcast over queries

    # ---- encoder: statically unrolled over L layers, weights VMEM-resident ----
    for l in range(L):
        lw = lw_ref[l]                                                  # (H, 256)
        sm = lsm_ref[l]                                                 # (3, 128)
        wqkv = lw[:, 0:3 * H]
        wo = lw[:, 3 * H:4 * H]
        w1 = lw[:, 4 * H:4 * H + I]
        w2t = lw[:, 4 * H + I:4 * H + 2 * I]                            # (H, I) = w2^T
        bqkv = sm[0:1, 0:3 * H]
        bo = sm[0:1, 3 * H:4 * H]
        ln1g = sm[1:2, 0:H]
        ln1b = sm[1:2, H:2 * H]
        b1 = sm[1:2, 2 * H:2 * H + I]
        b2 = sm[2:3, 0:H]
        ln2g = sm[2:3, H:2 * H]
        ln2b = sm[2:3, 2 * H:3 * H]

        # fused Q|K|V projection: (R, H) @ (H, 3H)
        qkv = jnp.dot(h, wqkv, preferred_element_type=f32) + bqkv
        q3 = qkv[:, 0 * H:1 * H].reshape(B, S, H)
        k3 = qkv[:, 1 * H:2 * H].reshape(B, S, H)
        v3 = qkv[:, 2 * H:3 * H].reshape(B, S, H)

        # per-head attention, batched over B with single-batch-dim einsums;
        # context stays in vregs (no VMEM scratch, no masked sub-tile stores).
        ctx_heads = []
        for hh in range(nH):
            c0 = hh * dH
            qh = q3[:, :, c0:c0 + dH]
            kh = k3[:, :, c0:c0 + dH]
            vh = v3[:, :, c0:c0 + dH]
            s = jnp.einsum('bqd,bkd->bqk', qh, kh,
                           preferred_element_type=f32) * scale + mask3   # (B, S, S)
            s = s - jnp.max(s, axis=-1, keepdims=True)
            p = jnp.exp(s)
            p = p / jnp.sum(p, axis=-1, keepdims=True)
            ctx_heads.append(jnp.einsum('bqk,bkd->bqd', p, vh,
                                        preferred_element_type=f32))     # (B, S, dH)
        ctx = jnp.concatenate(ctx_heads, axis=-1).reshape(R, H)

        attn_out = jnp.dot(ctx, wo, preferred_element_type=f32) + bo
        h1 = _layernorm(attn_out + h, ln1g, ln1b)
        ff = _gelu(jnp.dot(h1, w1, preferred_element_type=f32) + b1)     # (R, I)
        ffo = jax.lax.dot_general(ff, w2t, (((1,), (1,)), ((), ())),
                                  preferred_element_type=f32) + b2       # (R, H)
        h = _layernorm(ffo + h1, ln2g, ln2b)

    # ---- pooler: tanh(W h[:, 0] + b) ----
    first = h.reshape(B, S, H)[:, 0:1, :].reshape(B, H)
    poolw = h32_ref[_OFF_POOLW:_OFF_POOLW + H, :]
    poolb = h32_ref[_OFF_POOLB:_OFF_POOLB + 1, :]
    pooled = jnp.tanh(jnp.dot(first, poolw, preferred_element_type=f32) + poolb)

    # ---- fused classifier heads ----
    c1w = cls1_ref[0:H, :]
    c1b = cls1_ref[H:H + 1, :]
    cls_h = jnp.maximum(jnp.dot(pooled, c1w, preferred_element_type=f32) + c1b, 0.0)  # (B, 2*CHP)
    c2w = cls2_ref[0:CH2, :]
    c2b = cls2_ref[CH2:CH2 + 1, :]
    logits = jnp.dot(cls_h, c2w, preferred_element_type=f32) + c2b        # (B, 128) lane-dense
    ac_logits = logits[:, 0:A]
    pol_logits = logits[:, A:A + P]

    # ---- losses (static flags select the PyTorch module's branches) ----
    loss = jnp.zeros((), f32)
    if include_bce:
        # BCEWithLogitsLoss(pos_weight), reduction='mean' over all B*A elements
        ac_lab = ibs_ref[:, S:S + 1]                                       # (B, 1) int32
        z = (jax.lax.broadcasted_iota(jnp.int32, (B, A), 1) == ac_lab).astype(f32)
        pw = h32_ref[_OFF_LW:_OFF_LW + 1, 0:A]                             # (1, A)
        bce = -(pw * z * _log_sigmoid(ac_logits) + (1.0 - z) * _log_sigmoid(-ac_logits))
        loss = loss + jnp.sum(bce) / float(B * A)
    if include_ce:
        # CrossEntropyLoss(weight), reduction='mean' = sum(w_i*nll_i)/sum(w_i)
        pol_lab = ibs_ref[:, S + 1:S + 2]                                  # (B, 1) int32
        oh = (jax.lax.broadcasted_iota(jnp.int32, (B, P), 1) == pol_lab).astype(f32)
        cw = h32_ref[_OFF_LW:_OFF_LW + 1, A:A + P]                         # (1, P)
        m = jnp.max(pol_logits, axis=-1, keepdims=True)
        sh = pol_logits - m
        logp = sh - jnp.log(jnp.sum(jnp.exp(sh), axis=-1, keepdims=True))
        nll = -jnp.sum(oh * logp, axis=-1, keepdims=True)                  # (B, 1)
        wi = jnp.sum(oh * cw, axis=-1, keepdims=True)                      # (B, 1)
        loss = loss + jnp.sum(wi * nll) / jnp.sum(wi)

    # ---- single lane-dense output slab, one unmasked store ----
    slab = jnp.concatenate([logits, jnp.zeros((OUT_ROWS - B, 128), f32)], axis=0)
    rid = jax.lax.broadcasted_iota(jnp.int32, (OUT_ROWS, 128), 0)
    cid = jax.lax.broadcasted_iota(jnp.int32, (OUT_ROWS, 128), 1)
    loss_mask = ((rid == B) & (cid == 0)).astype(f32)
    out_ref[...] = slab + loss_mask * loss


# ----------------------------------------------------------------------------
# Parameters (deterministic synthetic weights, packed into kernel-ready slabs)
# ----------------------------------------------------------------------------
def init_params(key, cfg):
    keys = iter(jax.random.split(key, 64))

    def w(shape):
        return 0.02 * jax.random.normal(next(keys), shape, jnp.float32)

    def ones(shape):
        return jnp.ones(shape, jnp.float32)

    def zeros(shape):
        return jnp.zeros(shape, jnp.float32)

    H, I, L = cfg["hidden"], cfg["intermediate"], cfg["num_layers"]
    CH0, CHP = cfg["cls_hidden"], cfg["cls_hidden_pad"]
    A, P = cfg["num_aspect_categories"], cfg["num_polarities"]
    V, MP, TV = cfg["vocab_size"], cfg["max_pos"], cfg["type_vocab"]

    # ---- per-layer packed slabs ----
    layer_w, layer_small = [], []
    for _ in range(L):
        wq, wk, wv, wo = w((H, H)), w((H, H)), w((H, H)), w((H, H))
        w1, w2 = w((H, I)), w((I, H))
        layer_w.append(jnp.concatenate([wq, wk, wv, wo, w1, w2.T], axis=1))   # (H, 256)
        row0 = jnp.concatenate([zeros((1, 3 * H)), zeros((1, H))], axis=1)    # bqkv | bo
        row1 = jnp.concatenate([ones((1, H)), zeros((1, H)), zeros((1, I))], axis=1)  # ln1 g|b|b1
        row2 = jnp.concatenate([zeros((1, H)), ones((1, H)), zeros((1, H)),
                                zeros((1, 128 - 3 * H))], axis=1)             # b2|ln2 g|b|pad
        layer_small.append(jnp.concatenate([row0, row1, row2], axis=0))       # (3, 128)

    # ---- 32-lane parameter slab: emb tables | emb LN | pooler | loss weights ----
    word = jnp.concatenate([w((V, H)), jnp.zeros((VPAD - V, H), jnp.float32)], axis=0)
    lwrow = jnp.zeros((1, H), jnp.float32)
    lwrow = lwrow.at[0, 0:A].set(jnp.array([1.2, 1.0, 1.5, 2.5, 2.2, 1.5, 1.0, 1.2],
                                           jnp.float32))
    lwrow = lwrow.at[0, A:A + P].set(jnp.array([0.1, 2.5], jnp.float32))
    h32 = jnp.concatenate([
        word,                                  # word embeddings (padded vocab)
        w((MP, H)),                            # position embeddings
        w((TV, H)),                            # token-type embeddings
        ones((1, H)), zeros((1, H)),           # embedding LN gamma / beta
        w((H, H)), zeros((1, H)),              # pooler weight / bias
        lwrow,                                 # BCE pos_weight | CE class weights
    ], axis=0)
    assert h32.shape == (_H32_ROWS, H)

    # ---- fused classifier layer 1 (both heads, 500 zero-padded to 512) ----
    def padc(x, n):
        return jnp.pad(x, ((0, 0), (0, n - x.shape[1])))

    ac1_w, ac1_b = w((H, CH0)), zeros((1, CH0))
    pol1_w, pol1_b = w((H, CH0)), zeros((1, CH0))
    cls1_w = jnp.concatenate([padc(ac1_w, CHP), padc(pol1_w, CHP)], axis=1)   # (H, 2*CHP)
    cls1_b = jnp.concatenate([padc(ac1_b, CHP), padc(pol1_b, CHP)], axis=1)
    cls1 = jnp.concatenate([cls1_w, cls1_b], axis=0)                          # (H+1, 2*CHP)

    # ---- fused classifier layer 2 as a block matrix into 128 lane-dense logits ----
    ac2_w, ac2_b = w((CH0, A)), zeros((1, A))
    pol2_w, pol2_b = w((CH0, P)), zeros((1, P))
    blk = jnp.zeros((2 * CHP, 128), jnp.float32)
    blk = blk.at[0:CH0, 0:A].set(ac2_w)
    blk = blk.at[CHP:CHP + CH0, A:A + P].set(pol2_w)
    brow = jnp.zeros((1, 128), jnp.float32)
    brow = brow.at[0, 0:A].set(ac2_b[0])
    brow = brow.at[0, A:A + P].set(pol2_b[0])
    cls2 = jnp.concatenate([blk, brow], axis=0)                               # (2*CHP+1, 128)

    return dict(h32=h32,
                layer_w=jnp.stack(layer_w),
                layer_small=jnp.stack(layer_small),
                cls1=cls1, cls2=cls2)


# ----------------------------------------------------------------------------
# Forward pass: one fused pallas_call, everything else is trivial int packing
# ----------------------------------------------------------------------------
def forward(params, input_ids, attention_mask,
            aspect_category_labels=None, polarity_labels=None):
    cfg = CFG
    B, S = input_ids.shape
    nH, dH = cfg["num_heads"], cfg["head_dim"]
    I, L = cfg["intermediate"], cfg["num_layers"]
    A, P = cfg["num_aspect_categories"], cfg["num_polarities"]
    CH2 = 2 * cfg["cls_hidden_pad"]
    assert B + 1 <= OUT_ROWS and A + P <= 128 and S <= cfg["max_pos"]

    include_bce = aspect_category_labels is not None
    include_ce = include_bce and (polarity_labels is not None)

    # packed integer inputs (trivial reshapes/concat; the gathers/one-hots happen in-kernel)
    ids_col = input_ids.astype(jnp.int32).reshape(B * S, 1)
    am = attention_mask.astype(jnp.int32)
    ac_lab = (aspect_category_labels.astype(jnp.int32) if include_bce
              else jnp.zeros((B,), jnp.int32)).reshape(B, 1)
    pol_lab = (polarity_labels.astype(jnp.int32) if include_ce
               else jnp.zeros((B,), jnp.int32)).reshape(B, 1)
    ibs = jnp.concatenate([am, ac_lab, pol_lab], axis=1)                      # (B, S+2)

    inputs = (ids_col, ibs, params["h32"], params["layer_w"], params["layer_small"],
              params["cls1"], params["cls2"])

    kernel = functools.partial(
        _fused_forward_kernel,
        B=B, S=S, nH=nH, dH=dH, L=L, I=I, A=A, P=P, CH2=CH2,
        include_bce=include_bce, include_ce=include_ce)

    out = pl.pallas_call(
        kernel,
        out_shape=jax.ShapeDtypeStruct((OUT_ROWS, 128), jnp.float32),
        in_specs=[_vmem_full(x.shape) for x in inputs],
        out_specs=_vmem_full((OUT_ROWS, 128)),
    )(*inputs)

    loss = out[B, 0] if include_bce else None
    ac_logits = out[:B, 0:A]
    pol_logits = out[:B, A:A + P]
    return loss, ac_logits, pol_logits


# ----------------------------------------------------------------------------
if __name__ == "__main__":
    key = jax.random.PRNGKey(0)
    pkey, ikey, lkey1, lkey2 = jax.random.split(key, 4)

    params = init_params(pkey, CFG)

    B, S = 2, 8
    input_ids = jax.random.randint(ikey, (B, S), 0, CFG["vocab_size"], dtype=jnp.int32)
    attention_mask = jnp.array([[1, 1, 1, 1, 1, 1, 1, 1],
                                [1, 1, 1, 1, 1, 0, 0, 0]], dtype=jnp.int32)
    aspect_labels = jax.random.randint(lkey1, (B,), 0, CFG["num_aspect_categories"],
                                       dtype=jnp.int32)
    polarity_labels = jax.random.randint(lkey2, (B,), 0, CFG["num_polarities"],
                                         dtype=jnp.int32)

    loss, ac_logits, pol_logits = forward(params, input_ids, attention_mask,
                                          aspect_labels, polarity_labels)
    jax.block_until_ready((loss, ac_logits, pol_logits))

    assert ac_logits.shape == (B, CFG["num_aspect_categories"])
    assert pol_logits.shape == (B, CFG["num_polarities"])
    assert loss.shape == ()
    assert bool(jnp.isfinite(loss))
    assert bool(jnp.all(jnp.isfinite(ac_logits))) and bool(jnp.all(jnp.isfinite(pol_logits)))
    print("KERNEL_OK")
</pallas_src>

<mosaic_0001>
module attributes {stable_mosaic.version = 11 : i64} {
  func.func @_fused_forward_kernel(%arg0: memref<16x1xi32, #tpu.memory_space<vmem>>, %arg1: memref<2x10xi32, #tpu.memory_space<vmem>>, %arg2: memref<118x32xf32, #tpu.memory_space<vmem>>, %arg3: memref<2x32x256xf32, #tpu.memory_space<vmem>>, %arg4: memref<2x3x128xf32, #tpu.memory_space<vmem>>, %arg5: memref<33x1024xf32, #tpu.memory_space<vmem>>, %arg6: memref<1025x128xf32, #tpu.memory_space<vmem>>, %arg7: memref<8x128xf32, #tpu.memory_space<vmem>>) attributes {dimension_semantics = [], scalar_prefetch = 0 : i64, scratch_operands = 0 : i64, tpu.core_type = #tpu.core_type<tc>} {
    %c0 = arith.constant 0 : index
    %c0_0 = arith.constant 0 : index
    %0 = vector.load %arg0[%c0, %c0_0] : memref<16x1xi32, #tpu.memory_space<vmem>>, vector<16x1xi32>
    %1 = tpu.iota {dimensions = array<i32: 1>} : vector<16x64xi32>
    %2 = vector.broadcast %0 : vector<16x1xi32> to vector<16x64xi32>
    %3 = arith.cmpi eq, %1, %2 : vector<16x64xi32>
    %4 = arith.extui %3 : vector<16x64xi1> to vector<16x64xi32>
    %5 = arith.sitofp %4 : vector<16x64xi32> to vector<16x64xf32>
    %c0_1 = arith.constant 0 : index
    %c0_2 = arith.constant 0 : index
    %6 = vector.load %arg2[%c0_1, %c0_2] : memref<118x32xf32, #tpu.memory_space<vmem>>, vector<64x32xf32>
    %cst = arith.constant dense<0.000000e+00> : vector<16x32xf32>
    %7 = tpu.matmul %5, %6, %cst {dimension_numbers = #tpu.dot_dimension_numbers<[1], [0], [0], [1], [0, 0, 1, 1], [], []>} : vector<16x64xf32>, vector<64x32xf32>, vector<16x32xf32> -> vector<16x32xf32>
    %c64 = arith.constant 64 : index
    %c0_3 = arith.constant 0 : index
    %8 = vector.load %arg2[%c64, %c0_3] : memref<118x32xf32, #tpu.memory_space<vmem>>, vector<8x32xf32>
    %9 = tpu.concatenate %8, %8 in 0 : vector<8x32xf32>, vector<8x32xf32> -> vector<16x32xf32>
    %10 = arith.addf %7, %9 : vector<16x32xf32>
    %c80 = arith.constant 80 : index
    %c0_4 = arith.constant 0 : index
    %11 = vector.load %arg2[%c80, %c0_4] : memref<118x32xf32, #tpu.memory_space<vmem>>, vector<1x32xf32>
    %12 = vector.broadcast %11 : vector<1x32xf32> to vector<16x32xf32>
    %13 = arith.addf %10, %12 : vector<16x32xf32>
    %c82 = arith.constant 82 : index
    %c0_5 = arith.constant 0 : index
    %14 = vector.load %arg2[%c82, %c0_5] : memref<118x32xf32, #tpu.memory_space<vmem>>, vector<1x32xf32>
    %c83 = arith.constant 83 : index
    %c0_6 = arith.constant 0 : index
    %15 = vector.load %arg2[%c83, %c0_6] : memref<118x32xf32, #tpu.memory_space<vmem>>, vector<1x32xf32>
    %cst_7 = arith.constant dense<0.000000e+00> : vector<16xf32>
    %16 = vector.multi_reduction <add>, %13, %cst_7 [1] : vector<16x32xf32> to vector<16xf32>
    %17 = vector.shape_cast %16 : vector<16xf32> to vector<16x1xf32>
    %cst_8 = arith.constant 3.200000e+01 : f32
    %18 = vector.broadcast %cst_8 : f32 to vector<16x1xf32>
    %19 = arith.divf %17, %18 : vector<16x1xf32>
    %20 = vector.broadcast %19 : vector<16x1xf32> to vector<16x32xf32>
    %21 = arith.subf %13, %20 : vector<16x32xf32>
    %22 = arith.mulf %21, %21 : vector<16x32xf32>
    %cst_9 = arith.constant dense<0.000000e+00> : vector<16xf32>
    %23 = vector.multi_reduction <add>, %22, %cst_9 [1] : vector<16x32xf32> to vector<16xf32>
    %24 = vector.shape_cast %23 : vector<16xf32> to vector<16x1xf32>
    %cst_10 = arith.constant 3.200000e+01 : f32
    %25 = vector.broadcast %cst_10 : f32 to vector<16x1xf32>
    %26 = arith.divf %24, %25 : vector<16x1xf32>
    %27 = vector.broadcast %19 : vector<16x1xf32> to vector<16x32xf32>
    %28 = arith.subf %13, %27 : vector<16x32xf32>
    %cst_11 = arith.constant 9.99999996E-13 : f32
    %29 = vector.broadcast %cst_11 : f32 to vector<16x1xf32>
    %30 = arith.addf %26, %29 : vector<16x1xf32>
    %31 = math.rsqrt %30 : vector<16x1xf32>
    %32 = vector.broadcast %31 : vector<16x1xf32> to vector<16x32xf32>
    %33 = arith.mulf %28, %32 : vector<16x32xf32>
    %34 = vector.broadcast %14 : vector<1x32xf32> to vector<16x32xf32>
    %35 = arith.mulf %33, %34 : vector<16x32xf32>
    %36 = vector.broadcast %15 : vector<1x32xf32> to vector<16x32xf32>
    %37 = arith.addf %35, %36 : vector<16x32xf32>
    %c0_12 = arith.constant 0 : index
    %c0_13 = arith.constant 0 : index
    %38 = vector.load %arg1[%c0_12, %c0_13] : memref<2x10xi32, #tpu.memory_space<vmem>>, vector<2x8xi32>
    %39 = arith.sitofp %38 : vector<2x8xi32> to vector<2x8xf32>
    %cst_14 = arith.constant 1.000000e+00 : f32
    %40 = vector.broadcast %cst_14 : f32 to vector<2x8xf32>
    %41 = arith.subf %40, %39 : vector<2x8xf32>
    %cst_15 = arith.constant -1.000000e+04 : f32
    %42 = vector.broadcast %cst_15 : f32 to vector<2x8xf32>
    %43 = arith.mulf %41, %42 : vector<2x8xf32>
    %44 = vector.shape_cast %43 : vector<2x8xf32> to vector<2x1x8xf32>
    %c0_16 = arith.constant 0 : index
    %c0_17 = arith.constant 0 : index
    %c0_18 = arith.constant 0 : index
    %45 = vector.load %arg3[%c0_16, %c0_17, %c0_18] : memref<2x32x256xf32, #tpu.memory_space<vmem>>, vector<1x32x256xf32>
    %46 = vector.shape_cast %45 : vector<1x32x256xf32> to vector<32x256xf32>
    %c0_19 = arith.constant 0 : index
    %c0_20 = arith.constant 0 : index
    %c0_21 = arith.constant 0 : index
    %47 = vector.load %arg4[%c0_19, %c0_20, %c0_21] : memref<2x3x128xf32, #tpu.memory_space<vmem>>, vector<1x3x128xf32>
    %48 = vector.shape_cast %47 : vector<1x3x128xf32> to vector<3x128xf32>
    %49 = vector.extract_strided_slice %46 {offsets = [0, 0], sizes = [32, 96], strides = [1, 1]} : vector<32x256xf32> to vector<32x96xf32>
    %50 = vector.extract_strided_slice %46 {offsets = [0, 96], sizes = [32, 32], strides = [1, 1]} : vector<32x256xf32> to vector<32x32xf32>
    %51 = vector.extract_strided_slice %46 {offsets = [0, 128], sizes = [32, 64], strides = [1, 1]} : vector<32x256xf32> to vector<32x64xf32>
    %52 = vector.extract_strided_slice %46 {offsets = [0, 192], sizes = [32, 64], strides = [1, 1]} : vector<32x256xf32> to vector<32x64xf32>
    %53 = vector.extract_strided_slice %48 {offsets = [0, 0], sizes = [1, 96], strides = [1, 1]} : vector<3x128xf32> to vector<1x96xf32>
    %54 = vector.extract_strided_slice %48 {offsets = [0, 96], sizes = [1, 32], strides = [1, 1]} : vector<3x128xf32> to vector<1x32xf32>
    %55 = vector.extract_strided_slice %48 {offsets = [1, 0], sizes = [1, 32], strides = [1, 1]} : vector<3x128xf32> to vector<1x32xf32>
    %56 = vector.extract_strided_slice %48 {offsets = [1, 32], sizes = [1, 32], strides = [1, 1]} : vector<3x128xf32> to vector<1x32xf32>
    %57 = vector.extract_strided_slice %48 {offsets = [1, 64], sizes = [1, 64], strides = [1, 1]} : vector<3x128xf32> to vector<1x64xf32>
    %58 = vector.extract_strided_slice %48 {offsets = [2, 0], sizes = [1, 32], strides = [1, 1]} : vector<3x128xf32> to vector<1x32xf32>
    %59 = vector.extract_strided_slice %48 {offsets = [2, 32], sizes = [1, 32], strides = [1, 1]} : vector<3x128xf32> to vector<1x32xf32>
    %60 = vector.extract_strided_slice %48 {offsets = [2, 64], sizes = [1, 32], strides = [1, 1]} : vector<3x128xf32> to vector<1x32xf32>
    %cst_22 = arith.constant dense<0.000000e+00> : vector<16x96xf32>
    %61 = tpu.matmul %37, %49, %cst_22 {dimension_numbers = #tpu.dot_dimension_numbers<[1], [0], [0], [1], [0, 0, 1, 1], [], []>} : vector<16x32xf32>, vector<32x96xf32>, vector<16x96xf32> -> vector<16x96xf32>
    %62 = vector.broadcast %53 : vector<1x96xf32> to vector<16x96xf32>
    %63 = arith.addf %61, %62 : vector<16x96xf32>
    %64 = vector.extract_strided_slice %63 {offsets = [0, 0], sizes = [16, 32], strides = [1, 1]} : vector<16x96xf32> to vector<16x32xf32>
    %65 = vector.shape_cast %64 : vector<16x32xf32> to vector<2x8x32xf32>
    %66 = vector.extract_strided_slice %63 {offsets = [0, 32], sizes = [16, 32], strides = [1, 1]} : vector<16x96xf32> to vector<16x32xf32>
    %67 = vector.shape_cast %66 : vector<16x32xf32> to vector<2x8x32xf32>
    %68 = vector.extract_strided_slice %63 {offsets = [0, 64], sizes = [16, 32], strides = [1, 1]} : vector<16x96xf32> to vector<16x32xf32>
    %69 = vector.shape_cast %68 : vector<16x32xf32> to vector<2x8x32xf32>
    %70 = vector.extract_strided_slice %65 {offsets = [0, 0, 0], sizes = [2, 8, 8], strides = [1, 1, 1]} : vector<2x8x32xf32> to vector<2x8x8xf32>
    %71 = vector.extract_strided_slice %67 {offsets = [0, 0, 0], sizes = [2, 8, 8], strides = [1, 1, 1]} : vector<2x8x32xf32> to vector<2x8x8xf32>
    %72 = vector.extract_strided_slice %69 {offsets = [0, 0, 0], sizes = [2, 8, 8], strides = [1, 1, 1]} : vector<2x8x32xf32> to vector<2x8x8xf32>
    "tpu.trace_start"() <{level = 10 : i32, message = "bqd,bkd->bqk"}> : () -> ()
    %cst_23 = arith.constant dense<0.000000e+00> : vector<2x8x8xf32>
    %73 = tpu.matmul %70, %71, %cst_23 {dimension_numbers = #tpu.dot_dimension_numbers<[2], [2], [1], [1], [0, 0, 0, 1, 1, 1], [0], [0]>} : vector<2x8x8xf32>, vector<2x8x8xf32>, vector<2x8x8xf32> -> vector<2x8x8xf32>
    "tpu.trace_stop"() : () -> ()
    %cst_24 = arith.constant 0.353553385 : f32
    %74 = vector.broadcast %cst_24 : f32 to vector<2x8x8xf32>
    %75 = arith.mulf %73, %74 : vector<2x8x8xf32>
    %76 = vector.broadcast %44 : vector<2x1x8xf32> to vector<2x8x8xf32>
    %77 = arith.addf %75, %76 : vector<2x8x8xf32>
    %cst_25 = arith.constant dense<0xFF800000> : vector<2x8xf32>
    %78 = vector.multi_reduction <maximumf>, %77, %cst_25 [2] : vector<2x8x8xf32> to vector<2x8xf32>
    %79 = vector.shape_cast %78 : vector<2x8xf32> to vector<2x8x1xf32>
    %80 = vector.broadcast %79 : vector<2x8x1xf32> to vector<2x8x8xf32>
    %81 = arith.subf %77, %80 : vector<2x8x8xf32>
    %82 = math.exp %81 : vector<2x8x8xf32>
    %cst_26 = arith.constant dense<0.000000e+00> : vector<2x8xf32>
    %83 = vector.multi_reduction <add>, %82, %cst_26 [2] : vector<2x8x8xf32> to vector<2x8xf32>
    %84 = vector.shape_cast %83 : vector<2x8xf32> to vector<2x8x1xf32>
    %85 = vector.broadcast %84 : vector<2x8x1xf32> to vector<2x8x8xf32>
    %86 = arith.divf %82, %85 : vector<2x8x8xf32>
    "tpu.trace_start"() <{level = 10 : i32, message = "bqk,bkd->bqd"}> : () -> ()
    %cst_27 = arith.constant dense<0.000000e+00> : vector<2x8x8xf32>
    %87 = tpu.matmul %86, %72, %cst_27 {dimension_numbers = #tpu.dot_dimension_numbers<[2], [1], [1], [2], [0, 0, 0, 1, 1, 2], [0], [0]>} : vector<2x8x8xf32>, vector<2x8x8xf32>, vector<2x8x8xf32> -> vector<2x8x8xf32>
    "tpu.trace_stop"() : () -> ()
    %88 = vector.extract_strided_slice %65 {offsets = [0, 0, 8], sizes = [2, 8, 8], strides = [1, 1, 1]} : vector<2x8x32xf32> to vector<2x8x8xf32>
    %89 = vector.extract_strided_slice %67 {offsets = [0, 0, 8], sizes = [2, 8, 8], strides = [1, 1, 1]} : vector<2x8x32xf32> to vector<2x8x8xf32>
    %90 = vector.extract_strided_slice %69 {offsets = [0, 0, 8], sizes = [2, 8, 8], strides = [1, 1, 1]} : vector<2x8x32xf32> to vector<2x8x8xf32>
    "tpu.trace_start"() <{level = 10 : i32, message = "bqd,bkd->bqk"}> : () -> ()
    %cst_28 = arith.constant dense<0.000000e+00> : vector<2x8x8xf32>
    %91 = tpu.matmul %88, %89, %cst_28 {dimension_numbers = #tpu.dot_dimension_numbers<[2], [2], [1], [1], [0, 0, 0, 1, 1, 1], [0], [0]>} : vector<2x8x8xf32>, vector<2x8x8xf32>, vector<2x8x8xf32> -> vector<2x8x8xf32>
    "tpu.trace_stop"() : () -> ()
    %cst_29 = arith.constant 0.353553385 : f32
    %92 = vector.broadcast %cst_29 : f32 to vector<2x8x8xf32>
    %93 = arith.mulf %91, %92 : vector<2x8x8xf32>
    %94 = vector.broadcast %44 : vector<2x1x8xf32> to vector<2x8x8xf32>
    %95 = arith.addf %93, %94 : vector<2x8x8xf32>
    %cst_30 = arith.constant dense<0xFF800000> : vector<2x8xf32>
    %96 = vector.multi_reduction <maximumf>, %95, %cst_30 [2] : vector<2x8x8xf32> to vector<2x8xf32>
    %97 = vector.shape_cast %96 : vector<2x8xf32> to vector<2x8x1xf32>
    %98 = vector.broadcast %97 : vector<2x8x1xf32> to vector<2x8x8xf32>
    %99 = arith.subf %95, %98 : vector<2x8x8xf32>
    %100 = math.exp %99 : vector<2x8x8xf32>
    %cst_31 = arith.constant dense<0.000000e+00> : vector<2x8xf32>
    %101 = vector.multi_reduction <add>, %100, %cst_31 [2] : vector<2x8x8xf32> to vector<2x8xf32>
    %102 = vector.shape_cast %101 : vector<2x8xf32> to vector<2x8x1xf32>
    %103 = vector.broadcast %102 : vector<2x8x1xf32> to vector<2x8x8xf32>
    %104 = arith.divf %100, %103 : vector<2x8x8xf32>
    "tpu.trace_start"() <{level = 10 : i32, message = "bqk,bkd->bqd"}> : () -> ()
    %cst_32 = arith.constant dense<0.000000e+00> : vector<2x8x8xf32>
    %105 = tpu.matmul %104, %90, %cst_32 {dimension_numbers = #tpu.dot_dimension_numbers<[2], [1], [1], [2], [0, 0, 0, 1, 1, 2], [0], [0]>} : vector<2x8x8xf32>, vector<2x8x8xf32>, vector<2x8x8xf32> -> vector<2x8x8xf32>
    "tpu.trace_stop"() : () -> ()
    %106 = vector.extract_strided_slice %65 {offsets = [0, 0, 16], sizes = [2, 8, 8], strides = [1, 1, 1]} : vector<2x8x32xf32> to vector<2x8x8xf32>
    %107 = vector.extract_strided_slice %67 {offsets = [0, 0, 16], sizes = [2, 8, 8], strides = [1, 1, 1]} : vector<2x8x32xf32> to vector<2x8x8xf32>
    %108 = vector.extract_strided_slice %69 {offsets = [0, 0, 16], sizes = [2, 8, 8], strides = [1, 1, 1]} : vector<2x8x32xf32> to vector<2x8x8xf32>
    "tpu.trace_start"() <{level = 10 : i32, message = "bqd,bkd->bqk"}> : () -> ()
    %cst_33 = arith.constant dense<0.000000e+00> : vector<2x8x8xf32>
    %109 = tpu.matmul %106, %107, %cst_33 {dimension_numbers = #tpu.dot_dimension_numbers<[2], [2], [1], [1], [0, 0, 0, 1, 1, 1], [0], [0]>} : vector<2x8x8xf32>, vector<2x8x8xf32>, vector<2x8x8xf32> -> vector<2x8x8xf32>
    "tpu.trace_stop"() : () -> ()
    %cst_34 = arith.constant 0.353553385 : f32
    %110 = vector.broadcast %cst_34 : f32 to vector<2x8x8xf32>
    %111 = arith.mulf %109, %110 : vector<2x8x8xf32>
    %112 = vector.broadcast %44 : vector<2x1x8xf32> to vector<2x8x8xf32>
    %113 = arith.addf %111, %112 : vector<2x8x8xf32>
    %cst_35 = arith.constant dense<0xFF800000> : vector<2x8xf32>
    %114 = vector.multi_reduction <maximumf>, %113, %cst_35 [2] : vector<2x8x8xf32> to vector<2x8xf32>
    %115 = vector.shape_cast %114 : vector<2x8xf32> to vector<2x8x1xf32>
    %116 = vector.broadcast %115 : vector<2x8x1xf32> to vector<2x8x8xf32>
    %117 = arith.subf %113, %116 : vector<2x8x8xf32>
    %118 = math.exp %117 : vector<2x8x8xf32>
    %cst_36 = arith.constant dense<0.000000e+00> : vector<2x8xf32>
    %119 = vector.multi_reduction <add>, %118, %cst_36 [2] : vector<2x8x8xf32> to vector<2x8xf32>
    %120 = vector.shape_cast %119 : vector<2x8xf32> to vector<2x8x1xf32>
    %121 = vector.broadcast %120 : vector<2x8x1xf32> to vector<2x8x8xf32>
    %122 = arith.divf %118, %121 : vector<2x8x8xf32>
    "tpu.trace_start"() <{level = 10 : i32, message = "bqk,bkd->bqd"}> : () -> ()
    %cst_37 = arith.constant dense<0.000000e+00> : vector<2x8x8xf32>
    %123 = tpu.matmul %122, %108, %cst_37 {dimension_numbers = #tpu.dot_dimension_numbers<[2], [1], [1], [2], [0, 0, 0, 1, 1, 2], [0], [0]>} : vector<2x8x8xf32>, vector<2x8x8xf32>, vector<2x8x8xf32> -> vector<2x8x8xf32>
    "tpu.trace_stop"() : () -> ()
    %124 = vector.extract_strided_slice %65 {offsets = [0, 0, 24], sizes = [2, 8, 8], strides = [1, 1, 1]} : vector<2x8x32xf32> to vector<2x8x8xf32>
    %125 = vector.extract_strided_slice %67 {offsets = [0, 0, 24], sizes = [2, 8, 8], strides = [1, 1, 1]} : vector<2x8x32xf32> to vector<2x8x8xf32>
    %126 = vector.extract_strided_slice %69 {offsets = [0, 0, 24], sizes = [2, 8, 8], strides = [1, 1, 1]} : vector<2x8x32xf32> to vector<2x8x8xf32>
    "tpu.trace_start"() <{level = 10 : i32, message = "bqd,bkd->bqk"}> : () -> ()
    %cst_38 = arith.constant dense<0.000000e+00> : vector<2x8x8xf32>
    %127 = tpu.matmul %124, %125, %cst_38 {dimension_numbers = #tpu.dot_dimension_numbers<[2], [2], [1], [1], [0, 0, 0, 1, 1, 1], [0], [0]>} : vector<2x8x8xf32>, vector<2x8x8xf32>, vector<2x8x8xf32> -> vector<2x8x8xf32>
    "tpu.trace_stop"() : () -> ()
    %cst_39 = arith.constant 0.353553385 : f32
    %128 = vector.broadcast %cst_39 : f32 to vector<2x8x8xf32>
    %129 = arith.mulf %127, %128 : vector<2x8x8xf32>
    %130 = vector.broadcast %44 : vector<2x1x8xf32> to vector<2x8x8xf32>
    %131 = arith.addf %129, %130 : vector<2x8x8xf32>
    %cst_40 = arith.constant dense<0xFF800000> : vector<2x8xf32>
    %132 = vector.multi_reduction <maximumf>, %131, %cst_40 [2] : vector<2x8x8xf32> to vector<2x8xf32>
    %133 = vector.shape_cast %132 : vector<2x8xf32> to vector<2x8x1xf32>
    %134 = vector.broadcast %133 : vector<2x8x1xf32> to vector<2x8x8xf32>
    %135 = arith.subf %131, %134 : vector<2x8x8xf32>
    %136 = math.exp %135 : vector<2x8x8xf32>
    %cst_41 = arith.constant dense<0.000000e+00> : vector<2x8xf32>
    %137 = vector.multi_reduction <add>, %136, %cst_41 [2] : vector<2x8x8xf32> to vector<2x8xf32>
    %138 = vector.shape_cast %137 : vector<2x8xf32> to vector<2x8x1xf32>
    %139 = vector.broadcast %138 : vector<2x8x1xf32> to vector<2x8x8xf32>
    %140 = arith.divf %136, %139 : vector<2x8x8xf32>
    "tpu.trace_start"() <{level = 10 : i32, message = "bqk,bkd->bqd"}> : () -> ()
    %cst_42 = arith.constant dense<0.000000e+00> : vector<2x8x8xf32>
    %141 = tpu.matmul %140, %126, %cst_42 {dimension_numbers = #tpu.dot_dimension_numbers<[2], [1], [1], [2], [0, 0, 0, 1, 1, 2], [0], [0]>} : vector<2x8x8xf32>, vector<2x8x8xf32>, vector<2x8x8xf32> -> vector<2x8x8xf32>
    "tpu.trace_stop"() : () -> ()
    %142 = tpu.concatenate %87, %105, %123, %141 in 2 : vector<2x8x8xf32>, vector<2x8x8xf32>, vector<2x8x8xf32>, vector<2x8x8xf32> -> vector<2x8x32xf32>
    %143 = vector.shape_cast %142 : vector<2x8x32xf32> to vector<16x32xf32>
    %cst_43 = arith.constant dense<0.000000e+00> : vector<16x32xf32>
    %144 = tpu.matmul %143, %50, %cst_43 {dimension_numbers = #tpu.dot_dimension_numbers<[1], [0], [0], [1], [0, 0, 1, 1], [], []>} : vector<16x32xf32>, vector<32x32xf32>, vector<16x32xf32> -> vector<16x32xf32>
    %145 = vector.broadcast %54 : vector<1x32xf32> to vector<16x32xf32>
    %146 = arith.addf %144, %145 : vector<16x32xf32>
    %147 = arith.addf %146, %37 : vector<16x32xf32>
    %cst_44 = arith.constant dense<0.000000e+00> : vector<16xf32>
    %148 = vector.multi_reduction <add>, %147, %cst_44 [1] : vector<16x32xf32> to vector<16xf32>
    %149 = vector.shape_cast %148 : vector<16xf32> to vector<16x1xf32>
    %cst_45 = arith.constant 3.200000e+01 : f32
    %150 = vector.broadcast %cst_45 : f32 to vector<16x1xf32>
    %151 = arith.divf %149, %150 : vector<16x1xf32>
    %152 = vector.broadcast %151 : vector<16x1xf32> to vector<16x32xf32>
    %153 = arith.subf %147, %152 : vector<16x32xf32>
    %154 = arith.mulf %153, %153 : vector<16x32xf32>
    %cst_46 = arith.constant dense<0.000000e+00> : vector<16xf32>
    %155 = vector.multi_reduction <add>, %154, %cst_46 [1] : vector<16x32xf32> to vector<16xf32>
    %156 = vector.shape_cast %155 : vector<16xf32> to vector<16x1xf32>
    %cst_47 = arith.constant 3.200000e+01 : f32
    %157 = vector.broadcast %cst_47 : f32 to vector<16x1xf32>
    %158 = arith.divf %156, %157 : vector<16x1xf32>
    %159 = vector.broadcast %151 : vector<16x1xf32> to vector<16x32xf32>
    %160 = arith.subf %147, %159 : vector<16x32xf32>
    %cst_48 = arith.constant 9.99999996E-13 : f32
    %161 = vector.broadcast %cst_48 : f32 to vector<16x1xf32>
    %162 = arith.addf %158, %161 : vector<16x1xf32>
    %163 = math.rsqrt %162 : vector<16x1xf32>
    %164 = vector.broadcast %163 : vector<16x1xf32> to vector<16x32xf32>
    %165 = arith.mulf %160, %164 : vector<16x32xf32>
    %166 = vector.broadcast %55 : vector<1x32xf32> to vector<16x32xf32>
    %167 = arith.mulf %165, %166 : vector<16x32xf32>
    %168 = vector.broadcast %56 : vector<1x32xf32> to vector<16x32xf32>
    %169 = arith.addf %167, %168 : vector<16x32xf32>
    %cst_49 = arith.constant dense<0.000000e+00> : vector<16x64xf32>
    %170 = tpu.matmul %169, %51, %cst_49 {dimension_numbers = #tpu.dot_dimension_numbers<[1], [0], [0], [1], [0, 0, 1, 1], [], []>} : vector<16x32xf32>, vector<32x64xf32>, vector<16x64xf32> -> vector<16x64xf32>
    %171 = vector.broadcast %57 : vector<1x64xf32> to vector<16x64xf32>
    %172 = arith.addf %170, %171 : vector<16x64xf32>
    %173 = arith.mulf %172, %172 : vector<16x64xf32>
    %174 = arith.mulf %172, %173 : vector<16x64xf32>
    %cst_50 = arith.constant 4.471500e-02 : f32
    %175 = vector.broadcast %cst_50 : f32 to vector<16x64xf32>
    %176 = arith.mulf %175, %174 : vector<16x64xf32>
    %177 = arith.addf %172, %176 : vector<16x64xf32>
    %cst_51 = arith.constant 0.797884583 : f32
    %178 = vector.broadcast %cst_51 : f32 to vector<16x64xf32>
    %179 = arith.mulf %178, %177 : vector<16x64xf32>
    %180 = math.tanh %179 : vector<16x64xf32>
    %cst_52 = arith.constant 1.000000e+00 : f32
    %181 = vector.broadcast %cst_52 : f32 to vector<16x64xf32>
    %182 = arith.addf %181, %180 : vector<16x64xf32>
    %cst_53 = arith.constant 5.000000e-01 : f32
    %183 = vector.broadcast %cst_53 : f32 to vector<16x64xf32>
    %184 = arith.mulf %183, %182 : vector<16x64xf32>
    %185 = arith.mulf %172, %184 : vector<16x64xf32>
    %cst_54 = arith.constant dense<0.000000e+00> : vector<16x32xf32>
    %186 = tpu.matmul %185, %52, %cst_54 {dimension_numbers = #tpu.dot_dimension_numbers<[1], [1], [0], [0], [0, 0, 1, 0], [], []>} : vector<16x64xf32>, vector<32x64xf32>, vector<16x32xf32> -> vector<16x32xf32>
    %187 = vector.broadcast %58 : vector<1x32xf32> to vector<16x32xf32>
    %188 = arith.addf %186, %187 : vector<16x32xf32>
    %189 = arith.addf %188, %169 : vector<16x32xf32>
    %cst_55 = arith.constant dense<0.000000e+00> : vector<16xf32>
    %190 = vector.multi_reduction <add>, %189, %cst_55 [1] : vector<16x32xf32> to vector<16xf32>
    %191 = vector.shape_cast %190 : vector<16xf32> to vector<16x1xf32>
    %cst_56 = arith.constant 3.200000e+01 : f32
    %192 = vector.broadcast %cst_56 : f32 to vector<16x1xf32>
    %193 = arith.divf %191, %192 : vector<16x1xf32>
    %194 = vector.broadcast %193 : vector<16x1xf32> to vector<16x32xf32>
    %195 = arith.subf %189, %194 : vector<16x32xf32>
    %196 = arith.mulf %195, %195 : vector<16x32xf32>
    %cst_57 = arith.constant dense<0.000000e+00> : vector<16xf32>
    %197 = vector.multi_reduction <add>, %196, %cst_57 [1] : vector<16x32xf32> to vector<16xf32>
    %198 = vector.shape_cast %197 : vector<16xf32> to vector<16x1xf32>
    %cst_58 = arith.constant 3.200000e+01 : f32
    %199 = vector.broadcast %cst_58 : f32 to vector<16x1xf32>
    %200 = arith.divf %198, %199 : vector<16x1xf32>
    %201 = vector.broadcast %193 : vector<16x1xf32> to vector<16x32xf32>
    %202 = arith.subf %189, %201 : vector<16x32xf32>
    %cst_59 = arith.constant 9.99999996E-13 : f32
    %203 = vector.broadcast %cst_59 : f32 to vector<16x1xf32>
    %204 = arith.addf %200, %203 : vector<16x1xf32>
    %205 = math.rsqrt %204 : vector<16x1xf32>
    %206 = vector.broadcast %205 : vector<16x1xf32> to vector<16x32xf32>
    %207 = arith.mulf %202, %206 : vector<16x32xf32>
    %208 = vector.broadcast %59 : vector<1x32xf32> to vector<16x32xf32>
    %209 = arith.mulf %207, %208 : vector<16x32xf32>
    %210 = vector.broadcast %60 : vector<1x32xf32> to vector<16x32xf32>
    %211 = arith.addf %209, %210 : vector<16x32xf32>
    %c1 = arith.constant 1 : index
    %c0_60 = arith.constant 0 : index
    %c0_61 = arith.constant 0 : index
    %212 = vector.load %arg3[%c1, %c0_60, %c0_61] : memref<2x32x256xf32, #tpu.memory_space<vmem>>, vector<1x32x256xf32>
    %213 = vector.shape_cast %212 : vector<1x32x256xf32> to vector<32x256xf32>
    %c1_62 = arith.constant 1 : index
    %c0_63 = arith.constant 0 : index
    %c0_64 = arith.constant 0 : index
    %214 = vector.load %arg4[%c1_62, %c0_63, %c0_64] : memref<2x3x128xf32, #tpu.memory_space<vmem>>, vector<1x3x128xf32>
    %215 = vector.shape_cast %214 : vector<1x3x128xf32> to vector<3x128xf32>
    %216 = vector.extract_strided_slice %213 {offsets = [0, 0], sizes = [32, 96], strides = [1, 1]} : vector<32x256xf32> to vector<32x96xf32>
    %217 = vector.extract_strided_slice %213 {offsets = [0, 96], sizes = [32, 32], strides = [1, 1]} : vector<32x256xf32> to vector<32x32xf32>
    %218 = vector.extract_strided_slice %213 {offsets = [0, 128], sizes = [32, 64], strides = [1, 1]} : vector<32x256xf32> to vector<32x64xf32>
    %219 = vector.extract_strided_slice %213 {offsets = [0, 192], sizes = [32, 64], strides = [1, 1]} : vector<32x256xf32> to vector<32x64xf32>
    %220 = vector.extract_strided_slice %215 {offsets = [0, 0], sizes = [1, 96], strides = [1, 1]} : vector<3x128xf32> to vector<1x96xf32>
    %221 = vector.extract_strided_slice %215 {offsets = [0, 96], sizes = [1, 32], strides = [1, 1]} : vector<3x128xf32> to vector<1x32xf32>
    %222 = vector.extract_strided_slice %215 {offsets = [1, 0], sizes = [1, 32], strides = [1, 1]} : vector<3x128xf32> to vector<1x32xf32>
    %223 = vector.extract_strided_slice %215 {offsets = [1, 32], sizes = [1, 32], strides = [1, 1]} : vector<3x128xf32> to vector<1x32xf32>
    %224 = vector.extract_strided_slice %215 {offsets = [1, 64], sizes = [1, 64], strides = [1, 1]} : vector<3x128xf32> to vector<1x64xf32>
    %225 = vector.extract_strided_slice %215 {offsets = [2, 0], sizes = [1, 32], strides = [1, 1]} : vector<3x128xf32> to vector<1x32xf32>
    %226 = vector.extract_strided_slice %215 {offsets = [2, 32], sizes = [1, 32], strides = [1, 1]} : vector<3x128xf32> to vector<1x32xf32>
    %227 = vector.extract_strided_slice %215 {offsets = [2, 64], sizes = [1, 32], strides = [1, 1]} : vector<3x128xf32> to vector<1x32xf32>
    %cst_65 = arith.constant dense<0.000000e+00> : vector<16x96xf32>
    %228 = tpu.matmul %211, %216, %cst_65 {dimension_numbers = #tpu.dot_dimension_numbers<[1], [0], [0], [1], [0, 0, 1, 1], [], []>} : vector<16x32xf32>, vector<32x96xf32>, vector<16x96xf32> -> vector<16x96xf32>
    %229 = vector.broadcast %220 : vector<1x96xf32> to vector<16x96xf32>
    %230 = arith.addf %228, %229 : vector<16x96xf32>
    %231 = vector.extract_strided_slice %230 {offsets = [0, 0], sizes = [16, 32], strides = [1, 1]} : vector<16x96xf32> to vector<16x32xf32>
    %232 = vector.shape_cast %231 : vector<16x32xf32> to vector<2x8x32xf32>
    %233 = vector.extract_strided_slice %230 {offsets = [0, 32], sizes = [16, 32], strides = [1, 1]} : vector<16x96xf32> to vector<16x32xf32>
    %234 = vector.shape_cast %233 : vector<16x32xf32> to vector<2x8x32xf32>
    %235 = vector.extract_strided_slice %230 {offsets = [0, 64], sizes = [16, 32], strides = [1, 1]} : vector<16x96xf32> to vector<16x32xf32>
    %236 = vector.shape_cast %235 : vector<16x32xf32> to vector<2x8x32xf32>
    %237 = vector.extract_strided_slice %232 {offsets = [0, 0, 0], sizes = [2, 8, 8], strides = [1, 1, 1]} : vector<2x8x32xf32> to vector<2x8x8xf32>
    %238 = vector.extract_strided_slice %234 {offsets = [0, 0, 0], sizes = [2, 8, 8], strides = [1, 1, 1]} : vector<2x8x32xf32> to vector<2x8x8xf32>
    %239 = vector.extract_strided_slice %236 {offsets = [0, 0, 0], sizes = [2, 8, 8], strides = [1, 1, 1]} : vector<2x8x32xf32> to vector<2x8x8xf32>
    "tpu.trace_start"() <{level = 10 : i32, message = "bqd,bkd->bqk"}> : () -> ()
    %cst_66 = arith.constant dense<0.000000e+00> : vector<2x8x8xf32>
    %240 = tpu.matmul %237, %238, %cst_66 {dimension_numbers = #tpu.dot_dimension_numbers<[2], [2], [1], [1], [0, 0, 0, 1, 1, 1], [0], [0]>} : vector<2x8x8xf32>, vector<2x8x8xf32>, vector<2x8x8xf32> -> vector<2x8x8xf32>
    "tpu.trace_stop"() : () -> ()
    %cst_67 = arith.constant 0.353553385 : f32
    %241 = vector.broadcast %cst_67 : f32 to vector<2x8x8xf32>
    %242 = arith.mulf %240, %241 : vector<2x8x8xf32>
    %243 = vector.broadcast %44 : vector<2x1x8xf32> to vector<2x8x8xf32>
    %244 = arith.addf %242, %243 : vector<2x8x8xf32>
    %cst_68 = arith.constant dense<0xFF800000> : vector<2x8xf32>
    %245 = vector.multi_reduction <maximumf>, %244, %cst_68 [2] : vector<2x8x8xf32> to vector<2x8xf32>
    %246 = vector.shape_cast %245 : vector<2x8xf32> to vector<2x8x1xf32>
    %247 = vector.broadcast %246 : vector<2x8x1xf32> to vector<2x8x8xf32>
    %248 = arith.subf %244, %247 : vector<2x8x8xf32>
    %249 = math.exp %248 : vector<2x8x8xf32>
    %cst_69 = arith.constant dense<0.000000e+00> : vector<2x8xf32>
    %250 = vector.multi_reduction <add>, %249, %cst_69 [2] : vector<2x8x8xf32> to vector<2x8xf32>
    %251 = vector.shape_cast %250 : vector<2x8xf32> to vector<2x8x1xf32>
    %252 = vector.broadcast %251 : vector<2x8x1xf32> to vector<2x8x8xf32>
    %253 = arith.divf %249, %252 : vector<2x8x8xf32>
    "tpu.trace_start"() <{level = 10 : i32, message = "bqk,bkd->bqd"}> : () -> ()
    %cst_70 = arith.constant dense<0.000000e+00> : vector<2x8x8xf32>
    %254 = tpu.matmul %253, %239, %cst_70 {dimension_numbers = #tpu.dot_dimension_numbers<[2], [1], [1], [2], [0, 0, 0, 1, 1, 2], [0], [0]>} : vector<2x8x8xf32>, vector<2x8x8xf32>, vector<2x8x8xf32> -> vector<2x8x8xf32>
    "tpu.trace_stop"() : () -> ()
    %255 = vector.extract_strided_slice %232 {offsets = [0, 0, 8], sizes = [2, 8, 8], strides = [1, 1, 1]} : vector<2x8x32xf32> to vector<2x8x8xf32>
    %256 = vector.extract_strided_slice %234 {offsets = [0, 0, 8], sizes = [2, 8, 8], strides = [1, 1, 1]} : vector<2x8x32xf32> to vector<2x8x8xf32>
    %257 = vector.extract_strided_slice %236 {offsets = [0, 0, 8], sizes = [2, 8, 8], strides = [1, 1, 1]} : vector<2x8x32xf32> to vector<2x8x8xf32>
    "tpu.trace_start"() <{level = 10 : i32, message = "bqd,bkd->bqk"}> : () -> ()
    %cst_71 = arith.constant dense<0.000000e+00> : vector<2x8x8xf32>
    %258 = tpu.matmul %255, %256, %cst_71 {dimension_numbers = #tpu.dot_dimension_numbers<[2], [2], [1], [1], [0, 0, 0, 1, 1, 1], [0], [0]>} : vector<2x8x8xf32>, vector<2x8x8xf32>, vector<2x8x8xf32> -> vector<2x8x8xf32>
    "tpu.trace_stop"() : () -> ()
    %cst_72 = arith.constant 0.353553385 : f32
    %259 = vector.broadcast %cst_72 : f32 to vector<2x8x8xf32>
    %260 = arith.mulf %258, %259 : vector<2x8x8xf32>
    %261 = vector.broadcast %44 : vector<2x1x8xf32> to vector<2x8x8xf32>
    %262 = arith.addf %260, %261 : vector<2x8x8xf32>
    %cst_73 = arith.constant dense<0xFF800000> : vector<2x8xf32>
    %263 = vector.multi_reduction <maximumf>, %262, %cst_73 [2] : vector<2x8x8xf32> to vector<2x8xf32>
    %264 = vector.shape_cast %263 : vector<2x8xf32> to vector<2x8x1xf32>
    %265 = vector.broadcast %264 : vector<2x8x1xf32> to vector<2x8x8xf32>
    %266 = arith.subf %262, %265 : vector<2x8x8xf32>
    %267 = math.exp %266 : vector<2x8x8xf32>
    %cst_74 = arith.constant dense<0.000000e+00> : vector<2x8xf32>
    %268 = vector.multi_reduction <add>, %267, %cst_74 [2] : vector<2x8x8xf32> to vector<2x8xf32>
    %269 = vector.shape_cast %268 : vector<2x8xf32> to vector<2x8x1xf32>
    %270 = vector.broadcast %269 : vector<2x8x1xf32> to vector<2x8x8xf32>
    %271 = arith.divf %267, %270 : vector<2x8x8xf32>
    "tpu.trace_start"() <{level = 10 : i32, message = "bqk,bkd->bqd"}> : () -> ()
    %cst_75 = arith.constant dense<0.000000e+00> : vector<2x8x8xf32>
    %272 = tpu.matmul %271, %257, %cst_75 {dimension_numbers = #tpu.dot_dimension_numbers<[2], [1], [1], [2], [0, 0, 0, 1, 1, 2], [0], [0]>} : vector<2x8x8xf32>, vector<2x8x8xf32>, vector<2x8x8xf32> -> vector<2x8x8xf32>
    "tpu.trace_stop"() : () -> ()
    %273 = vector.extract_strided_slice %232 {offsets = [0, 0, 16], sizes = [2, 8, 8], strides = [1, 1, 1]} : vector<2x8x32xf32> to vector<2x8x8xf32>
    %274 = vector.extract_strided_slice %234 {offsets = [0, 0, 16], sizes = [2, 8, 8], strides = [1, 1, 1]} : vector<2x8x32xf32> to vector<2x8x8xf32>
    %275 = vector.extract_strided_slice %236 {offsets = [0, 0, 16], sizes = [2, 8, 8], strides = [1, 1, 1]} : vector<2x8x32xf32> to vector<2x8x8xf32>
    "tpu.trace_start"() <{level = 10 : i32, message = "bqd,bkd->bqk"}> : () -> ()
    %cst_76 = arith.constant dense<0.000000e+00> : vector<2x8x8xf32>
    %276 = tpu.matmul %273, %274, %cst_76 {dimension_numbers = #tpu.dot_dimension_numbers<[2], [2], [1], [1], [0, 0, 0, 1, 1, 1], [0], [0]>} : vector<2x8x8xf32>, vector<2x8x8xf32>, vector<2x8x8xf32> -> vector<2x8x8xf32>
    "tpu.trace_stop"() : () -> ()
    %cst_77 = arith.constant 0.353553385 : f32
    %277 = vector.broadcast %cst_77 : f32 to vector<2x8x8xf32>
    %278 = arith.mulf %276, %277 : vector<2x8x8xf32>
    %279 = vector.broadcast %44 : vector<2x1x8xf32> to vector<2x8x8xf32>
    %280 = arith.addf %278, %279 : vector<2x8x8xf32>
    %cst_78 = arith.constant dense<0xFF800000> : vector<2x8xf32>
    %281 = vector.multi_reduction <maximumf>, %280, %cst_78 [2] : vector<2x8x8xf32> to vector<2x8xf32>
    %282 = vector.shape_cast %281 : vector<2x8xf32> to vector<2x8x1xf32>
    %283 = vector.broadcast %282 : vector<2x8x1xf32> to vector<2x8x8xf32>
    %284 = arith.subf %280, %283 : vector<2x8x8xf32>
    %285 = math.exp %284 : vector<2x8x8xf32>
    %cst_79 = arith.constant dense<0.000000e+00> : vector<2x8xf32>
    %286 = vector.multi_reduction <add>, %285, %cst_79 [2] : vector<2x8x8xf32> to vector<2x8xf32>
    %287 = vector.shape_cast %286 : vector<2x8xf32> to vector<2x8x1xf32>
    %288 = vector.broadcast %287 : vector<2x8x1xf32> to vector<2x8x8xf32>
    %289 = arith.divf %285, %288 : vector<2x8x8xf32>
    "tpu.trace_start"() <{level = 10 : i32, message = "bqk,bkd->bqd"}> : () -> ()
    %cst_80 = arith.constant dense<0.000000e+00> : vector<2x8x8xf32>
    %290 = tpu.matmul %289, %275, %cst_80 {dimension_numbers = #tpu.dot_dimension_numbers<[2], [1], [1], [2], [0, 0, 0, 1, 1, 2], [0], [0]>} : vector<2x8x8xf32>, vector<2x8x8xf32>, vector<2x8x8xf32> -> vector<2x8x8xf32>
    "tpu.trace_stop"() : () -> ()
    %291 = vector.extract_strided_slice %232 {offsets = [0, 0, 24], sizes = [2, 8, 8], strides = [1, 1, 1]} : vector<2x8x32xf32> to vector<2x8x8xf32>
    %292 = vector.extract_strided_slice %234 {offsets = [0, 0, 24], sizes = [2, 8, 8], strides = [1, 1, 1]} : vector<2x8x32xf32> to vector<2x8x8xf32>
    %293 = vector.extract_strided_slice %236 {offsets = [0, 0, 24], sizes = [2, 8, 8], strides = [1, 1, 1]} : vector<2x8x32xf32> to vector<2x8x8xf32>
    "tpu.trace_start"() <{level = 10 : i32, message = "bqd,bkd->bqk"}> : () -> ()
    %cst_81 = arith.constant dense<0.000000e+00> : vector<2x8x8xf32>
    %294 = tpu.matmul %291, %292, %cst_81 {dimension_numbers = #tpu.dot_dimension_numbers<[2], [2], [1], [1], [0, 0, 0, 1, 1, 1], [0], [0]>} : vector<2x8x8xf32>, vector<2x8x8xf32>, vector<2x8x8xf32> -> vector<2x8x8xf32>
    "tpu.trace_stop"() : () -> ()
    %cst_82 = arith.constant 0.353553385 : f32
    %295 = vector.broadcast %cst_82 : f32 to vector<2x8x8xf32>
    %296 = arith.mulf %294, %295 : vector<2x8x8xf32>
    %297 = vector.broadcast %44 : vector<2x1x8xf32> to vector<2x8x8xf32>
    %298 = arith.addf %296, %297 : vector<2x8x8xf32>
    %cst_83 = arith.constant dense<0xFF800000> : vector<2x8xf32>
    %299 = vector.multi_reduction <maximumf>, %298, %cst_83 [2] : vector<2x8x8xf32> to vector<2x8xf32>
    %300 = vector.shape_cast %299 : vector<2x8xf32> to vector<2x8x1xf32>
    %301 = vector.broadcast %300 : vector<2x8x1xf32> to vector<2x8x8xf32>
    %302 = arith.subf %298, %301 : vector<2x8x8xf32>
    %303 = math.exp %302 : vector<2x8x8xf32>
    %cst_84 = arith.constant dense<0.000000e+00> : vector<2x8xf32>
    %304 = vector.multi_reduction <add>, %303, %cst_84 [2] : vector<2x8x8xf32> to vector<2x8xf32>
    %305 = vector.shape_cast %304 : vector<2x8xf32> to vector<2x8x1xf32>
    %306 = vector.broadcast %305 : vector<2x8x1xf32> to vector<2x8x8xf32>
    %307 = arith.divf %303, %306 : vector<2x8x8xf32>
    "tpu.trace_start"() <{level = 10 : i32, message = "bqk,bkd->bqd"}> : () -> ()
    %cst_85 = arith.constant dense<0.000000e+00> : vector<2x8x8xf32>
    %308 = tpu.matmul %307, %293, %cst_85 {dimension_numbers = #tpu.dot_dimension_numbers<[2], [1], [1], [2], [0, 0, 0, 1, 1, 2], [0], [0]>} : vector<2x8x8xf32>, vector<2x8x8xf32>, vector<2x8x8xf32> -> vector<2x8x8xf32>
    "tpu.trace_stop"() : () -> ()
    %309 = tpu.concatenate %254, %272, %290, %308 in 2 : vector<2x8x8xf32>, vector<2x8x8xf32>, vector<2x8x8xf32>, vector<2x8x8xf32> -> vector<2x8x32xf32>
    %310 = vector.shape_cast %309 : vector<2x8x32xf32> to vector<16x32xf32>
    %cst_86 = arith.constant dense<0.000000e+00> : vector<16x32xf32>
    %311 = tpu.matmul %310, %217, %cst_86 {dimension_numbers = #tpu.dot_dimension_numbers<[1], [0], [0], [1], [0, 0, 1, 1], [], []>} : vector<16x32xf32>, vector<32x32xf32>, vector<16x32xf32> -> vector<16x32xf32>
    %312 = vector.broadcast %221 : vector<1x32xf32> to vector<16x32xf32>
    %313 = arith.addf %311, %312 : vector<16x32xf32>
    %314 = arith.addf %313, %211 : vector<16x32xf32>
    %cst_87 = arith.constant dense<0.000000e+00> : vector<16xf32>
    %315 = vector.multi_reduction <add>, %314, %cst_87 [1] : vector<16x32xf32> to vector<16xf32>
    %316 = vector.shape_cast %315 : vector<16xf32> to vector<16x1xf32>
    %cst_88 = arith.constant 3.200000e+01 : f32
    %317 = vector.broadcast %cst_88 : f32 to vector<16x1xf32>
    %318 = arith.divf %316, %317 : vector<16x1xf32>
    %319 = vector.broadcast %318 : vector<16x1xf32> to vector<16x32xf32>
    %320 = arith.subf %314, %319 : vector<16x32xf32>
    %321 = arith.mulf %320, %320 : vector<16x32xf32>
    %cst_89 = arith.constant dense<0.000000e+00> : vector<16xf32>
    %322 = vector.multi_reduction <add>, %321, %cst_89 [1] : vector<16x32xf32> to vector<16xf32>
    %323 = vector.shape_cast %322 : vector<16xf32> to vector<16x1xf32>
    %cst_90 = arith.constant 3.200000e+01 : f32
    %324 = vector.broadcast %cst_90 : f32 to vector<16x1xf32>
    %325 = arith.divf %323, %324 : vector<16x1xf32>
    %326 = vector.broadcast %318 : vector<16x1xf32> to vector<16x32xf32>
    %327 = arith.subf %314, %326 : vector<16x32xf32>
    %cst_91 = arith.constant 9.99999996E-13 : f32
    %328 = vector.broadcast %cst_91 : f32 to vector<16x1xf32>
    %329 = arith.addf %325, %328 : vector<16x1xf32>
    %330 = math.rsqrt %329 : vector<16x1xf32>
    %331 = vector.broadcast %330 : vector<16x1xf32> to vector<16x32xf32>
    %332 = arith.mulf %327, %331 : vector<16x32xf32>
    %333 = vector.broadcast %222 : vector<1x32xf32> to vector<16x32xf32>
    %334 = arith.mulf %332, %333 : vector<16x32xf32>
    %335 = vector.broadcast %223 : vector<1x32xf32> to vector<16x32xf32>
    %336 = arith.addf %334, %335 : vector<16x32xf32>
    %cst_92 = arith.constant dense<0.000000e+00> : vector<16x64xf32>
    %337 = tpu.matmul %336, %218, %cst_92 {dimension_numbers = #tpu.dot_dimension_numbers<[1], [0], [0], [1], [0, 0, 1, 1], [], []>} : vector<16x32xf32>, vector<32x64xf32>, vector<16x64xf32> -> vector<16x64xf32>
    %338 = vector.broadcast %224 : vector<1x64xf32> to vector<16x64xf32>
    %339 = arith.addf %337, %338 : vector<16x64xf32>
    %340 = arith.mulf %339, %339 : vector<16x64xf32>
    %341 = arith.mulf %339, %340 : vector<16x64xf32>
    %cst_93 = arith.constant 4.471500e-02 : f32
    %342 = vector.broadcast %cst_93 : f32 to vector<16x64xf32>
    %343 = arith.mulf %342, %341 : vector<16x64xf32>
    %344 = arith.addf %339, %343 : vector<16x64xf32>
    %cst_94 = arith.constant 0.797884583 : f32
    %345 = vector.broadcast %cst_94 : f32 to vector<16x64xf32>
    %346 = arith.mulf %345, %344 : vector<16x64xf32>
    %347 = math.tanh %346 : vector<16x64xf32>
    %cst_95 = arith.constant 1.000000e+00 : f32
    %348 = vector.broadcast %cst_95 : f32 to vector<16x64xf32>
    %349 = arith.addf %348, %347 : vector<16x64xf32>
    %cst_96 = arith.constant 5.000000e-01 : f32
    %350 = vector.broadcast %cst_96 : f32 to vector<16x64xf32>
    %351 = arith.mulf %350, %349 : vector<16x64xf32>
    %352 = arith.mulf %339, %351 : vector<16x64xf32>
    %cst_97 = arith.constant dense<0.000000e+00> : vector<16x32xf32>
    %353 = tpu.matmul %352, %219, %cst_97 {dimension_numbers = #tpu.dot_dimension_numbers<[1], [1], [0], [0], [0, 0, 1, 0], [], []>} : vector<16x64xf32>, vector<32x64xf32>, vector<16x32xf32> -> vector<16x32xf32>
    %354 = vector.broadcast %225 : vector<1x32xf32> to vector<16x32xf32>
    %355 = arith.addf %353, %354 : vector<16x32xf32>
    %356 = arith.addf %355, %336 : vector<16x32xf32>
    %cst_98 = arith.constant dense<0.000000e+00> : vector<16xf32>
    %357 = vector.multi_reduction <add>, %356, %cst_98 [1] : vector<16x32xf32> to vector<16xf32>
    %358 = vector.shape_cast %357 : vector<16xf32> to vector<16x1xf32>
    %cst_99 = arith.constant 3.200000e+01 : f32
    %359 = vector.broadcast %cst_99 : f32 to vector<16x1xf32>
    %360 = arith.divf %358, %359 : vector<16x1xf32>
    %361 = vector.broadcast %360 : vector<16x1xf32> to vector<16x32xf32>
    %362 = arith.subf %356, %361 : vector<16x32xf32>
    %363 = arith.mulf %362, %362 : vector<16x32xf32>
    %cst_100 = arith.constant dense<0.000000e+00> : vector<16xf32>
    %364 = vector.multi_reduction <add>, %363, %cst_100 [1] : vector<16x32xf32> to vector<16xf32>
    %365 = vector.shape_cast %364 : vector<16xf32> to vector<16x1xf32>
    %cst_101 = arith.constant 3.200000e+01 : f32
    %366 = vector.broadcast %cst_101 : f32 to vector<16x1xf32>
    %367 = arith.divf %365, %366 : vector<16x1xf32>
    %368 = vector.broadcast %360 : vector<16x1xf32> to vector<16x32xf32>
    %369 = arith.subf %356, %368 : vector<16x32xf32>
    %cst_102 = arith.constant 9.99999996E-13 : f32
    %370 = vector.broadcast %cst_102 : f32 to vector<16x1xf32>
    %371 = arith.addf %367, %370 : vector<16x1xf32>
    %372 = math.rsqrt %371 : vector<16x1xf32>
    %373 = vector.broadcast %372 : vector<16x1xf32> to vector<16x32xf32>
    %374 = arith.mulf %369, %373 : vector<16x32xf32>
    %375 = vector.broadcast %226 : vector<1x32xf32> to vector<16x32xf32>
    %376 = arith.mulf %374, %375 : vector<16x32xf32>
    %377 = vector.broadcast %227 : vector<1x32xf32> to vector<16x32xf32>
    %378 = arith.addf %376, %377 : vector<16x32xf32>
    %379 = vector.shape_cast %378 : vector<16x32xf32> to vector<2x8x32xf32>
    %380 = vector.extract_strided_slice %379 {offsets = [0, 0, 0], sizes = [2, 1, 32], strides = [1, 1, 1]} : vector<2x8x32xf32> to vector<2x1x32xf32>
    %381 = vector.shape_cast %380 : vector<2x1x32xf32> to vector<2x32xf32>
    %c84 = arith.constant 84 : index
    %c0_103 = arith.constant 0 : index
    %382 = vector.load %arg2[%c84, %c0_103] : memref<118x32xf32, #tpu.memory_space<vmem>>, vector<32x32xf32>
    %c116 = arith.constant 116 : index
    %c0_104 = arith.constant 0 : index
    %383 = vector.load %arg2[%c116, %c0_104] : memref<118x32xf32, #tpu.memory_space<vmem>>, vector<1x32xf32>
    %cst_105 = arith.constant dense<0.000000e+00> : vector<2x32xf32>
    %384 = tpu.matmul %381, %382, %cst_105 {dimension_numbers = #tpu.dot_dimension_numbers<[1], [0], [0], [1], [0, 0, 1, 1], [], []>} : vector<2x32xf32>, vector<32x32xf32>, vector<2x32xf32> -> vector<2x32xf32>
    %385 = vector.broadcast %383 : vector<1x32xf32> to vector<2x32xf32>
    %386 = arith.addf %384, %385 : vector<2x32xf32>
    %387 = math.tanh %386 : vector<2x32xf32>
    %c0_106 = arith.constant 0 : index
    %c0_107 = arith.constant 0 : index
    %388 = vector.load %arg5[%c0_106, %c0_107] : memref<33x1024xf32, #tpu.memory_space<vmem>>, vector<32x1024xf32>
    %c32 = arith.constant 32 : index
    %c0_108 = arith.constant 0 : index
    %389 = vector.load %arg5[%c32, %c0_108] : memref<33x1024xf32, #tpu.memory_space<vmem>>, vector<1x1024xf32>
    %cst_109 = arith.constant dense<0.000000e+00> : vector<2x1024xf32>
    %390 = tpu.matmul %387, %388, %cst_109 {dimension_numbers = #tpu.dot_dimension_numbers<[1], [0], [0], [1], [0, 0, 1, 1], [], []>} : vector<2x32xf32>, vector<32x1024xf32>, vector<2x1024xf32> -> vector<2x1024xf32>
    %391 = vector.broadcast %389 : vector<1x1024xf32> to vector<2x1024xf32>
    %392 = arith.addf %390, %391 : vector<2x1024xf32>
    %cst_110 = arith.constant 0.000000e+00 : f32
    %393 = vector.broadcast %cst_110 : f32 to vector<2x1024xf32>
    %394 = arith.maximumf %392, %393 : vector<2x1024xf32>
    %c0_111 = arith.constant 0 : index
    %c0_112 = arith.constant 0 : index
    %395 = vector.load %arg6[%c0_111, %c0_112] : memref<1025x128xf32, #tpu.memory_space<vmem>>, vector<1024x128xf32>
    %c1024 = arith.constant 1024 : index
    %c0_113 = arith.constant 0 : index
    %396 = vector.load %arg6[%c1024, %c0_113] : memref<1025x128xf32, #tpu.memory_space<vmem>>, vector<1x128xf32>
    %cst_114 = arith.constant dense<0.000000e+00> : vector<2x128xf32>
    %397 = tpu.matmul %394, %395, %cst_114 {dimension_numbers = #tpu.dot_dimension_numbers<[1], [0], [0], [1], [0, 0, 1, 1], [], []>} : vector<2x1024xf32>, vector<1024x128xf32>, vector<2x128xf32> -> vector<2x128xf32>
    %398 = vector.broadcast %396 : vector<1x128xf32> to vector<2x128xf32>
    %399 = arith.addf %397, %398 : vector<2x128xf32>
    %400 = vector.extract_strided_slice %399 {offsets = [0, 0], sizes = [2, 8], strides = [1, 1]} : vector<2x128xf32> to vector<2x8xf32>
    %401 = vector.extract_strided_slice %399 {offsets = [0, 8], sizes = [2, 2], strides = [1, 1]} : vector<2x128xf32> to vector<2x2xf32>
    %c0_115 = arith.constant 0 : index
    %c8 = arith.constant 8 : index
    %402 = vector.load %arg1[%c0_115, %c8] : memref<2x10xi32, #tpu.memory_space<vmem>>, vector<2x1xi32>
    %403 = tpu.iota {dimensions = array<i32: 1>} : vector<2x8xi32>
    %404 = vector.broadcast %402 : vector<2x1xi32> to vector<2x8xi32>
    %405 = arith.cmpi eq, %403, %404 : vector<2x8xi32>
    %406 = arith.extui %405 : vector<2x8xi1> to vector<2x8xi32>
    %407 = arith.sitofp %406 : vector<2x8xi32> to vector<2x8xf32>
    %c117 = arith.constant 117 : index
    %c0_116 = arith.constant 0 : index
    %408 = vector.load %arg2[%c117, %c0_116] : memref<118x32xf32, #tpu.memory_space<vmem>>, vector<1x8xf32>
    %409 = vector.broadcast %408 : vector<1x8xf32> to vector<2x8xf32>
    %410 = arith.mulf %409, %407 : vector<2x8xf32>
    %cst_117 = arith.constant 0.000000e+00 : f32
    %411 = vector.broadcast %cst_117 : f32 to vector<2x8xf32>
    %412 = arith.subf %411, %400 : vector<2x8xf32>
    %cst_118 = arith.constant 0.000000e+00 : f32
    %413 = vector.broadcast %cst_118 : f32 to vector<2x8xf32>
    %414 = arith.maximumf %412, %413 : vector<2x8xf32>
    %415 = math.absf %400 : vector<2x8xf32>
    %cst_119 = arith.constant 0.000000e+00 : f32
    %416 = vector.broadcast %cst_119 : f32 to vector<2x8xf32>
    %417 = arith.subf %416, %415 : vector<2x8xf32>
    %418 = math.exp %417 : vector<2x8xf32>
    %cst_120 = arith.constant 1.000000e+00 : f32
    %419 = vector.broadcast %cst_120 : f32 to vector<2x8xf32>
    %420 = arith.addf %419, %418 : vector<2x8xf32>
    %421 = math.log %420 : vector<2x8xf32>
    %422 = arith.addf %414, %421 : vector<2x8xf32>
    %cst_121 = arith.constant 0.000000e+00 : f32
    %423 = vector.broadcast %cst_121 : f32 to vector<2x8xf32>
    %424 = arith.subf %423, %422 : vector<2x8xf32>
    %425 = arith.mulf %410, %424 : vector<2x8xf32>
    %cst_122 = arith.constant 1.000000e+00 : f32
    %426 = vector.broadcast %cst_122 : f32 to vector<2x8xf32>
    %427 = arith.subf %426, %407 : vector<2x8xf32>
    %cst_123 = arith.constant 0.000000e+00 : f32
    %428 = vector.broadcast %cst_123 : f32 to vector<2x8xf32>
    %429 = arith.subf %428, %400 : vector<2x8xf32>
    %cst_124 = arith.constant 0.000000e+00 : f32
    %430 = vector.broadcast %cst_124 : f32 to vector<2x8xf32>
    %431 = arith.subf %430, %429 : vector<2x8xf32>
    %cst_125 = arith.constant 0.000000e+00 : f32
    %432 = vector.broadcast %cst_125 : f32 to vector<2x8xf32>
    %433 = arith.maximumf %431, %432 : vector<2x8xf32>
    %434 = math.absf %429 : vector<2x8xf32>
    %cst_126 = arith.constant 0.000000e+00 : f32
    %435 = vector.broadcast %cst_126 : f32 to vector<2x8xf32>
    %436 = arith.subf %435, %434 : vector<2x8xf32>
    %437 = math.exp %436 : vector<2x8xf32>
    %cst_127 = arith.constant 1.000000e+00 : f32
    %438 = vector.broadcast %cst_127 : f32 to vector<2x8xf32>
    %439 = arith.addf %438, %437 : vector<2x8xf32>
    %440 = math.log %439 : vector<2x8xf32>
    %441 = arith.addf %433, %440 : vector<2x8xf32>
    %cst_128 = arith.constant 0.000000e+00 : f32
    %442 = vector.broadcast %cst_128 : f32 to vector<2x8xf32>
    %443 = arith.subf %442, %441 : vector<2x8xf32>
    %444 = arith.mulf %427, %443 : vector<2x8xf32>
    %445 = arith.addf %425, %444 : vector<2x8xf32>
    %cst_129 = arith.constant 0.000000e+00 : f32
    %446 = vector.broadcast %cst_129 : f32 to vector<2x8xf32>
    %447 = arith.subf %446, %445 : vector<2x8xf32>
    %448 = vector.shape_cast %447 : vector<2x8xf32> to vector<1x2x8xf32>
    %cst_130 = arith.constant dense<0.000000e+00> : vector<1xf32>
    %449 = vector.multi_reduction <add>, %448, %cst_130 [1, 2] : vector<1x2x8xf32> to vector<1xf32>
    %450 = vector.shape_cast %449 : vector<1xf32> to vector<1x1x1xf32>
    %451 = vector.extract %450[0, 0, 0] : f32 from vector<1x1x1xf32>
    %cst_131 = arith.constant 1.600000e+01 : f32
    %452 = arith.divf %451, %cst_131 : f32
    %cst_132 = arith.constant 0.000000e+00 : f32
    %453 = arith.addf %cst_132, %452 : f32
    %c0_133 = arith.constant 0 : index
    %c9 = arith.constant 9 : index
    %454 = vector.load %arg1[%c0_133, %c9] : memref<2x10xi32, #tpu.memory_space<vmem>>, vector<2x1xi32>
    %455 = tpu.iota {dimensions = array<i32: 1>} : vector<2x2xi32>
    %456 = vector.broadcast %454 : vector<2x1xi32> to vector<2x2xi32>
    %457 = arith.cmpi eq, %455, %456 : vector<2x2xi32>
    %458 = arith.extui %457 : vector<2x2xi1> to vector<2x2xi32>
    %459 = arith.sitofp %458 : vector<2x2xi32> to vector<2x2xf32>
    %c117_134 = arith.constant 117 : index
    %c8_135 = arith.constant 8 : index
    %460 = vector.load %arg2[%c117_134, %c8_135] : memref<118x32xf32, #tpu.memory_space<vmem>>, vector<1x2xf32>
    %cst_136 = arith.constant dense<0xFF800000> : vector<2xf32>
    %461 = vector.multi_reduction <maximumf>, %401, %cst_136 [1] : vector<2x2xf32> to vector<2xf32>
    %462 = vector.shape_cast %461 : vector<2xf32> to vector<2x1xf32>
    %463 = vector.broadcast %462 : vector<2x1xf32> to vector<2x2xf32>
    %464 = arith.subf %401, %463 : vector<2x2xf32>
    %465 = math.exp %464 : vector<2x2xf32>
    %cst_137 = arith.constant dense<0.000000e+00> : vector<2xf32>
    %466 = vector.multi_reduction <add>, %465, %cst_137 [1] : vector<2x2xf32> to vector<2xf32>
    %467 = vector.shape_cast %466 : vector<2xf32> to vector<2x1xf32>
    %468 = math.log %467 : vector<2x1xf32>
    %469 = vector.broadcast %468 : vector<2x1xf32> to vector<2x2xf32>
    %470 = arith.subf %464, %469 : vector<2x2xf32>
    %471 = arith.mulf %459, %470 : vector<2x2xf32>
    %cst_138 = arith.constant dense<0.000000e+00> : vector<2xf32>
    %472 = vector.multi_reduction <add>, %471, %cst_138 [1] : vector<2x2xf32> to vector<2xf32>
    %473 = vector.shape_cast %472 : vector<2xf32> to vector<2x1xf32>
    %cst_139 = arith.constant 0.000000e+00 : f32
    %474 = vector.broadcast %cst_139 : f32 to vector<2x1xf32>
    %475 = arith.subf %474, %473 : vector<2x1xf32>
    %476 = vector.broadcast %460 : vector<1x2xf32> to vector<2x2xf32>
    %477 = arith.mulf %459, %476 : vector<2x2xf32>
    %cst_140 = arith.constant dense<0.000000e+00> : vector<2xf32>
    %478 = vector.multi_reduction <add>, %477, %cst_140 [1] : vector<2x2xf32> to vector<2xf32>
    %479 = vector.shape_cast %478 : vector<2xf32> to vector<2x1xf32>
    %480 = arith.mulf %479, %475 : vector<2x1xf32>
    %481 = vector.shape_cast %480 : vector<2x1xf32> to vector<1x2x1xf32>
    %cst_141 = arith.constant dense<0.000000e+00> : vector<1xf32>
    %482 = vector.multi_reduction <add>, %481, %cst_141 [1, 2] : vector<1x2x1xf32> to vector<1xf32>
    %483 = vector.shape_cast %482 : vector<1xf32> to vector<1x1x1xf32>
    %484 = vector.extract %483[0, 0, 0] : f32 from vector<1x1x1xf32>
    %485 = vector.shape_cast %479 : vector<2x1xf32> to vector<1x2x1xf32>
    %cst_142 = arith.constant dense<0.000000e+00> : vector<1xf32>
    %486 = vector.multi_reduction <add>, %485, %cst_142 [1, 2] : vector<1x2x1xf32> to vector<1xf32>
    %487 = vector.shape_cast %486 : vector<1xf32> to vector<1x1x1xf32>
    %488 = vector.extract %487[0, 0, 0] : f32 from vector<1x1x1xf32>
    %489 = arith.divf %484, %488 : f32
    %490 = arith.addf %453, %489 : f32
    %cst_143 = arith.constant 0.000000e+00 : f32
    %491 = vector.broadcast %cst_143 : f32 to vector<6x128xf32>
    %492 = tpu.concatenate %399, %491 in 0 : vector<2x128xf32>, vector<6x128xf32> -> vector<8x128xf32>
    %493 = tpu.iota {dimensions = array<i32: 0>} : vector<8x128xi32>
    %494 = tpu.iota {dimensions = array<i32: 1>} : vector<8x128xi32>
    %c2_i32 = arith.constant 2 : i32
    %495 = vector.broadcast %c2_i32 : i32 to vector<8x128xi32>
    %496 = arith.cmpi eq, %493, %495 : vector<8x128xi32>
    %c0_i32 = arith.constant 0 : i32
    %497 = vector.broadcast %c0_i32 : i32 to vector<8x128xi32>
    %498 = arith.cmpi eq, %494, %497 : vector<8x128xi32>
    %499 = arith.andi %496, %498 : vector<8x128xi1>
    %500 = arith.extui %499 : vector<8x128xi1> to vector<8x128xi32>
    %501 = arith.sitofp %500 : vector<8x128xi32> to vector<8x128xf32>
    %502 = vector.broadcast %490 : f32 to vector<8x128xf32>
    %503 = arith.mulf %501, %502 : vector<8x128xf32>
    %504 = arith.addf %492, %503 : vector<8x128xf32>
    %c0_144 = arith.constant 0 : index
    %c0_145 = arith.constant 0 : index
    %505 = vector.load %arg7[%c0_144, %c0_145] : memref<8x128xf32, #tpu.memory_space<vmem>>, vector<8x128xf32>
    tpu.vector_store %arg7[%c0_144, %c0_145], %504 {strides = array<i32>} : memref<8x128xf32, #tpu.memory_space<vmem>>, vector<8x128xf32>,
    return
  }
}

</mosaic_0001>

<llo_original>
// kernel: tpu_custom_call.1
$region0: #{tpu_custom_call.1}
  #allocation0 [shape = 'u32[]', space=smem, size = 0x4, offset = 0x4, fixed_abs, tag = 'smem constant byte address 0x4 - core index']
  #allocation1 [shape = 'u32[144,128]{1,0:T(1,128)}', space=vmem, size = 0x12000, scoped, tag = 'internal scratch']
  %s0 = inlined_call_operand.vmem [shape: s32[16,1], index: 0, kind: input, shape index: {}]
  %s1 = inlined_call_operand.vmem [shape: s32[2,10], index: 1, kind: input, shape index: {}]
  %s2 = inlined_call_operand.vmem [shape: f32[118,32], index: 2, kind: input, shape index: {}]
  %s3 = inlined_call_operand.vmem [shape: f32[2,32,256], index: 3, kind: input, shape index: {}]
  %s4 = inlined_call_operand.vmem [shape: f32[2,3,128], index: 4, kind: input, shape index: {}]
  %s5 = inlined_call_operand.hbm [shape: f32[33,1024], index: 5, kind: input, shape index: {}]
  %s6 = inlined_call_operand.hbm [shape: f32[1025,128], index: 6, kind: input, shape index: {}]
  %s7 = inlined_call_operand.hbm [shape: f32[8,128], index: 7, kind: output, shape index: {}]
  %s8 = sld [smem:[#allocation0]]
  $region46: #{tpu_custom_call.1} parent=0
    _
  %s10 = ssub.s32 1, %s8
  %s11 = scalar_select 0, %s10, %s8
  $region1: #{tpu_custom_call.1} parent=0
    #allocation2 [shape = 'u8[163840]{0}', space=vmem, size = 0x28000, scoped, tag = 'input window, operand 5, single buffered']
    #allocation3 [shape = 's32[1]{0}', space=sflag, size = 0x4, scoped, tag = 'scoped memory for tpu_custom_call.1']
    #allocation4 [shape = 's32[1]{0}', space=sflag, size = 0x4, scoped, tag = 'scoped memory for tpu_custom_call.1']
    #allocation5 [shape = 'u8[528384]{0}', space=vmem, size = 0x81000, scoped, tag = 'input window, operand 6, single buffered']
    #allocation6 [shape = 's32[1]{0}', space=sflag, size = 0x4, scoped, tag = 'scoped memory for tpu_custom_call.1']
    #allocation7 [shape = 'u8[4096]{0}', space=vmem, size = 0x1000, scoped, tag = 'output window, operand 0, single buffered']
    %12 = vsyncpa [#allocation3], 0
    %13 = vsyncpa [#allocation6], 0
    %14 = vsyncpa [#allocation4], 0
    // Predicated region
    $region2: #{tpu_custom_call.1} parent=1 // pred_check
      _
    $region3: #{tpu_custom_call.1} parent=1 // pred_check_branch
      %16 = sbr.rel (0) target = $region5
    $region4: #{tpu_custom_call.1} parent=1 // pred_region
      _
    $region5: #{tpu_custom_call.1} parent=1 // pred_fallthru
      _
    // Predicated region
    $region6: #{tpu_custom_call.1} parent=1 // pred_check
      _
    $region7: #{tpu_custom_call.1} parent=1 // pred_check_branch
      %18 = sbr.rel (0) target = $region9
    $region8: #{tpu_custom_call.1} parent=1 // pred_region
      _
    $region9: #{tpu_custom_call.1} parent=1 // pred_fallthru
      _
    // Predicated region
    $region10: #{tpu_custom_call.1} parent=1 // pred_check
      _
    $region11: #{tpu_custom_call.1} parent=1 // pred_check_branch
      %20 = sbr.rel (0) target = $region13
    $region12: #{tpu_custom_call.1} parent=1 // pred_region
      _
    $region13: #{tpu_custom_call.1} parent=1 // pred_fallthru
      _
    // Predicated region
    $region14: #{tpu_custom_call.1} parent=1 // pred_check
      _
    $region15: #{tpu_custom_call.1} parent=1 // pred_check_branch
      %22 = sbr.rel (0) target = $region17
    $region16: #{tpu_custom_call.1} parent=1 // pred_region
      _
    $region17: #{tpu_custom_call.1} parent=1 // pred_fallthru
      _
    // Predicated region
    $region18: #{tpu_custom_call.1} parent=1 // pred_check
      _
    $region19: #{tpu_custom_call.1} parent=1 // pred_check_branch
      %24 = sbr.rel (0) target = $region21
    $region20: #{tpu_custom_call.1} parent=1 // pred_region
      _
    $region21: #{tpu_custom_call.1} parent=1 // pred_fallthru
      _
    // Predicated region
    $region22: #{tpu_custom_call.1} parent=1 // pred_check
      _
    $region23: #{tpu_custom_call.1} parent=1 // pred_check_branch
      %26 = sbr.rel (0) target = $region25
    $region24: #{tpu_custom_call.1} parent=1 // pred_region
      %s28 = ssub.s32 5120, 5120
      %29 = vsyncadd [#allocation3], %s28
      %s30 = sshll.u32 [#allocation2], 4
      %s31 = int_to_ptr.vmem [resolvable:$true] %s30
      %36 = dma.hbm_to_vmem [thread:$0]  %s5, 5120, %s31, [#allocation3], 1024, 1024, 64
    $region25: #{tpu_custom_call.1} parent=1 // pred_fallthru
      _
    // Predicated region
    $region26: #{tpu_custom_call.1} parent=1 // pred_check
      _
    $region27: #{tpu_custom_call.1} parent=1 // pred_check_branch
      %38 = sbr.rel (0) target = $region29
    $region28: #{tpu_custom_call.1} parent=1 // pred_region
      %s40 = ssub.s32 16512, 16512
      %41 = vsyncadd [#allocation6], %s40
      %s42 = sshll.u32 [#allocation5], 4
      %s43 = int_to_ptr.vmem [resolvable:$true] %s42
      %48 = dma.hbm_to_vmem [thread:$0]  %s6, 16512, %s43, [#allocation6], 128, 128, 8
    $region29: #{tpu_custom_call.1} parent=1 // pred_fallthru
      _
    // Predicated region
    $region30: #{tpu_custom_call.1} parent=1 // pred_check
      _
    $region31: #{tpu_custom_call.1} parent=1 // pred_check_branch
      %50 = sbr.rel (0) target = $region33
    $region32: #{tpu_custom_call.1} parent=1 // pred_region
      %51 = dma.done [#allocation3], 5120
    $region33: #{tpu_custom_call.1} parent=1 // pred_fallthru
      _
    // Predicated region
    $region34: #{tpu_custom_call.1} parent=1 // pred_check
      _
    $region35: #{tpu_custom_call.1} parent=1 // pred_check_branch
      %53 = sbr.rel (0) target = $region37
    $region36: #{tpu_custom_call.1} parent=1 // pred_region
      %54 = dma.done [#allocation6], 16512
    $region37: #{tpu_custom_call.1} parent=1 // pred_fallthru
      _
    %v55 = vld [vmem:[%s0] sm:$0xff]
    %v56 = vld [vmem:[%s0 + $0x8] sm:$0xff]
    %v57 = vlaneseq
    %v58 = vand.u32 %v57, 127
    %59 = vset.pattern.permute.xlu0 0
    %60 = vperm.xlu0 %59, %v55
    %v61 = vpop.permute.xlu0 %60
    %62 = vset.pattern.permute.xlu0 0
    %63 = vperm.xlu0 %62, %v56
    %v64 = vpop.permute.xlu0 %63
    %vm65 = vcmp.eq.s32.totalorder %v58, %v61
    %vm66 = vcmp.eq.s32.totalorder %v58, %v64
    %v67 = vsel %vm65, 1, 0
    %v68 = vsel %vm66, 1, 0
    %v69 = vcvt.s32.f32 %v67
    %v70 = vcvt.s32.f32 %v68
    %v71 = vld [vmem:[%s2] sm:$0xff]
    %v72 = vld [vmem:[%s2 + $0x8] sm:$0xff]
    %v73 = vld [vmem:[%s2 + $0x10] sm:$0xff]
    %v74 = vld [vmem:[%s2 + $0x18] sm:$0xff]
    %v75 = vld [vmem:[%s2 + $0x20] sm:$0xff]
    %v76 = vld [vmem:[%s2 + $0x28] sm:$0xff]
    %v77 = vld [vmem:[%s2 + $0x30] sm:$0xff]
    %v78 = vld [vmem:[%s2 + $0x38] sm:$0xff]
    %v79 = vld [vmem:[%s2 + $0x40] sm:$0xff]
    %vm80 = vcmask 523264
    %v82 = vsel %vm80, %v69, 0
    %v85 = vsel %vm80, %v70, 0
    %87 = vmatprep.subr.mxu0 0.0
    %88 = vmatpush1.msra.mxu0 0.0
    %89 = vmatprep.subr.mxu0 0.0
    %90 = vmatpush1.msra.mxu0 0.0
    %91 = vmatprep.subr.mxu0 0.0
    %92 = vmatpush1.msra.mxu0 0.0
    %93 = vmatprep.subr.mxu0 0.0
    %94 = vmatpush1.msra.mxu0 0.0
    %95 = vmatprep.subr.mxu0 0.0
    %96 = vmatpush1.msra.mxu0 0.0
    %97 = vmatprep.subr.mxu0 0.0
    %98 = vmatpush1.msra.mxu0 0.0
    %99 = vmatprep.subr.mxu0 0.0
    %100 = vmatpush1.msra.mxu0 0.0
    %101 = vmatprep.subr.mxu0 0.0
    %102 = vmatpush1.msra.mxu0 0.0
    %103 = vmatprep.subr.mxu0 0.0
    %104 = vmatpush1.msra.mxu0 %v78
    %105 = vmatprep.subr.mxu0 0.0
    %106 = vmatpush1.msra.mxu0 %v77
    %107 = vmatprep.subr.mxu0 0.0
    %108 = vmatpush1.msra.mxu0 %v76
    %109 = vmatprep.subr.mxu0 0.0
    %110 = vmatpush1.msra.mxu0 %v75
    %111 = vmatprep.subr.mxu0 0.0
    %112 = vmatpush1.msra.mxu0 %v74
    %113 = vmatprep.subr.mxu0 0.0
    %114 = vmatpush1.msra.mxu0 %v73
    %115 = vmatprep.subr.mxu0 0.0
    %116 = vmatpush1.msra.mxu0 %v72
    %117 = vmatprep.subr.mxu0 0.0
    %118 = vmatpush1.msra.mxu0 %v71
    %119 = vmatprep.subr.mxu0 0.0
    %120 = vmatpush2.msra.mxu0 0.0
    %121 = vmatprep.subr.mxu0 0.0
    %122 = vmatpush2.msra.mxu0 0.0
    %123 = vmatprep.subr.mxu0 0.0
    %124 = vmatpush2.msra.mxu0 0.0
    %125 = vmatprep.subr.mxu0 0.0
    %126 = vmatpush2.msra.mxu0 0.0
    %127 = vmatprep.subr.mxu0 0.0
    %128 = vmatpush2.msra.mxu0 0.0
    %129 = vmatprep.subr.mxu0 0.0
    %130 = vmatpush2.msra.mxu0 0.0
    %131 = vmatprep.subr.mxu0 0.0
    %132 = vmatpush2.msra.mxu0 0.0
    %133 = vmatprep.subr.mxu0 0.0
    %134 = vmatpush2.msra.mxu0 0.0
    %135 = vmatprep.subr.mxu0 0.0
    %136 = vmatpush2.msra.mxu0 0.0
    %137 = vmatprep.subr.mxu0 0.0
    %138 = vmatpush2.msra.mxu0 0.0
    %139 = vmatprep.subr.mxu0 0.0
    %140 = vmatpush2.msra.mxu0 0.0
    %141 = vmatprep.subr.mxu0 0.0
    %142 = vmatpush2.msra.mxu0 0.0
    %143 = vmatprep.subr.mxu0 0.0
    %144 = vmatpush2.msra.mxu0 0.0
    %145 = vmatprep.subr.mxu0 0.0
    %146 = vmatpush2.msra.mxu0 0.0
    %147 = vmatprep.subr.mxu0 0.0
    %148 = vmatpush2.msra.mxu0 0.0
    %149 = vmatprep.subr.mxu0 0.0
    %150 = vmatpush2.msra.mxu0 0.0
    %151 = vmatprep.mubr.f32.mxu0 0.0
    %152 = vmatmul.mubr.f32.gmra.mxu0 %v82
    %v153 = vpop.f32.mrf.mxu0
    %v154 = vadd.f32 %v79, %v153
    %v155 = vpop.f32.mrf.mxu0
    %156 = vmatprep.mubr.f32.mxu0 0.0
    %157 = vmatmul.mubr.f32.gmra.mxu0 %v85
    %v158 = vpop.f32.mrf.mxu0
    %v159 = vadd.f32 %v79, %v158
    %v160 = vpop.f32.mrf.mxu0
    %161 = vdwg.mxu0
    %v162 = vld [vmem:[%s2 + $0x50] sm:$0x1]
    %v163 = vlaneseq
    %v164 = vshrl.u32 %v163, 7
    %v165 = vsub.s32 0, %v164
    %v166 = vrot.slane %v162, %v165
    %v167 = vadd.f32 %v154, %v166
    %v168 = vadd.f32 %v159, %v166
    %v169 = vld [vmem:[%s2 + $0x52] sm:$0x1]
    %v170 = vld [vmem:[%s2 + $0x53] sm:$0x1]
    %vm171 = vcmask 261120
    %v172 = vsel %vm171, %v167, 0.0
    %173 = vadd.xlane.f32.xlu0 %v172
    %v174 = vpop.xlane.xlu0 %173
    %v175 = vsel %vm171, %v168, 0.0
    %176 = vadd.xlane.f32.xlu0 %v175
    %v177 = vpop.xlane.xlu0 %176
    %v178 = vrcp.pop 32.0
    %v179 = vmul.f32 %v174, %v178
    %v180 = vmul.f32 %v177, %v178
    %v181 = vsub.f32 %v167, %v179
    %v182 = vsub.f32 %v168, %v180
    %v183 = vmul.f32 %v181, %v181
    %v184 = vmul.f32 %v182, %v182
    %v185 = vsel %vm171, %v183, 0.0
    %186 = vadd.xlane.f32.xlu0 %v185
    %v187 = vpop.xlane.xlu0 %186
    %v188 = vsel %vm171, %v184, 0.0
    %189 = vadd.xlane.f32.xlu0 %v188
    %v190 = vpop.xlane.xlu0 %189
    %v191 = vmul.f32 %v187, %v178
    %v192 = vmul.f32 %v190, %v178
    %v193 = vadd.f32 %v191, 1e-12
    %v194 = vadd.f32 %v192, 1e-12
    %v195 = vrsqrt.pop %v193
    %v196 = vrsqrt.pop %v194
    %v197 = vmul.f32 %v181, %v195
    %v198 = vmul.f32 %v182, %v196
    %v199 = vlaneseq
    %v200 = vshrl.u32 %v199, 7
    %v201 = vsub.s32 0, %v200
    %v202 = vrot.slane %v169, %v201
    %v203 = vmul.f32 %v197, %v202
    %v204 = vmul.f32 %v198, %v202
    %v205 = vlaneseq
    %v206 = vshrl.u32 %v205, 7
    %v207 = vsub.s32 0, %v206
    %v208 = vrot.slane %v170, %v207
    %v209 = vadd.f32 %v203, %v208
    %v210 = vadd.f32 %v204, %v208
    %v211 = vld [vmem:[%s1] sm:$0x3]
    %v212 = vcvt.s32.f32 %v211
    %v213 = vsub.f32 1.0, %v212
    %v214 = vmul.f32 %v213, -10000.0
    %v217 = vunpack.c.l.s4 1966171168
    %v218 = vunpack.c.0.s8 %v217
    %v219 = vlaneseq
    %v220 = vshrl.u32 %v219, 7
    %v221 = vsub.s32 %v218, %v220
    %v222 = vrot.slane %v214, %v221
    %v223 = vcombine.high %v222, %v222
    %v225 = vunpack.c.l.s4 1966171168
    %v226 = vunpack.c.0.s8 %v225
    %v227 = vlaneseq
    %v228 = vshrl.u32 %v227, 7
    %v229 = vsub.s32 %v226, %v228
    %v230 = vrot.slane %v222, %v229
    %v232 = vunpack.c.l.s4 1966171168
    %v233 = vunpack.c.0.s8 %v232
    %v234 = vlaneseq
    %v235 = vshrl.u32 %v234, 7
    %v236 = vsub.s32 %v233, %v235
    %v237 = vrot.slane %v223, %v236
    %v238 = vld [vmem:[%s3] sm:$0xff]
    %v239 = vld [vmem:[%s3 + $0x8] sm:$0xff]
    %v240 = vld [vmem:[%s3 + $0x10] sm:$0xff]
    %v241 = vld [vmem:[%s3 + $0x18] sm:$0xff]
    %v242 = vld [vmem:[%s3 + $0x20] sm:$0xff]
    %v243 = vld [vmem:[%s3 + $0x28] sm:$0xff]
    %v244 = vld [vmem:[%s3 + $0x30] sm:$0xff]
    %v245 = vld [vmem:[%s3 + $0x38] sm:$0xff]
    %v246 = vld [vmem:[%s4] sm:$0x7]
    %v247 = vlaneseq
    %v248 = vshrl.u32 %v247, 7
    %v249 = vsub.s32 0, %v248
    %v250 = vrot.slane %v246, %v249
    %v252 = vsel %vm171, %v209, 0
    %v255 = vsel %vm171, %v210, 0
    %257 = vmatprep.subr.mxu0 0.0
    %258 = vmatpush1.msra.mxu0 0.0
    %259 = vmatprep.subr.mxu0 0.0
    %260 = vmatpush1.msra.mxu0 0.0
    %261 = vmatprep.subr.mxu0 0.0
    %262 = vmatpush1.msra.mxu0 0.0
    %263 = vmatprep.subr.mxu0 0.0
    %264 = vmatpush1.msra.mxu0 0.0
    %265 = vmatprep.subr.mxu0 0.0
    %266 = vmatpush1.msra.mxu0 0.0
    %267 = vmatprep.subr.mxu0 0.0
    %268 = vmatpush1.msra.mxu0 0.0
    %269 = vmatprep.subr.mxu0 0.0
    %270 = vmatpush1.msra.mxu0 0.0
    %271 = vmatprep.subr.mxu0 0.0
    %272 = vmatpush1.msra.mxu0 0.0
    %273 = vmatprep.subr.mxu0 0.0
    %274 = vmatpush1.msra.mxu0 0.0
    %275 = vmatprep.subr.mxu0 0.0
    %276 = vmatpush1.msra.mxu0 0.0
    %277 = vmatprep.subr.mxu0 0.0
    %278 = vmatpush1.msra.mxu0 0.0
    %279 = vmatprep.subr.mxu0 0.0
    %280 = vmatpush1.msra.mxu0 0.0
    %281 = vmatprep.subr.mxu0 0.0
    %282 = vmatpush1.msra.mxu0 %v244
    %283 = vmatprep.subr.mxu0 0.0
    %284 = vmatpush1.msra.mxu0 %v242
    %285 = vmatprep.subr.mxu0 0.0
    %286 = vmatpush1.msra.mxu0 %v240
    %287 = vmatprep.subr.mxu0 0.0
    %288 = vmatpush1.msra.mxu0 %v238
    %289 = vmatprep.subr.mxu0 0.0
    %290 = vmatpush2.msra.mxu0 0.0
    %291 = vmatprep.subr.mxu0 0.0
    %292 = vmatpush2.msra.mxu0 0.0
    %293 = vmatprep.subr.mxu0 0.0
    %294 = vmatpush2.msra.mxu0 0.0
    %295 = vmatprep.subr.mxu0 0.0
    %296 = vmatpush2.msra.mxu0 0.0
    %297 = vmatprep.subr.mxu0 0.0
    %298 = vmatpush2.msra.mxu0 0.0
    %299 = vmatprep.subr.mxu0 0.0
    %300 = vmatpush2.msra.mxu0 0.0
    %301 = vmatprep.subr.mxu0 0.0
    %302 = vmatpush2.msra.mxu0 0.0
    %303 = vmatprep.subr.mxu0 0.0
    %304 = vmatpush2.msra.mxu0 0.0
    %305 = vmatprep.subr.mxu0 0.0
    %306 = vmatpush2.msra.mxu0 0.0
    %307 = vmatprep.subr.mxu0 0.0
    %308 = vmatpush2.msra.mxu0 0.0
    %309 = vmatprep.subr.mxu0 0.0
    %310 = vmatpush2.msra.mxu0 0.0
    %311 = vmatprep.subr.mxu0 0.0
    %312 = vmatpush2.msra.mxu0 0.0
    %313 = vmatprep.subr.mxu0 0.0
    %314 = vmatpush2.msra.mxu0 0.0
    %315 = vmatprep.subr.mxu0 0.0
    %316 = vmatpush2.msra.mxu0 0.0
    %317 = vmatprep.subr.mxu0 0.0
    %318 = vmatpush2.msra.mxu0 0.0
    %319 = vmatprep.subr.mxu0 0.0
    %320 = vmatpush2.msra.mxu0 0.0
    %321 = vmatprep.mubr.f32.mxu0 0.0
    %322 = vmatmul.mubr.f32.gmra.mxu0 %v252
    %v323 = vpop.f32.mrf.mxu0
    %v324 = vadd.f32 %v250, %v323
    %v325 = vpop.f32.mrf.mxu0
    %326 = vmatprep.mubr.f32.mxu0 0.0
    %327 = vmatmul.mubr.f32.gmra.mxu0 %v255
    %v328 = vpop.f32.mrf.mxu0
    %v329 = vadd.f32 %v250, %v328
    %v330 = vpop.f32.mrf.mxu0
    %331 = vdwg.mxu0
    %333 = vrot.lane.b32.xlu0 %v324, 96
    %v334 = vpop.permute.xlu0 %333
    %vm335 = vcmask 64512
    %v336 = vsel %vm335, %v324, 0
    %v338 = vsel %vm335, %v334, 0
    %340 = vmatprep.subr.mxu0 0.0
    %341 = vmatpush1.xpose.msra.mxu0 0.0
    %342 = vmatprep.subr.mxu0 0.0
    %343 = vmatpush1.xpose.msra.mxu0 0.0
    %344 = vmatprep.subr.mxu0 0.0
    %345 = vmatpush1.xpose.msra.mxu0 0.0
    %346 = vmatprep.subr.mxu0 0.0
    %347 = vmatpush1.xpose.msra.mxu0 0.0
    %348 = vmatprep.subr.mxu0 0.0
    %349 = vmatpush1.xpose.msra.mxu0 0.0
    %350 = vmatprep.subr.mxu0 0.0
    %351 = vmatpush1.xpose.msra.mxu0 0.0
    %352 = vmatprep.subr.mxu0 0.0
    %353 = vmatpush1.xpose.msra.mxu0 0.0
    %354 = vmatprep.subr.mxu0 0.0
    %355 = vmatpush1.xpose.msra.mxu0 0.0
    %356 = vmatprep.subr.mxu0 0.0
    %357 = vmatpush1.xpose.msra.mxu0 0.0
    %358 = vmatprep.subr.mxu0 0.0
    %359 = vmatpush1.xpose.msra.mxu0 0.0
    %360 = vmatprep.subr.mxu0 0.0
    %361 = vmatpush1.xpose.msra.mxu0 0.0
    %362 = vmatprep.subr.mxu0 0.0
    %363 = vmatpush1.xpose.msra.mxu0 0.0
    %364 = vmatprep.subr.mxu0 0.0
    %365 = vmatpush1.xpose.msra.mxu0 0.0
    %366 = vmatprep.subr.mxu0 0.0
    %367 = vmatpush1.xpose.msra.mxu0 0.0
    %368 = vmatprep.subr.mxu0 0.0
    %369 = vmatpush1.xpose.msra.mxu0 0.0
    %370 = vmatprep.subr.mxu0 0.0
    %371 = vmatpush1.xpose.msra.mxu0 %v338
    %372 = vmatprep.subr.mxu0 0.0
    %373 = vmatpush2.xpose.msra.mxu0 0.0
    %374 = vmatprep.subr.mxu0 0.0
    %375 = vmatpush2.xpose.msra.mxu0 0.0
    %376 = vmatprep.subr.mxu0 0.0
    %377 = vmatpush2.xpose.msra.mxu0 0.0
    %378 = vmatprep.subr.mxu0 0.0
    %379 = vmatpush2.xpose.msra.mxu0 0.0
    %380 = vmatprep.subr.mxu0 0.0
    %381 = vmatpush2.xpose.msra.mxu0 0.0
    %382 = vmatprep.subr.mxu0 0.0
    %383 = vmatpush2.xpose.msra.mxu0 0.0
    %384 = vmatprep.subr.mxu0 0.0
    %385 = vmatpush2.xpose.msra.mxu0 0.0
    %386 = vmatprep.subr.mxu0 0.0
    %387 = vmatpush2.xpose.msra.mxu0 0.0
    %388 = vmatprep.subr.mxu0 0.0
    %389 = vmatpush2.xpose.msra.mxu0 0.0
    %390 = vmatprep.subr.mxu0 0.0
    %391 = vmatpush2.xpose.msra.mxu0 0.0
    %392 = vmatprep.subr.mxu0 0.0
    %393 = vmatpush2.xpose.msra.mxu0 0.0
    %394 = vmatprep.subr.mxu0 0.0
    %395 = vmatpush2.xpose.msra.mxu0 0.0
    %396 = vmatprep.subr.mxu0 0.0
    %397 = vmatpush2.xpose.msra.mxu0 0.0
    %398 = vmatprep.subr.mxu0 0.0
    %399 = vmatpush2.xpose.msra.mxu0 0.0
    %400 = vmatprep.subr.mxu0 0.0
    %401 = vmatpush2.xpose.msra.mxu0 0.0
    %402 = vmatprep.subr.mxu0 0.0
    %403 = vmatpush2.xpose.msra.mxu0 0.0
    %404 = vmatprep.mubr.f32.mxu0 0.0
    %405 = vmatmul.mubr.f32.gmra.mxu0 %v336
    %v406 = vpop.f32.mrf.mxu0
    %v407 = vadd.f32 0.0, %v406
    %v408 = vpop.f32.mrf.mxu0
    %409 = vdwg.mxu0
    %411 = vrot.lane.b32.xlu0 %v329, 96
    %v412 = vpop.permute.xlu0 %411
    %v413 = vsel %vm335, %v329, 0
    %v415 = vsel %vm335, %v412, 0
    %417 = vmatprep.subr.mxu0 0.0
    %418 = vmatpush1.xpose.msra.mxu0 0.0
    %419 = vmatprep.subr.mxu0 0.0
    %420 = vmatpush1.xpose.msra.mxu0 0.0
    %421 = vmatprep.subr.mxu0 0.0
    %422 = vmatpush1.xpose.msra.mxu0 0.0
    %423 = vmatprep.subr.mxu0 0.0
    %424 = vmatpush1.xpose.msra.mxu0 0.0
    %425 = vmatprep.subr.mxu0 0.0
    %426 = vmatpush1.xpose.msra.mxu0 0.0
    %427 = vmatprep.subr.mxu0 0.0
    %428 = vmatpush1.xpose.msra.mxu0 0.0
    %429 = vmatprep.subr.mxu0 0.0
    %430 = vmatpush1.xpose.msra.mxu0 0.0
    %431 = vmatprep.subr.mxu0 0.0
    %432 = vmatpush1.xpose.msra.mxu0 0.0
    %433 = vmatprep.subr.mxu0 0.0
    %434 = vmatpush1.xpose.msra.mxu0 0.0
    %435 = vmatprep.subr.mxu0 0.0
    %436 = vmatpush1.xpose.msra.mxu0 0.0
    %437 = vmatprep.subr.mxu0 0.0
    %438 = vmatpush1.xpose.msra.mxu0 0.0
    %439 = vmatprep.subr.mxu0 0.0
    %440 = vmatpush1.xpose.msra.mxu0 0.0
    %441 = vmatprep.subr.mxu0 0.0
    %442 = vmatpush1.xpose.msra.mxu0 0.0
    %443 = vmatprep.subr.mxu0 0.0
    %444 = vmatpush1.xpose.msra.mxu0 0.0
    %445 = vmatprep.subr.mxu0 0.0
    %446 = vmatpush1.xpose.msra.mxu0 0.0
    %447 = vmatprep.subr.mxu0 0.0
    %448 = vmatpush1.xpose.msra.mxu0 %v415
    %449 = vmatprep.subr.mxu0 0.0
    %450 = vmatpush2.xpose.msra.mxu0 0.0
    %451 = vmatprep.subr.mxu0 0.0
    %452 = vmatpush2.xpose.msra.mxu0 0.0
    %453 = vmatprep.subr.mxu0 0.0
    %454 = vmatpush2.xpose.msra.mxu0 0.0
    %455 = vmatprep.subr.mxu0 0.0
    %456 = vmatpush2.xpose.msra.mxu0 0.0
    %457 = vmatprep.subr.mxu0 0.0
    %458 = vmatpush2.xpose.msra.mxu0 0.0
    %459 = vmatprep.subr.mxu0 0.0
    %460 = vmatpush2.xpose.msra.mxu0 0.0
    %461 = vmatprep.subr.mxu0 0.0
    %462 = vmatpush2.xpose.msra.mxu0 0.0
    %463 = vmatprep.subr.mxu0 0.0
    %464 = vmatpush2.xpose.msra.mxu0 0.0
    %465 = vmatprep.subr.mxu0 0.0
    %466 = vmatpush2.xpose.msra.mxu0 0.0
    %467 = vmatprep.subr.mxu0 0.0
    %468 = vmatpush2.xpose.msra.mxu0 0.0
    %469 = vmatprep.subr.mxu0 0.0
    %470 = vmatpush2.xpose.msra.mxu0 0.0
    %471 = vmatprep.subr.mxu0 0.0
    %472 = vmatpush2.xpose.msra.mxu0 0.0
    %473 = vmatprep.subr.mxu0 0.0
    %474 = vmatpush2.xpose.msra.mxu0 0.0
    %475 = vmatprep.subr.mxu0 0.0
    %476 = vmatpush2.xpose.msra.mxu0 0.0
    %477 = vmatprep.subr.mxu0 0.0
    %478 = vmatpush2.xpose.msra.mxu0 0.0
    %479 = vmatprep.subr.mxu0 0.0
    %480 = vmatpush2.xpose.msra.mxu0 0.0
    %481 = vmatprep.mubr.f32.mxu0 0.0
    %482 = vmatmul.mubr.f32.gmra.mxu0 %v413
    %v483 = vpop.f32.mrf.mxu0
    %v484 = vadd.f32 0.0, %v483
    %v485 = vpop.f32.mrf.mxu0
    %486 = vdwg.mxu0
    %v487 = vmul.f32 %v407, 0.35355338
    %v488 = vmul.f32 %v484, 0.35355338
    %v489 = vlaneseq
    %v490 = vshrl.u32 %v489, 7
    %v491 = vsub.s32 0, %v490
    %v492 = vrot.slane %v230, %v491
    %v493 = vlaneseq
    %v494 = vshrl.u32 %v493, 7
    %v495 = vsub.s32 0, %v494
    %v496 = vrot.slane %v237, %v495
    %v499 = vadd.f32 %v487, %v492
    %v500 = vadd.f32 %v488, %v496
    %v501 = vsel %vm335, %v499, -inf
    %502 = vmax.xlane.f32.xlu0 %v501
    %v503 = vpop.xlane.xlu0 %502
    %v504 = vsel %vm335, %v500, -inf
    %505 = vmax.xlane.f32.xlu0 %v504
    %v506 = vpop.xlane.xlu0 %505
    %v507 = vsub.f32 %v499, %v503
    %v508 = vsub.f32 %v500, %v506
    %v509 = vmul.f32 %v507, 1.442695
    %v510 = vpow.pop %v509
    %v511 = vmul.f32 %v508, 1.442695
    %v512 = vpow.pop %v511
    %v513 = vsel %vm335, %v510, 0.0
    %514 = vadd.xlane.f32.xlu0 %v513
    %v515 = vpop.xlane.xlu0 %514
    %v516 = vsel %vm335, %v512, 0.0
    %517 = vadd.xlane.f32.xlu0 %v516
    %v518 = vpop.xlane.xlu0 %517
    %v519 = vrcp.pop %v515
    %v520 = vmul.f32 %v510, %v519
    %v521 = vrcp.pop %v518
    %v522 = vmul.f32 %v512, %v521
    %523 = vrot.lane.b32.xlu0 %v324, 64
    %v524 = vpop.permute.xlu0 %523
    %v527 = vsel %vm335, %v520, 0
    %529 = vmatprep.subr.mxu0 0.0
    %530 = vmatpush1.msra.mxu0 0.0
    %531 = vmatprep.subr.mxu0 0.0
    %532 = vmatpush1.msra.mxu0 0.0
    %533 = vmatprep.subr.mxu0 0.0
    %534 = vmatpush1.msra.mxu0 0.0
    %535 = vmatprep.subr.mxu0 0.0
    %536 = vmatpush1.msra.mxu0 0.0
    %537 = vmatprep.subr.mxu0 0.0
    %538 = vmatpush1.msra.mxu0 0.0
    %539 = vmatprep.subr.mxu0 0.0
    %540 = vmatpush1.msra.mxu0 0.0
    %541 = vmatprep.subr.mxu0 0.0
    %542 = vmatpush1.msra.mxu0 0.0
    %543 = vmatprep.subr.mxu0 0.0
    %544 = vmatpush1.msra.mxu0 0.0
    %545 = vmatprep.subr.mxu0 0.0
    %546 = vmatpush1.msra.mxu0 0.0
    %547 = vmatprep.subr.mxu0 0.0
    %548 = vmatpush1.msra.mxu0 0.0
    %549 = vmatprep.subr.mxu0 0.0
    %550 = vmatpush1.msra.mxu0 0.0
    %551 = vmatprep.subr.mxu0 0.0
    %552 = vmatpush1.msra.mxu0 0.0
    %553 = vmatprep.subr.mxu0 0.0
    %554 = vmatpush1.msra.mxu0 0.0
    %555 = vmatprep.subr.mxu0 0.0
    %556 = vmatpush1.msra.mxu0 0.0
    %557 = vmatprep.subr.mxu0 0.0
    %558 = vmatpush1.msra.mxu0 0.0
    %559 = vmatprep.subr.mxu0 0.0
    %560 = vmatpush1.msra.mxu0 %v524
    %561 = vmatprep.subr.mxu0 0.0
    %562 = vmatpush2.msra.mxu0 0.0
    %563 = vmatprep.subr.mxu0 0.0
    %564 = vmatpush2.msra.mxu0 0.0
    %565 = vmatprep.subr.mxu0 0.0
    %566 = vmatpush2.msra.mxu0 0.0
    %567 = vmatprep.subr.mxu0 0.0
    %568 = vmatpush2.msra.mxu0 0.0
    %569 = vmatprep.subr.mxu0 0.0
    %570 = vmatpush2.msra.mxu0 0.0
    %571 = vmatprep.subr.mxu0 0.0
    %572 = vmatpush2.msra.mxu0 0.0
    %573 = vmatprep.subr.mxu0 0.0
    %574 = vmatpush2.msra.mxu0 0.0
    %575 = vmatprep.subr.mxu0 0.0
    %576 = vmatpush2.msra.mxu0 0.0
    %577 = vmatprep.subr.mxu0 0.0
    %578 = vmatpush2.msra.mxu0 0.0
    %579 = vmatprep.subr.mxu0 0.0
    %580 = vmatpush2.msra.mxu0 0.0
    %581 = vmatprep.subr.mxu0 0.0
    %582 = vmatpush2.msra.mxu0 0.0
    %583 = vmatprep.subr.mxu0 0.0
    %584 = vmatpush2.msra.mxu0 0.0
    %585 = vmatprep.subr.mxu0 0.0
    %586 = vmatpush2.msra.mxu0 0.0
    %587 = vmatprep.subr.mxu0 0.0
    %588 = vmatpush2.msra.mxu0 0.0
    %589 = vmatprep.subr.mxu0 0.0
    %590 = vmatpush2.msra.mxu0 0.0
    %591 = vmatprep.subr.mxu0 0.0
    %592 = vmatpush2.msra.mxu0 0.0
    %593 = vmatprep.mubr.f32.mxu0 0.0
    %594 = vmatmul.mubr.f32.gmra.mxu0 %v527
    %v595 = vpop.f32.mrf.mxu0
    %v596 = vadd.f32 0.0, %v595
    %v597 = vpop.f32.mrf.mxu0
    %598 = vdwg.mxu0
    %599 = vrot.lane.b32.xlu0 %v329, 64
    %v600 = vpop.permute.xlu0 %599
    %v603 = vsel %vm335, %v522, 0
    %605 = vmatprep.subr.mxu0 0.0
    %606 = vmatpush1.msra.mxu0 0.0
    %607 = vmatprep.subr.mxu0 0.0
    %608 = vmatpush1.msra.mxu0 0.0
    %609 = vmatprep.subr.mxu0 0.0
    %610 = vmatpush1.msra.mxu0 0.0
    %611 = vmatprep.subr.mxu0 0.0
    %612 = vmatpush1.msra.mxu0 0.0
    %613 = vmatprep.subr.mxu0 0.0
    %614 = vmatpush1.msra.mxu0 0.0
    %615 = vmatprep.subr.mxu0 0.0
    %616 = vmatpush1.msra.mxu0 0.0
    %617 = vmatprep.subr.mxu0 0.0
    %618 = vmatpush1.msra.mxu0 0.0
    %619 = vmatprep.subr.mxu0 0.0
    %620 = vmatpush1.msra.mxu0 0.0
    %621 = vmatprep.subr.mxu0 0.0
    %622 = vmatpush1.msra.mxu0 0.0
    %623 = vmatprep.subr.mxu0 0.0
    %624 = vmatpush1.msra.mxu0 0.0
    %625 = vmatprep.subr.mxu0 0.0
    %626 = vmatpush1.msra.mxu0 0.0
    %627 = vmatprep.subr.mxu0 0.0
    %628 = vmatpush1.msra.mxu0 0.0
    %629 = vmatprep.subr.mxu0 0.0
    %630 = vmatpush1.msra.mxu0 0.0
    %631 = vmatprep.subr.mxu0 0.0
    %632 = vmatpush1.msra.mxu0 0.0
    %633 = vmatprep.subr.mxu0 0.0
    %634 = vmatpush1.msra.mxu0 0.0
    %635 = vmatprep.subr.mxu0 0.0
    %636 = vmatpush1.msra.mxu0 %v600
    %637 = vmatprep.subr.mxu0 0.0
    %638 = vmatpush2.msra.mxu0 0.0
    %639 = vmatprep.subr.mxu0 0.0
    %640 = vmatpush2.msra.mxu0 0.0
    %641 = vmatprep.subr.mxu0 0.0
    %642 = vmatpush2.msra.mxu0 0.0
    %643 = vmatprep.subr.mxu0 0.0
    %644 = vmatpush2.msra.mxu0 0.0
    %645 = vmatprep.subr.mxu0 0.0
    %646 = vmatpush2.msra.mxu0 0.0
    %647 = vmatprep.subr.mxu0 0.0
    %648 = vmatpush2.msra.mxu0 0.0
    %649 = vmatprep.subr.mxu0 0.0
    %650 = vmatpush2.msra.mxu0 0.0
    %651 = vmatprep.subr.mxu0 0.0
    %652 = vmatpush2.msra.mxu0 0.0
    %653 = vmatprep.subr.mxu0 0.0
    %654 = vmatpush2.msra.mxu0 0.0
    %655 = vmatprep.subr.mxu0 0.0
    %656 = vmatpush2.msra.mxu0 0.0
    %657 = vmatprep.subr.mxu0 0.0
    %658 = vmatpush2.msra.mxu0 0.0
    %659 = vmatprep.subr.mxu0 0.0
    %660 = vmatpush2.msra.mxu0 0.0
    %661 = vmatprep.subr.mxu0 0.0
    %662 = vmatpush2.msra.mxu0 0.0
    %663 = vmatprep.subr.mxu0 0.0
    %664 = vmatpush2.msra.mxu0 0.0
    %665 = vmatprep.subr.mxu0 0.0
    %666 = vmatpush2.msra.mxu0 0.0
    %667 = vmatprep.subr.mxu0 0.0
    %668 = vmatpush2.msra.mxu0 0.0
    %669 = vmatprep.mubr.f32.mxu0 0.0
    %670 = vmatmul.mubr.f32.gmra.mxu0 %v603
    %v671 = vpop.f32.mrf.mxu0
    %v672 = vadd.f32 0.0, %v671
    %v673 = vpop.f32.mrf.mxu0
    %674 = vdwg.mxu0
    %675 = vrot.lane.b32.xlu0 %v324, 120
    %v676 = vpop.permute.xlu0 %675
    %677 = vrot.lane.b32.xlu0 %v324, 88
    %v678 = vpop.permute.xlu0 %677
    %v679 = vsel %vm335, %v676, 0
    %v681 = vsel %vm335, %v678, 0
    %683 = vmatprep.subr.mxu0 0.0
    %684 = vmatpush1.xpose.msra.mxu0 0.0
    %685 = vmatprep.subr.mxu0 0.0
    %686 = vmatpush1.xpose.msra.mxu0 0.0
    %687 = vmatprep.subr.mxu0 0.0
    %688 = vmatpush1.xpose.msra.mxu0 0.0
    %689 = vmatprep.subr.mxu0 0.0
    %690 = vmatpush1.xpose.msra.mxu0 0.0
    %691 = vmatprep.subr.mxu0 0.0
    %692 = vmatpush1.xpose.msra.mxu0 0.0
    %693 = vmatprep.subr.mxu0 0.0
    %694 = vmatpush1.xpose.msra.mxu0 0.0
    %695 = vmatprep.subr.mxu0 0.0
    %696 = vmatpush1.xpose.msra.mxu0 0.0
    %697 = vmatprep.subr.mxu0 0.0
    %698 = vmatpush1.xpose.msra.mxu0 0.0
    %699 = vmatprep.subr.mxu0 0.0
    %700 = vmatpush1.xpose.msra.mxu0 0.0
    %701 = vmatprep.subr.mxu0 0.0
    %702 = vmatpush1.xpose.msra.mxu0 0.0
    %703 = vmatprep.subr.mxu0 0.0
    %704 = vmatpush1.xpose.msra.mxu0 0.0
    %705 = vmatprep.subr.mxu0 0.0
    %706 = vmatpush1.xpose.msra.mxu0 0.0
    %707 = vmatprep.subr.mxu0 0.0
    %708 = vmatpush1.xpose.msra.mxu0 0.0
    %709 = vmatprep.subr.mxu0 0.0
    %710 = vmatpush1.xpose.msra.mxu0 0.0
    %711 = vmatprep.subr.mxu0 0.0
    %712 = vmatpush1.xpose.msra.mxu0 0.0
    %713 = vmatprep.subr.mxu0 0.0
    %714 = vmatpush1.xpose.msra.mxu0 %v681
    %715 = vmatprep.subr.mxu0 0.0
    %716 = vmatpush2.xpose.msra.mxu0 0.0
    %717 = vmatprep.subr.mxu0 0.0
    %718 = vmatpush2.xpose.msra.mxu0 0.0
    %719 = vmatprep.subr.mxu0 0.0
    %720 = vmatpush2.xpose.msra.mxu0 0.0
    %721 = vmatprep.subr.mxu0 0.0
    %722 = vmatpush2.xpose.msra.mxu0 0.0
    %723 = vmatprep.subr.mxu0 0.0
    %724 = vmatpush2.xpose.msra.mxu0 0.0
    %725 = vmatprep.subr.mxu0 0.0
    %726 = vmatpush2.xpose.msra.mxu0 0.0
    %727 = vmatprep.subr.mxu0 0.0
    %728 = vmatpush2.xpose.msra.mxu0 0.0
    %729 = vmatprep.subr.mxu0 0.0
    %730 = vmatpush2.xpose.msra.mxu0 0.0
    %731 = vmatprep.subr.mxu0 0.0
    %732 = vmatpush2.xpose.msra.mxu0 0.0
    %733 = vmatprep.subr.mxu0 0.0
    %734 = vmatpush2.xpose.msra.mxu0 0.0
    %735 = vmatprep.subr.mxu0 0.0
    %736 = vmatpush2.xpose.msra.mxu0 0.0
    %737 = vmatprep.subr.mxu0 0.0
    %738 = vmatpush2.xpose.msra.mxu0 0.0
    %739 = vmatprep.subr.mxu0 0.0
    %740 = vmatpush2.xpose.msra.mxu0 0.0
    %741 = vmatprep.subr.mxu0 0.0
    %742 = vmatpush2.xpose.msra.mxu0 0.0
    %743 = vmatprep.subr.mxu0 0.0
    %744 = vmatpush2.xpose.msra.mxu0 0.0
    %745 = vmatprep.subr.mxu0 0.0
    %746 = vmatpush2.xpose.msra.mxu0 0.0
    %747 = vmatprep.mubr.f32.mxu0 0.0
    %748 = vmatmul.mubr.f32.gmra.mxu0 %v679
    %v749 = vpop.f32.mrf.mxu0
    %v750 = vadd.f32 0.0, %v749
    %v751 = vpop.f32.mrf.mxu0
    %752 = vdwg.mxu0
    %753 = vrot.lane.b32.xlu0 %v329, 120
    %v754 = vpop.permute.xlu0 %753
    %755 = vrot.lane.b32.xlu0 %v329, 88
    %v756 = vpop.permute.xlu0 %755
    %v757 = vsel %vm335, %v754, 0
    %v759 = vsel %vm335, %v756, 0
    %761 = vmatprep.subr.mxu0 0.0
    %762 = vmatpush1.xpose.msra.mxu0 0.0
    %763 = vmatprep.subr.mxu0 0.0
    %764 = vmatpush1.xpose.msra.mxu0 0.0
    %765 = vmatprep.subr.mxu0 0.0
    %766 = vmatpush1.xpose.msra.mxu0 0.0
    %767 = vmatprep.subr.mxu0 0.0
    %768 = vmatpush1.xpose.msra.mxu0 0.0
    %769 = vmatprep.subr.mxu0 0.0
    %770 = vmatpush1.xpose.msra.mxu0 0.0
    %771 = vmatprep.subr.mxu0 0.0
    %772 = vmatpush1.xpose.msra.mxu0 0.0
    %773 = vmatprep.subr.mxu0 0.0
    %774 = vmatpush1.xpose.msra.mxu0 0.0
    %775 = vmatprep.subr.mxu0 0.0
    %776 = vmatpush1.xpose.msra.mxu0 0.0
    %777 = vmatprep.subr.mxu0 0.0
    %778 = vmatpush1.xpose.msra.mxu0 0.0
    %779 = vmatprep.subr.mxu0 0.0
    %780 = vmatpush1.xpose.msra.mxu0 0.0
    %781 = vmatprep.subr.mxu0 0.0
    %782 = vmatpush1.xpose.msra.mxu0 0.0
    %783 = vmatprep.subr.mxu0 0.0
    %784 = vmatpush1.xpose.msra.mxu0 0.0
    %785 = vmatprep.subr.mxu0 0.0
    %786 = vmatpush1.xpose.msra.mxu0 0.0
    %787 = vmatprep.subr.mxu0 0.0
    %788 = vmatpush1.xpose.msra.mxu0 0.0
    %789 = vmatprep.subr.mxu0 0.0
    %790 = vmatpush1.xpose.msra.mxu0 0.0
    %791 = vmatprep.subr.mxu0 0.0
    %792 = vmatpush1.xpose.msra.mxu0 %v759
    %793 = vmatprep.subr.mxu0 0.0
    %794 = vmatpush2.xpose.msra.mxu0 0.0
    %795 = vmatprep.subr.mxu0 0.0
    %796 = vmatpush2.xpose.msra.mxu0 0.0
    %797 = vmatprep.subr.mxu0 0.0
    %798 = vmatpush2.xpose.msra.mxu0 0.0
    %799 = vmatprep.subr.mxu0 0.0
    %800 = vmatpush2.xpose.msra.mxu0 0.0
    %801 = vmatprep.subr.mxu0 0.0
    %802 = vmatpush2.xpose.msra.mxu0 0.0
    %803 = vmatprep.subr.mxu0 0.0
    %804 = vmatpush2.xpose.msra.mxu0 0.0
    %805 = vmatprep.subr.mxu0 0.0
    %806 = vmatpush2.xpose.msra.mxu0 0.0
    %807 = vmatprep.subr.mxu0 0.0
    %808 = vmatpush2.xpose.msra.mxu0 0.0
    %809 = vmatprep.subr.mxu0 0.0
    %810 = vmatpush2.xpose.msra.mxu0 0.0
    %811 = vmatprep.subr.mxu0 0.0
    %812 = vmatpush2.xpose.msra.mxu0 0.0
    %813 = vmatprep.subr.mxu0 0.0
    %814 = vmatpush2.xpose.msra.mxu0 0.0
    %815 = vmatprep.subr.mxu0 0.0
    %816 = vmatpush2.xpose.msra.mxu0 0.0
    %817 = vmatprep.subr.mxu0 0.0
    %818 = vmatpush2.xpose.msra.mxu0 0.0
    %819 = vmatprep.subr.mxu0 0.0
    %820 = vmatpush2.xpose.msra.mxu0 0.0
    %821 = vmatprep.subr.mxu0 0.0
    %822 = vmatpush2.xpose.msra.mxu0 0.0
    %823 = vmatprep.subr.mxu0 0.0
    %824 = vmatpush2.xpose.msra.mxu0 0.0
    %825 = vmatprep.mubr.f32.mxu0 0.0
    %826 = vmatmul.mubr.f32.gmra.mxu0 %v757
    %v827 = vpop.f32.mrf.mxu0
    %v828 = vadd.f32 0.0, %v827
    %v829 = vpop.f32.mrf.mxu0
    %830 = vdwg.mxu0
    %v831 = vmul.f32 %v750, 0.35355338
    %v832 = vmul.f32 %v828, 0.35355338
    %v833 = vadd.f32 %v831, %v492
    %v834 = vadd.f32 %v832, %v496
    %v835 = vsel %vm335, %v833, -inf
    %836 = vmax.xlane.f32.xlu0 %v835
    %v837 = vpop.xlane.xlu0 %836
    %v838 = vsel %vm335, %v834, -inf
    %839 = vmax.xlane.f32.xlu0 %v838
    %v840 = vpop.xlane.xlu0 %839
    %v841 = vsub.f32 %v833, %v837
    %v842 = vsub.f32 %v834, %v840
    %v843 = vmul.f32 %v841, 1.442695
    %v844 = vpow.pop %v843
    %v845 = vmul.f32 %v842, 1.442695
    %v846 = vpow.pop %v845
    %v847 = vsel %vm335, %v844, 0.0
    %848 = vadd.xlane.f32.xlu0 %v847
    %v849 = vpop.xlane.xlu0 %848
    %v850 = vsel %vm335, %v846, 0.0
    %851 = vadd.xlane.f32.xlu0 %v850
    %v852 = vpop.xlane.xlu0 %851
    %v853 = vrcp.pop %v849
    %v854 = vmul.f32 %v844, %v853
    %v855 = vrcp.pop %v852
    %v856 = vmul.f32 %v846, %v855
    %857 = vrot.lane.b32.xlu0 %v324, 56
    %v858 = vpop.permute.xlu0 %857
    %v861 = vsel %vm335, %v854, 0
    %863 = vmatprep.subr.mxu0 0.0
    %864 = vmatpush1.msra.mxu0 0.0
    %865 = vmatprep.subr.mxu0 0.0
    %866 = vmatpush1.msra.mxu0 0.0
    %867 = vmatprep.subr.mxu0 0.0
    %868 = vmatpush1.msra.mxu0 0.0
    %869 = vmatprep.subr.mxu0 0.0
    %870 = vmatpush1.msra.mxu0 0.0
    %871 = vmatprep.subr.mxu0 0.0
    %872 = vmatpush1.msra.mxu0 0.0
    %873 = vmatprep.subr.mxu0 0.0
    %874 = vmatpush1.msra.mxu0 0.0
    %875 = vmatprep.subr.mxu0 0.0
    %876 = vmatpush1.msra.mxu0 0.0
    %877 = vmatprep.subr.mxu0 0.0
    %878 = vmatpush1.msra.mxu0 0.0
    %879 = vmatprep.subr.mxu0 0.0
    %880 = vmatpush1.msra.mxu0 0.0
    %881 = vmatprep.subr.mxu0 0.0
    %882 = vmatpush1.msra.mxu0 0.0
    %883 = vmatprep.subr.mxu0 0.0
    %884 = vmatpush1.msra.mxu0 0.0
    %885 = vmatprep.subr.mxu0 0.0
    %886 = vmatpush1.msra.mxu0 0.0
    %887 = vmatprep.subr.mxu0 0.0
    %888 = vmatpush1.msra.mxu0 0.0
    %889 = vmatprep.subr.mxu0 0.0
    %890 = vmatpush1.msra.mxu0 0.0
    %891 = vmatprep.subr.mxu0 0.0
    %892 = vmatpush1.msra.mxu0 0.0
    %893 = vmatprep.subr.mxu0 0.0
    %894 = vmatpush1.msra.mxu0 %v858
    %895 = vmatprep.subr.mxu0 0.0
    %896 = vmatpush2.msra.mxu0 0.0
    %897 = vmatprep.subr.mxu0 0.0
    %898 = vmatpush2.msra.mxu0 0.0
    %899 = vmatprep.subr.mxu0 0.0
    %900 = vmatpush2.msra.mxu0 0.0
    %901 = vmatprep.subr.mxu0 0.0
    %902 = vmatpush2.msra.mxu0 0.0
    %903 = vmatprep.subr.mxu0 0.0
    %904 = vmatpush2.msra.mxu0 0.0
    %905 = vmatprep.subr.mxu0 0.0
    %906 = vmatpush2.msra.mxu0 0.0
    %907 = vmatprep.subr.mxu0 0.0
    %908 = vmatpush2.msra.mxu0 0.0
    %909 = vmatprep.subr.mxu0 0.0
    %910 = vmatpush2.msra.mxu0 0.0
    %911 = vmatprep.subr.mxu0 0.0
    %912 = vmatpush2.msra.mxu0 0.0
    %913 = vmatprep.subr.mxu0 0.0
    %914 = vmatpush2.msra.mxu0 0.0
    %915 = vmatprep.subr.mxu0 0.0
    %916 = vmatpush2.msra.mxu0 0.0
    %917 = vmatprep.subr.mxu0 0.0
    %918 = vmatpush2.msra.mxu0 0.0
    %919 = vmatprep.subr.mxu0 0.0
    %920 = vmatpush2.msra.mxu0 0.0
    %921 = vmatprep.subr.mxu0 0.0
    %922 = vmatpush2.msra.mxu0 0.0
    %923 = vmatprep.subr.mxu0 0.0
    %924 = vmatpush2.msra.mxu0 0.0
    %925 = vmatprep.subr.mxu0 0.0
    %926 = vmatpush2.msra.mxu0 0.0
    %927 = vmatprep.mubr.f32.mxu0 0.0
    %928 = vmatmul.mubr.f32.gmra.mxu0 %v861
    %v929 = vpop.f32.mrf.mxu0
    %v930 = vadd.f32 0.0, %v929
    %v931 = vpop.f32.mrf.mxu0
    %932 = vdwg.mxu0
    %933 = vrot.lane.b32.xlu0 %v329, 56
    %v934 = vpop.permute.xlu0 %933
    %v937 = vsel %vm335, %v856, 0
    %939 = vmatprep.subr.mxu0 0.0
    %940 = vmatpush1.msra.mxu0 0.0
    %941 = vmatprep.subr.mxu0 0.0
    %942 = vmatpush1.msra.mxu0 0.0
    %943 = vmatprep.subr.mxu0 0.0
    %944 = vmatpush1.msra.mxu0 0.0
    %945 = vmatprep.subr.mxu0 0.0
    %946 = vmatpush1.msra.mxu0 0.0
    %947 = vmatprep.subr.mxu0 0.0
    %948 = vmatpush1.msra.mxu0 0.0
    %949 = vmatprep.subr.mxu0 0.0
    %950 = vmatpush1.msra.mxu0 0.0
    %951 = vmatprep.subr.mxu0 0.0
    %952 = vmatpush1.msra.mxu0 0.0
    %953 = vmatprep.subr.mxu0 0.0
    %954 = vmatpush1.msra.mxu0 0.0
    %955 = vmatprep.subr.mxu0 0.0
    %956 = vmatpush1.msra.mxu0 0.0
    %957 = vmatprep.subr.mxu0 0.0
    %958 = vmatpush1.msra.mxu0 0.0
    %959 = vmatprep.subr.mxu0 0.0
    %960 = vmatpush1.msra.mxu0 0.0
    %961 = vmatprep.subr.mxu0 0.0
    %962 = vmatpush1.msra.mxu0 0.0
    %963 = vmatprep.subr.mxu0 0.0
    %964 = vmatpush1.msra.mxu0 0.0
    %965 = vmatprep.subr.mxu0 0.0
    %966 = vmatpush1.msra.mxu0 0.0
    %967 = vmatprep.subr.mxu0 0.0
    %968 = vmatpush1.msra.mxu0 0.0
    %969 = vmatprep.subr.mxu0 0.0
    %970 = vmatpush1.msra.mxu0 %v934
    %971 = vmatprep.subr.mxu0 0.0
    %972 = vmatpush2.msra.mxu0 0.0
    %973 = vmatprep.subr.mxu0 0.0
    %974 = vmatpush2.msra.mxu0 0.0
    %975 = vmatprep.subr.mxu0 0.0
    %976 = vmatpush2.msra.mxu0 0.0
    %977 = vmatprep.subr.mxu0 0.0
    %978 = vmatpush2.msra.mxu0 0.0
    %979 = vmatprep.subr.mxu0 0.0
    %980 = vmatpush2.msra.mxu0 0.0
    %981 = vmatprep.subr.mxu0 0.0
    %982 = vmatpush2.msra.mxu0 0.0
    %983 = vmatprep.subr.mxu0 0.0
    %984 = vmatpush2.msra.mxu0 0.0
    %985 = vmatprep.subr.mxu0 0.0
    %986 = vmatpush2.msra.mxu0 0.0
    %987 = vmatprep.subr.mxu0 0.0
    %988 = vmatpush2.msra.mxu0 0.0
    %989 = vmatprep.subr.mxu0 0.0
    %990 = vmatpush2.msra.mxu0 0.0
    %991 = vmatprep.subr.mxu0 0.0
    %992 = vmatpush2.msra.mxu0 0.0
    %993 = vmatprep.subr.mxu0 0.0
    %994 = vmatpush2.msra.mxu0 0.0
    %995 = vmatprep.subr.mxu0 0.0
    %996 = vmatpush2.msra.mxu0 0.0
    %997 = vmatprep.subr.mxu0 0.0
    %998 = vmatpush2.msra.mxu0 0.0
    %999 = vmatprep.subr.mxu0 0.0
    %1000 = vmatpush2.msra.mxu0 0.0
    %1001 = vmatprep.subr.mxu0 0.0
    %1002 = vmatpush2.msra.mxu0 0.0
    %1003 = vmatprep.mubr.f32.mxu0 0.0
    %1004 = vmatmul.mubr.f32.gmra.mxu0 %v937
    %v1005 = vpop.f32.mrf.mxu0
    %v1006 = vadd.f32 0.0, %v1005
    %v1007 = vpop.f32.mrf.mxu0
    %1008 = vdwg.mxu0
    %1009 = vrot.lane.b32.xlu0 %v324, 112
    %v1010 = vpop.permute.xlu0 %1009
    %1011 = vrot.lane.b32.xlu0 %v324, 80
    %v1012 = vpop.permute.xlu0 %1011
    %v1013 = vsel %vm335, %v1010, 0
    %v1015 = vsel %vm335, %v1012, 0
    %1017 = vmatprep.subr.mxu0 0.0
    %1018 = vmatpush1.xpose.msra.mxu0 0.0
    %1019 = vmatprep.subr.mxu0 0.0
    %1020 = vmatpush1.xpose.msra.mxu0 0.0
    %1021 = vmatprep.subr.mxu0 0.0
    %1022 = vmatpush1.xpose.msra.mxu0 0.0
    %1023 = vmatprep.subr.mxu0 0.0
    %1024 = vmatpush1.xpose.msra.mxu0 0.0
    %1025 = vmatprep.subr.mxu0 0.0
    %1026 = vmatpush1.xpose.msra.mxu0 0.0
    %1027 = vmatprep.subr.mxu0 0.0
    %1028 = vmatpush1.xpose.msra.mxu0 0.0
    %1029 = vmatprep.subr.mxu0 0.0
    %1030 = vmatpush1.xpose.msra.mxu0 0.0
    %1031 = vmatprep.subr.mxu0 0.0
    %1032 = vmatpush1.xpose.msra.mxu0 0.0
    %1033 = vmatprep.subr.mxu0 0.0
    %1034 = vmatpush1.xpose.msra.mxu0 0.0
    %1035 = vmatprep.subr.mxu0 0.0
    %1036 = vmatpush1.xpose.msra.mxu0 0.0
    %1037 = vmatprep.subr.mxu0 0.0
    %1038 = vmatpush1.xpose.msra.mxu0 0.0
    %1039 = vmatprep.subr.mxu0 0.0
    %1040 = vmatpush1.xpose.msra.mxu0 0.0
    %1041 = vmatprep.subr.mxu0 0.0
    %1042 = vmatpush1.xpose.msra.mxu0 0.0
    %1043 = vmatprep.subr.mxu0 0.0
    %1044 = vmatpush1.xpose.msra.mxu0 0.0
    %1045 = vmatprep.subr.mxu0 0.0
    %1046 = vmatpush1.xpose.msra.mxu0 0.0
    %1047 = vmatprep.subr.mxu0 0.0
    %1048 = vmatpush1.xpose.msra.mxu0 %v1015
    %1049 = vmatprep.subr.mxu0 0.0
    %1050 = vmatpush2.xpose.msra.mxu0 0.0
    %1051 = vmatprep.subr.mxu0 0.0
    %1052 = vmatpush2.xpose.msra.mxu0 0.0
    %1053 = vmatprep.subr.mxu0 0.0
    %1054 = vmatpush2.xpose.msra.mxu0 0.0
    %1055 = vmatprep.subr.mxu0 0.0
    %1056 = vmatpush2.xpose.msra.mxu0 0.0
    %1057 = vmatprep.subr.mxu0 0.0
    %1058 = vmatpush2.xpose.msra.mxu0 0.0
    %1059 = vmatprep.subr.mxu0 0.0
    %1060 = vmatpush2.xpose.msra.mxu0 0.0
    %1061 = vmatprep.subr.mxu0 0.0
    %1062 = vmatpush2.xpose.msra.mxu0 0.0
    %1063 = vmatprep.subr.mxu0 0.0
    %1064 = vmatpush2.xpose.msra.mxu0 0.0
    %1065 = vmatprep.subr.mxu0 0.0
    %1066 = vmatpush2.xpose.msra.mxu0 0.0
    %1067 = vmatprep.subr.mxu0 0.0
    %1068 = vmatpush2.xpose.msra.mxu0 0.0
    %1069 = vmatprep.subr.mxu0 0.0
    %1070 = vmatpush2.xpose.msra.mxu0 0.0
    %1071 = vmatprep.subr.mxu0 0.0
    %1072 = vmatpush2.xpose.msra.mxu0 0.0
    %1073 = vmatprep.subr.mxu0 0.0
    %1074 = vmatpush2.xpose.msra.mxu0 0.0
    %1075 = vmatprep.subr.mxu0 0.0
    %1076 = vmatpush2.xpose.msra.mxu0 0.0
    %1077 = vmatprep.subr.mxu0 0.0
    %1078 = vmatpush2.xpose.msra.mxu0 0.0
    %1079 = vmatprep.subr.mxu0 0.0
    %1080 = vmatpush2.xpose.msra.mxu0 0.0
    %1081 = vmatprep.mubr.f32.mxu0 0.0
    %1082 = vmatmul.mubr.f32.gmra.mxu0 %v1013
    %v1083 = vpop.f32.mrf.mxu0
    %v1084 = vadd.f32 0.0, %v1083
    %v1085 = vpop.f32.mrf.mxu0
    %1086 = vdwg.mxu0
    %1087 = vrot.lane.b32.xlu0 %v329, 112
    %v1088 = vpop.permute.xlu0 %1087
    %1089 = vrot.lane.b32.xlu0 %v329, 80
    %v1090 = vpop.permute.xlu0 %1089
    %v1091 = vsel %vm335, %v1088, 0
    %v1093 = vsel %vm335, %v1090, 0
    %1095 = vmatprep.subr.mxu0 0.0
    %1096 = vmatpush1.xpose.msra.mxu0 0.0
    %1097 = vmatprep.subr.mxu0 0.0
    %1098 = vmatpush1.xpose.msra.mxu0 0.0
    %1099 = vmatprep.subr.mxu0 0.0
    %1100 = vmatpush1.xpose.msra.mxu0 0.0
    %1101 = vmatprep.subr.mxu0 0.0
    %1102 = vmatpush1.xpose.msra.mxu0 0.0
    %1103 = vmatprep.subr.mxu0 0.0
    %1104 = vmatpush1.xpose.msra.mxu0 0.0
    %1105 = vmatprep.subr.mxu0 0.0
    %1106 = vmatpush1.xpose.msra.mxu0 0.0
    %1107 = vmatprep.subr.mxu0 0.0
    %1108 = vmatpush1.xpose.msra.mxu0 0.0
    %1109 = vmatprep.subr.mxu0 0.0
    %1110 = vmatpush1.xpose.msra.mxu0 0.0
    %1111 = vmatprep.subr.mxu0 0.0
    %1112 = vmatpush1.xpose.msra.mxu0 0.0
    %1113 = vmatprep.subr.mxu0 0.0
    %1114 = vmatpush1.xpose.msra.mxu0 0.0
    %1115 = vmatprep.subr.mxu0 0.0
    %1116 = vmatpush1.xpose.msra.mxu0 0.0
    %1117 = vmatprep.subr.mxu0 0.0
    %1118 = vmatpush1.xpose.msra.mxu0 0.0
    %1119 = vmatprep.subr.mxu0 0.0
    %1120 = vmatpush1.xpose.msra.mxu0 0.0
    %1121 = vmatprep.subr.mxu0 0.0
    %1122 = vmatpush1.xpose.msra.mxu0 0.0
    %1123 = vmatprep.subr.mxu0 0.0
    %1124 = vmatpush1.xpose.msra.mxu0 0.0
    %1125 = vmatprep.subr.mxu0 0.0
    %1126 = vmatpush1.xpose.msra.mxu0 %v1093
    %1127 = vmatprep.subr.mxu0 0.0
    %1128 = vmatpush2.xpose.msra.mxu0 0.0
    %1129 = vmatprep.subr.mxu0 0.0
    %1130 = vmatpush2.xpose.msra.mxu0 0.0
    %1131 = vmatprep.subr.mxu0 0.0
    %1132 = vmatpush2.xpose.msra.mxu0 0.0
    %1133 = vmatprep.subr.mxu0 0.0
    %1134 = vmatpush2.xpose.msra.mxu0 0.0
    %1135 = vmatprep.subr.mxu0 0.0
    %1136 = vmatpush2.xpose.msra.mxu0 0.0
    %1137 = vmatprep.subr.mxu0 0.0
    %1138 = vmatpush2.xpose.msra.mxu0 0.0
    %1139 = vmatprep.subr.mxu0 0.0
    %1140 = vmatpush2.xpose.msra.mxu0 0.0
    %1141 = vmatprep.subr.mxu0 0.0
    %1142 = vmatpush2.xpose.msra.mxu0 0.0
    %1143 = vmatprep.subr.mxu0 0.0
    %1144 = vmatpush2.xpose.msra.mxu0 0.0
    %1145 = vmatprep.subr.mxu0 0.0
    %1146 = vmatpush2.xpose.msra.mxu0 0.0
    %1147 = vmatprep.subr.mxu0 0.0
    %1148 = vmatpush2.xpose.msra.mxu0 0.0
    %1149 = vmatprep.subr.mxu0 0.0
    %1150 = vmatpush2.xpose.msra.mxu0 0.0
    %1151 = vmatprep.subr.mxu0 0.0
    %1152 = vmatpush2.xpose.msra.mxu0 0.0
    %1153 = vmatprep.subr.mxu0 0.0
    %1154 = vmatpush2.xpose.msra.mxu0 0.0
    %1155 = vmatprep.subr.mxu0 0.0
    %1156 = vmatpush2.xpose.msra.mxu0 0.0
    %1157 = vmatprep.subr.mxu0 0.0
    %1158 = vmatpush2.xpose.msra.mxu0 0.0
    %1159 = vmatprep.mubr.f32.mxu0 0.0
    %1160 = vmatmul.mubr.f32.gmra.mxu0 %v1091
    %v1161 = vpop.f32.mrf.mxu0
    %v1162 = vadd.f32 0.0, %v1161
    %v1163 = vpop.f32.mrf.mxu0
    %1164 = vdwg.mxu0
    %v1165 = vmul.f32 %v1084, 0.35355338
    %v1166 = vmul.f32 %v1162, 0.35355338
    %v1167 = vadd.f32 %v1165, %v492
    %v1168 = vadd.f32 %v1166, %v496
    %v1169 = vsel %vm335, %v1167, -inf
    %1170 = vmax.xlane.f32.xlu0 %v1169
    %v1171 = vpop.xlane.xlu0 %1170
    %v1172 = vsel %vm335, %v1168, -inf
    %1173 = vmax.xlane.f32.xlu0 %v1172
    %v1174 = vpop.xlane.xlu0 %1173
    %v1175 = vsub.f32 %v1167, %v1171
    %v1176 = vsub.f32 %v1168, %v1174
    %v1177 = vmul.f32 %v1175, 1.442695
    %v1178 = vpow.pop %v1177
    %v1179 = vmul.f32 %v1176, 1.442695
    %v1180 = vpow.pop %v1179
    %v1181 = vsel %vm335, %v1178, 0.0
    %1182 = vadd.xlane.f32.xlu0 %v1181
    %v1183 = vpop.xlane.xlu0 %1182
    %v1184 = vsel %vm335, %v1180, 0.0
    %1185 = vadd.xlane.f32.xlu0 %v1184
    %v1186 = vpop.xlane.xlu0 %1185
    %v1187 = vrcp.pop %v1183
    %v1188 = vmul.f32 %v1178, %v1187
    %v1189 = vrcp.pop %v1186
    %v1190 = vmul.f32 %v1180, %v1189
    %1191 = vrot.lane.b32.xlu0 %v324, 48
    %v1192 = vpop.permute.xlu0 %1191
    %v1195 = vsel %vm335, %v1188, 0
    %1197 = vmatprep.subr.mxu0 0.0
    %1198 = vmatpush1.msra.mxu0 0.0
    %1199 = vmatprep.subr.mxu0 0.0
    %1200 = vmatpush1.msra.mxu0 0.0
    %1201 = vmatprep.subr.mxu0 0.0
    %1202 = vmatpush1.msra.mxu0 0.0
    %1203 = vmatprep.subr.mxu0 0.0
    %1204 = vmatpush1.msra.mxu0 0.0
    %1205 = vmatprep.subr.mxu0 0.0
    %1206 = vmatpush1.msra.mxu0 0.0
    %1207 = vmatprep.subr.mxu0 0.0
    %1208 = vmatpush1.msra.mxu0 0.0
    %1209 = vmatprep.subr.mxu0 0.0
    %1210 = vmatpush1.msra.mxu0 0.0
    %1211 = vmatprep.subr.mxu0 0.0
    %1212 = vmatpush1.msra.mxu0 0.0
    %1213 = vmatprep.subr.mxu0 0.0
    %1214 = vmatpush1.msra.mxu0 0.0
    %1215 = vmatprep.subr.mxu0 0.0
    %1216 = vmatpush1.msra.mxu0 0.0
    %1217 = vmatprep.subr.mxu0 0.0
    %1218 = vmatpush1.msra.mxu0 0.0
    %1219 = vmatprep.subr.mxu0 0.0
    %1220 = vmatpush1.msra.mxu0 0.0
    %1221 = vmatprep.subr.mxu0 0.0
    %1222 = vmatpush1.msra.mxu0 0.0
    %1223 = vmatprep.subr.mxu0 0.0
    %1224 = vmatpush1.msra.mxu0 0.0
    %1225 = vmatprep.subr.mxu0 0.0
    %1226 = vmatpush1.msra.mxu0 0.0
    %1227 = vmatprep.subr.mxu0 0.0
    %1228 = vmatpush1.msra.mxu0 %v1192
    %1229 = vmatprep.subr.mxu0 0.0
    %1230 = vmatpush2.msra.mxu0 0.0
    %1231 = vmatprep.subr.mxu0 0.0
    %1232 = vmatpush2.msra.mxu0 0.0
    %1233 = vmatprep.subr.mxu0 0.0
    %1234 = vmatpush2.msra.mxu0 0.0
    %1235 = vmatprep.subr.mxu0 0.0
    %1236 = vmatpush2.msra.mxu0 0.0
    %1237 = vmatprep.subr.mxu0 0.0
    %1238 = vmatpush2.msra.mxu0 0.0
    %1239 = vmatprep.subr.mxu0 0.0
    %1240 = vmatpush2.msra.mxu0 0.0
    %1241 = vmatprep.subr.mxu0 0.0
    %1242 = vmatpush2.msra.mxu0 0.0
    %1243 = vmatprep.subr.mxu0 0.0
    %1244 = vmatpush2.msra.mxu0 0.0
    %1245 = vmatprep.subr.mxu0 0.0
    %1246 = vmatpush2.msra.mxu0 0.0
    %1247 = vmatprep.subr.mxu0 0.0
    %1248 = vmatpush2.msra.mxu0 0.0
    %1249 = vmatprep.subr.mxu0 0.0
    %1250 = vmatpush2.msra.mxu0 0.0
    %1251 = vmatprep.subr.mxu0 0.0
    %1252 = vmatpush2.msra.mxu0 0.0
    %1253 = vmatprep.subr.mxu0 0.0
    %1254 = vmatpush2.msra.mxu0 0.0
    %1255 = vmatprep.subr.mxu0 0.0
    %1256 = vmatpush2.msra.mxu0 0.0
    %1257 = vmatprep.subr.mxu0 0.0
    %1258 = vmatpush2.msra.mxu0 0.0
    %1259 = vmatprep.subr.mxu0 0.0
    %1260 = vmatpush2.msra.mxu0 0.0
    %1261 = vmatprep.mubr.f32.mxu0 0.0
    %1262 = vmatmul.mubr.f32.gmra.mxu0 %v1195
    %v1263 = vpop.f32.mrf.mxu0
    %v1264 = vadd.f32 0.0, %v1263
    %v1265 = vpop.f32.mrf.mxu0
    %1266 = vdwg.mxu0
    %1267 = vrot.lane.b32.xlu0 %v329, 48
    %v1268 = vpop.permute.xlu0 %1267
    %v1271 = vsel %vm335, %v1190, 0
    %1273 = vmatprep.subr.mxu0 0.0
    %1274 = vmatpush1.msra.mxu0 0.0
    %1275 = vmatprep.subr.mxu0 0.0
    %1276 = vmatpush1.msra.mxu0 0.0
    %1277 = vmatprep.subr.mxu0 0.0
    %1278 = vmatpush1.msra.mxu0 0.0
    %1279 = vmatprep.subr.mxu0 0.0
    %1280 = vmatpush1.msra.mxu0 0.0
    %1281 = vmatprep.subr.mxu0 0.0
    %1282 = vmatpush1.msra.mxu0 0.0
    %1283 = vmatprep.subr.mxu0 0.0
    %1284 = vmatpush1.msra.mxu0 0.0
    %1285 = vmatprep.subr.mxu0 0.0
    %1286 = vmatpush1.msra.mxu0 0.0
    %1287 = vmatprep.subr.mxu0 0.0
    %1288 = vmatpush1.msra.mxu0 0.0
    %1289 = vmatprep.subr.mxu0 0.0
    %1290 = vmatpush1.msra.mxu0 0.0
    %1291 = vmatprep.subr.mxu0 0.0
    %1292 = vmatpush1.msra.mxu0 0.0
    %1293 = vmatprep.subr.mxu0 0.0
    %1294 = vmatpush1.msra.mxu0 0.0
    %1295 = vmatprep.subr.mxu0 0.0
    %1296 = vmatpush1.msra.mxu0 0.0
    %1297 = vmatprep.subr.mxu0 0.0
    %1298 = vmatpush1.msra.mxu0 0.0
    %1299 = vmatprep.subr.mxu0 0.0
    %1300 = vmatpush1.msra.mxu0 0.0
    %1301 = vmatprep.subr.mxu0 0.0
    %1302 = vmatpush1.msra.mxu0 0.0
    %1303 = vmatprep.subr.mxu0 0.0
    %1304 = vmatpush1.msra.mxu0 %v1268
    %1305 = vmatprep.subr.mxu0 0.0
    %1306 = vmatpush2.msra.mxu0 0.0
    %1307 = vmatprep.subr.mxu0 0.0
    %1308 = vmatpush2.msra.mxu0 0.0
    %1309 = vmatprep.subr.mxu0 0.0
    %1310 = vmatpush2.msra.mxu0 0.0
    %1311 = vmatprep.subr.mxu0 0.0
    %1312 = vmatpush2.msra.mxu0 0.0
    %1313 = vmatprep.subr.mxu0 0.0
    %1314 = vmatpush2.msra.mxu0 0.0
    %1315 = vmatprep.subr.mxu0 0.0
    %1316 = vmatpush2.msra.mxu0 0.0
    %1317 = vmatprep.subr.mxu0 0.0
    %1318 = vmatpush2.msra.mxu0 0.0
    %1319 = vmatprep.subr.mxu0 0.0
    %1320 = vmatpush2.msra.mxu0 0.0
    %1321 = vmatprep.subr.mxu0 0.0
    %1322 = vmatpush2.msra.mxu0 0.0
    %1323 = vmatprep.subr.mxu0 0.0
    %1324 = vmatpush2.msra.mxu0 0.0
    %1325 = vmatprep.subr.mxu0 0.0
    %1326 = vmatpush2.msra.mxu0 0.0
    %1327 = vmatprep.subr.mxu0 0.0
    %1328 = vmatpush2.msra.mxu0 0.0
    %1329 = vmatprep.subr.mxu0 0.0
    %1330 = vmatpush2.msra.mxu0 0.0
    %1331 = vmatprep.subr.mxu0 0.0
    %1332 = vmatpush2.msra.mxu0 0.0
    %1333 = vmatprep.subr.mxu0 0.0
    %1334 = vmatpush2.msra.mxu0 0.0
    %1335 = vmatprep.subr.mxu0 0.0
    %1336 = vmatpush2.msra.mxu0 0.0
    %1337 = vmatprep.mubr.f32.mxu0 0.0
    %1338 = vmatmul.mubr.f32.gmra.mxu0 %v1271
    %v1339 = vpop.f32.mrf.mxu0
    %v1340 = vadd.f32 0.0, %v1339
    %v1341 = vpop.f32.mrf.mxu0
    %1342 = vdwg.mxu0
    %1343 = vrot.lane.b32.xlu0 %v324, 104
    %v1344 = vpop.permute.xlu0 %1343
    %1345 = vrot.lane.b32.xlu0 %v324, 72
    %v1346 = vpop.permute.xlu0 %1345
    %v1347 = vsel %vm335, %v1344, 0
    %v1349 = vsel %vm335, %v1346, 0
    %1351 = vmatprep.subr.mxu0 0.0
    %1352 = vmatpush1.xpose.msra.mxu0 0.0
    %1353 = vmatprep.subr.mxu0 0.0
    %1354 = vmatpush1.xpose.msra.mxu0 0.0
    %1355 = vmatprep.subr.mxu0 0.0
    %1356 = vmatpush1.xpose.msra.mxu0 0.0
    %1357 = vmatprep.subr.mxu0 0.0
    %1358 = vmatpush1.xpose.msra.mxu0 0.0
    %1359 = vmatprep.subr.mxu0 0.0
    %1360 = vmatpush1.xpose.msra.mxu0 0.0
    %1361 = vmatprep.subr.mxu0 0.0
    %1362 = vmatpush1.xpose.msra.mxu0 0.0
    %1363 = vmatprep.subr.mxu0 0.0
    %1364 = vmatpush1.xpose.msra.mxu0 0.0
    %1365 = vmatprep.subr.mxu0 0.0
    %1366 = vmatpush1.xpose.msra.mxu0 0.0
    %1367 = vmatprep.subr.mxu0 0.0
    %1368 = vmatpush1.xpose.msra.mxu0 0.0
    %1369 = vmatprep.subr.mxu0 0.0
    %1370 = vmatpush1.xpose.msra.mxu0 0.0
    %1371 = vmatprep.subr.mxu0 0.0
    %1372 = vmatpush1.xpose.msra.mxu0 0.0
    %1373 = vmatprep.subr.mxu0 0.0
    %1374 = vmatpush1.xpose.msra.mxu0 0.0
    %1375 = vmatprep.subr.mxu0 0.0
    %1376 = vmatpush1.xpose.msra.mxu0 0.0
    %1377 = vmatprep.subr.mxu0 0.0
    %1378 = vmatpush1.xpose.msra.mxu0 0.0
    %1379 = vmatprep.subr.mxu0 0.0
    %1380 = vmatpush1.xpose.msra.mxu0 0.0
    %1381 = vmatprep.subr.mxu0 0.0
    %1382 = vmatpush1.xpose.msra.mxu0 %v1349
    %1383 = vmatprep.subr.mxu0 0.0
    %1384 = vmatpush2.xpose.msra.mxu0 0.0
    %1385 = vmatprep.subr.mxu0 0.0
    %1386 = vmatpush2.xpose.msra.mxu0 0.0
    %1387 = vmatprep.subr.mxu0 0.0
    %1388 = vmatpush2.xpose.msra.mxu0 0.0
    %1389 = vmatprep.subr.mxu0 0.0
    %1390 = vmatpush2.xpose.msra.mxu0 0.0
    %1391 = vmatprep.subr.mxu0 0.0
    %1392 = vmatpush2.xpose.msra.mxu0 0.0
    %1393 = vmatprep.subr.mxu0 0.0
    %1394 = vmatpush2.xpose.msra.mxu0 0.0
    %1395 = vmatprep.subr.mxu0 0.0
    %1396 = vmatpush2.xpose.msra.mxu0 0.0
    %1397 = vmatprep.subr.mxu0 0.0
    %1398 = vmatpush2.xpose.msra.mxu0 0.0
    %1399 = vmatprep.subr.mxu0 0.0
    %1400 = vmatpush2.xpose.msra.mxu0 0.0
    %1401 = vmatprep.subr.mxu0 0.0
    %1402 = vmatpush2.xpose.msra.mxu0 0.0
    %1403 = vmatprep.subr.mxu0 0.0
    %1404 = vmatpush2.xpose.msra.mxu0 0.0
    %1405 = vmatprep.subr.mxu0 0.0
    %1406 = vmatpush2.xpose.msra.mxu0 0.0
    %1407 = vmatprep.subr.mxu0 0.0
    %1408 = vmatpush2.xpose.msra.mxu0 0.0
    %1409 = vmatprep.subr.mxu0 0.0
    %1410 = vmatpush2.xpose.msra.mxu0 0.0
    %1411 = vmatprep.subr.mxu0 0.0
    %1412 = vmatpush2.xpose.msra.mxu0 0.0
    %1413 = vmatprep.subr.mxu0 0.0
    %1414 = vmatpush2.xpose.msra.mxu0 0.0
    %1415 = vmatprep.mubr.f32.mxu0 0.0
    %1416 = vmatmul.mubr.f32.gmra.mxu0 %v1347
    %v1417 = vpop.f32.mrf.mxu0
    %v1418 = vadd.f32 0.0, %v1417
    %v1419 = vpop.f32.mrf.mxu0
    %1420 = vdwg.mxu0
    %1421 = vrot.lane.b32.xlu0 %v329, 104
    %v1422 = vpop.permute.xlu0 %1421
    %1423 = vrot.lane.b32.xlu0 %v329, 72
    %v1424 = vpop.permute.xlu0 %1423
    %v1425 = vsel %vm335, %v1422, 0
    %v1427 = vsel %vm335, %v1424, 0
    %1429 = vmatprep.subr.mxu0 0.0
    %1430 = vmatpush1.xpose.msra.mxu0 0.0
    %1431 = vmatprep.subr.mxu0 0.0
    %1432 = vmatpush1.xpose.msra.mxu0 0.0
    %1433 = vmatprep.subr.mxu0 0.0
    %1434 = vmatpush1.xpose.msra.mxu0 0.0
    %1435 = vmatprep.subr.mxu0 0.0
    %1436 = vmatpush1.xpose.msra.mxu0 0.0
    %1437 = vmatprep.subr.mxu0 0.0
    %1438 = vmatpush1.xpose.msra.mxu0 0.0
    %1439 = vmatprep.subr.mxu0 0.0
    %1440 = vmatpush1.xpose.msra.mxu0 0.0
    %1441 = vmatprep.subr.mxu0 0.0
    %1442 = vmatpush1.xpose.msra.mxu0 0.0
    %1443 = vmatprep.subr.mxu0 0.0
    %1444 = vmatpush1.xpose.msra.mxu0 0.0
    %1445 = vmatprep.subr.mxu0 0.0
    %1446 = vmatpush1.xpose.msra.mxu0 0.0
    %1447 = vmatprep.subr.mxu0 0.0
    %1448 = vmatpush1.xpose.msra.mxu0 0.0
    %1449 = vmatprep.subr.mxu0 0.0
    %1450 = vmatpush1.xpose.msra.mxu0 0.0
    %1451 = vmatprep.subr.mxu0 0.0
    %1452 = vmatpush1.xpose.msra.mxu0 0.0
    %1453 = vmatprep.subr.mxu0 0.0
    %1454 = vmatpush1.xpose.msra.mxu0 0.0
    %1455 = vmatprep.subr.mxu0 0.0
    %1456 = vmatpush1.xpose.msra.mxu0 0.0
    %1457 = vmatprep.subr.mxu0 0.0
    %1458 = vmatpush1.xpose.msra.mxu0 0.0
    %1459 = vmatprep.subr.mxu0 0.0
    %1460 = vmatpush1.xpose.msra.mxu0 %v1427
    %1461 = vmatprep.subr.mxu0 0.0
    %1462 = vmatpush2.xpose.msra.mxu0 0.0
    %1463 = vmatprep.subr.mxu0 0.0
    %1464 = vmatpush2.xpose.msra.mxu0 0.0
    %1465 = vmatprep.subr.mxu0 0.0
    %1466 = vmatpush2.xpose.msra.mxu0 0.0
    %1467 = vmatprep.subr.mxu0 0.0
    %1468 = vmatpush2.xpose.msra.mxu0 0.0
    %1469 = vmatprep.subr.mxu0 0.0
    %1470 = vmatpush2.xpose.msra.mxu0 0.0
    %1471 = vmatprep.subr.mxu0 0.0
    %1472 = vmatpush2.xpose.msra.mxu0 0.0
    %1473 = vmatprep.subr.mxu0 0.0
    %1474 = vmatpush2.xpose.msra.mxu0 0.0
    %1475 = vmatprep.subr.mxu0 0.0
    %1476 = vmatpush2.xpose.msra.mxu0 0.0
    %1477 = vmatprep.subr.mxu0 0.0
    %1478 = vmatpush2.xpose.msra.mxu0 0.0
    %1479 = vmatprep.subr.mxu0 0.0
    %1480 = vmatpush2.xpose.msra.mxu0 0.0
    %1481 = vmatprep.subr.mxu0 0.0
    %1482 = vmatpush2.xpose.msra.mxu0 0.0
    %1483 = vmatprep.subr.mxu0 0.0
    %1484 = vmatpush2.xpose.msra.mxu0 0.0
    %1485 = vmatprep.subr.mxu0 0.0
    %1486 = vmatpush2.xpose.msra.mxu0 0.0
    %1487 = vmatprep.subr.mxu0 0.0
    %1488 = vmatpush2.xpose.msra.mxu0 0.0
    %1489 = vmatprep.subr.mxu0 0.0
    %1490 = vmatpush2.xpose.msra.mxu0 0.0
    %1491 = vmatprep.subr.mxu0 0.0
    %1492 = vmatpush2.xpose.msra.mxu0 0.0
    %1493 = vmatprep.mubr.f32.mxu0 0.0
    %1494 = vmatmul.mubr.f32.gmra.mxu0 %v1425
    %v1495 = vpop.f32.mrf.mxu0
    %v1496 = vadd.f32 0.0, %v1495
    %v1497 = vpop.f32.mrf.mxu0
    %1498 = vdwg.mxu0
    %v1499 = vmul.f32 %v1418, 0.35355338
    %v1500 = vmul.f32 %v1496, 0.35355338
    %v1501 = vadd.f32 %v1499, %v492
    %v1502 = vadd.f32 %v1500, %v496
    %v1503 = vsel %vm335, %v1501, -inf
    %1504 = vmax.xlane.f32.xlu0 %v1503
    %v1505 = vpop.xlane.xlu0 %1504
    %v1506 = vsel %vm335, %v1502, -inf
    %1507 = vmax.xlane.f32.xlu0 %v1506
    %v1508 = vpop.xlane.xlu0 %1507
    %v1509 = vsub.f32 %v1501, %v1505
    %v1510 = vsub.f32 %v1502, %v1508
    %v1511 = vmul.f32 %v1509, 1.442695
    %v1512 = vpow.pop %v1511
    %v1513 = vmul.f32 %v1510, 1.442695
    %v1514 = vpow.pop %v1513
    %v1515 = vsel %vm335, %v1512, 0.0
    %1516 = vadd.xlane.f32.xlu0 %v1515
    %v1517 = vpop.xlane.xlu0 %1516
    %v1518 = vsel %vm335, %v1514, 0.0
    %1519 = vadd.xlane.f32.xlu0 %v1518
    %v1520 = vpop.xlane.xlu0 %1519
    %v1521 = vrcp.pop %v1517
    %v1522 = vmul.f32 %v1512, %v1521
    %v1523 = vrcp.pop %v1520
    %v1524 = vmul.f32 %v1514, %v1523
    %1525 = vrot.lane.b32.xlu0 %v324, 40
    %v1526 = vpop.permute.xlu0 %1525
    %v1529 = vsel %vm335, %v1522, 0
    %1531 = vmatprep.subr.mxu0 0.0
    %1532 = vmatpush1.msra.mxu0 0.0
    %1533 = vmatprep.subr.mxu0 0.0
    %1534 = vmatpush1.msra.mxu0 0.0
    %1535 = vmatprep.subr.mxu0 0.0
    %1536 = vmatpush1.msra.mxu0 0.0
    %1537 = vmatprep.subr.mxu0 0.0
    %1538 = vmatpush1.msra.mxu0 0.0
    %1539 = vmatprep.subr.mxu0 0.0
    %1540 = vmatpush1.msra.mxu0 0.0
    %1541 = vmatprep.subr.mxu0 0.0
    %1542 = vmatpush1.msra.mxu0 0.0
    %1543 = vmatprep.subr.mxu0 0.0
    %1544 = vmatpush1.msra.mxu0 0.0
    %1545 = vmatprep.subr.mxu0 0.0
    %1546 = vmatpush1.msra.mxu0 0.0
    %1547 = vmatprep.subr.mxu0 0.0
    %1548 = vmatpush1.msra.mxu0 0.0
    %1549 = vmatprep.subr.mxu0 0.0
    %1550 = vmatpush1.msra.mxu0 0.0
    %1551 = vmatprep.subr.mxu0 0.0
    %1552 = vmatpush1.msra.mxu0 0.0
    %1553 = vmatprep.subr.mxu0 0.0
    %1554 = vmatpush1.msra.mxu0 0.0
    %1555 = vmatprep.subr.mxu0 0.0
    %1556 = vmatpush1.msra.mxu0 0.0
    %1557 = vmatprep.subr.mxu0 0.0
    %1558 = vmatpush1.msra.mxu0 0.0
    %1559 = vmatprep.subr.mxu0 0.0
    %1560 = vmatpush1.msra.mxu0 0.0
    %1561 = vmatprep.subr.mxu0 0.0
    %1562 = vmatpush1.msra.mxu0 %v1526
    %1563 = vmatprep.subr.mxu0 0.0
    %1564 = vmatpush2.msra.mxu0 0.0
    %1565 = vmatprep.subr.mxu0 0.0
    %1566 = vmatpush2.msra.mxu0 0.0
    %1567 = vmatprep.subr.mxu0 0.0
    %1568 = vmatpush2.msra.mxu0 0.0
    %1569 = vmatprep.subr.mxu0 0.0
    %1570 = vmatpush2.msra.mxu0 0.0
    %1571 = vmatprep.subr.mxu0 0.0
    %1572 = vmatpush2.msra.mxu0 0.0
    %1573 = vmatprep.subr.mxu0 0.0
    %1574 = vmatpush2.msra.mxu0 0.0
    %1575 = vmatprep.subr.mxu0 0.0
    %1576 = vmatpush2.msra.mxu0 0.0
    %1577 = vmatprep.subr.mxu0 0.0
    %1578 = vmatpush2.msra.mxu0 0.0
    %1579 = vmatprep.subr.mxu0 0.0
    %1580 = vmatpush2.msra.mxu0 0.0
    %1581 = vmatprep.subr.mxu0 0.0
    %1582 = vmatpush2.msra.mxu0 0.0
    %1583 = vmatprep.subr.mxu0 0.0
    %1584 = vmatpush2.msra.mxu0 0.0
    %1585 = vmatprep.subr.mxu0 0.0
    %1586 = vmatpush2.msra.mxu0 0.0
    %1587 = vmatprep.subr.mxu0 0.0
    %1588 = vmatpush2.msra.mxu0 0.0
    %1589 = vmatprep.subr.mxu0 0.0
    %1590 = vmatpush2.msra.mxu0 0.0
    %1591 = vmatprep.subr.mxu0 0.0
    %1592 = vmatpush2.msra.mxu0 0.0
    %1593 = vmatprep.subr.mxu0 0.0
    %1594 = vmatpush2.msra.mxu0 0.0
    %1595 = vmatprep.mubr.f32.mxu0 0.0
    %1596 = vmatmul.mubr.f32.gmra.mxu0 %v1529
    %v1597 = vpop.f32.mrf.mxu0
    %v1598 = vadd.f32 0.0, %v1597
    %v1599 = vpop.f32.mrf.mxu0
    %1600 = vdwg.mxu0
    %1601 = vrot.lane.b32.xlu0 %v329, 40
    %v1602 = vpop.permute.xlu0 %1601
    %v1605 = vsel %vm335, %v1524, 0
    %1607 = vmatprep.subr.mxu0 0.0
    %1608 = vmatpush1.msra.mxu0 0.0
    %1609 = vmatprep.subr.mxu0 0.0
    %1610 = vmatpush1.msra.mxu0 0.0
    %1611 = vmatprep.subr.mxu0 0.0
    %1612 = vmatpush1.msra.mxu0 0.0
    %1613 = vmatprep.subr.mxu0 0.0
    %1614 = vmatpush1.msra.mxu0 0.0
    %1615 = vmatprep.subr.mxu0 0.0
    %1616 = vmatpush1.msra.mxu0 0.0
    %1617 = vmatprep.subr.mxu0 0.0
    %1618 = vmatpush1.msra.mxu0 0.0
    %1619 = vmatprep.subr.mxu0 0.0
    %1620 = vmatpush1.msra.mxu0 0.0
    %1621 = vmatprep.subr.mxu0 0.0
    %1622 = vmatpush1.msra.mxu0 0.0
    %1623 = vmatprep.subr.mxu0 0.0
    %1624 = vmatpush1.msra.mxu0 0.0
    %1625 = vmatprep.subr.mxu0 0.0
    %1626 = vmatpush1.msra.mxu0 0.0
    %1627 = vmatprep.subr.mxu0 0.0
    %1628 = vmatpush1.msra.mxu0 0.0
    %1629 = vmatprep.subr.mxu0 0.0
    %1630 = vmatpush1.msra.mxu0 0.0
    %1631 = vmatprep.subr.mxu0 0.0
    %1632 = vmatpush1.msra.mxu0 0.0
    %1633 = vmatprep.subr.mxu0 0.0
    %1634 = vmatpush1.msra.mxu0 0.0
    %1635 = vmatprep.subr.mxu0 0.0
    %1636 = vmatpush1.msra.mxu0 0.0
    %1637 = vmatprep.subr.mxu0 0.0
    %1638 = vmatpush1.msra.mxu0 %v1602
    %1639 = vmatprep.subr.mxu0 0.0
    %1640 = vmatpush2.msra.mxu0 0.0
    %1641 = vmatprep.subr.mxu0 0.0
    %1642 = vmatpush2.msra.mxu0 0.0
    %1643 = vmatprep.subr.mxu0 0.0
    %1644 = vmatpush2.msra.mxu0 0.0
    %1645 = vmatprep.subr.mxu0 0.0
    %1646 = vmatpush2.msra.mxu0 0.0
    %1647 = vmatprep.subr.mxu0 0.0
    %1648 = vmatpush2.msra.mxu0 0.0
    %1649 = vmatprep.subr.mxu0 0.0
    %1650 = vmatpush2.msra.mxu0 0.0
    %1651 = vmatprep.subr.mxu0 0.0
    %1652 = vmatpush2.msra.mxu0 0.0
    %1653 = vmatprep.subr.mxu0 0.0
    %1654 = vmatpush2.msra.mxu0 0.0
    %1655 = vmatprep.subr.mxu0 0.0
    %1656 = vmatpush2.msra.mxu0 0.0
    %1657 = vmatprep.subr.mxu0 0.0
    %1658 = vmatpush2.msra.mxu0 0.0
    %1659 = vmatprep.subr.mxu0 0.0
    %1660 = vmatpush2.msra.mxu0 0.0
    %1661 = vmatprep.subr.mxu0 0.0
    %1662 = vmatpush2.msra.mxu0 0.0
    %1663 = vmatprep.subr.mxu0 0.0
    %1664 = vmatpush2.msra.mxu0 0.0
    %1665 = vmatprep.subr.mxu0 0.0
    %1666 = vmatpush2.msra.mxu0 0.0
    %1667 = vmatprep.subr.mxu0 0.0
    %1668 = vmatpush2.msra.mxu0 0.0
    %1669 = vmatprep.subr.mxu0 0.0
    %1670 = vmatpush2.msra.mxu0 0.0
    %1671 = vmatprep.mubr.f32.mxu0 0.0
    %1672 = vmatmul.mubr.f32.gmra.mxu0 %v1605
    %v1673 = vpop.f32.mrf.mxu0
    %v1674 = vadd.f32 0.0, %v1673
    %v1675 = vpop.f32.mrf.mxu0
    %1676 = vdwg.mxu0
    %1679 = vrot.lane.b32.xlu0 %v930, 8
    %v1680 = vpop.permute.xlu0 %1679
    %1681 = vrot.lane.b32.xlu0 %v1006, 8
    %v1682 = vpop.permute.xlu0 %1681
    %1687 = vrot.lane.b32.xlu0 %v1264, 16
    %v1688 = vpop.permute.xlu0 %1687
    %1689 = vrot.lane.b32.xlu0 %v1340, 16
    %v1690 = vpop.permute.xlu0 %1689
    %1695 = vrot.lane.b32.xlu0 %v1598, 24
    %v1696 = vpop.permute.xlu0 %1695
    %1697 = vrot.lane.b32.xlu0 %v1674, 24
    %v1698 = vpop.permute.xlu0 %1697
    %v1701 = vsel %vm335, %v596, %v1680
    %v1702 = vsel %vm335, %v672, %v1682
    %vm1703 = vcmask 130048
    %v1704 = vsel %vm1703, %v1701, %v1688
    %v1705 = vsel %vm1703, %v1702, %v1690
    %vm1706 = vcmask 195584
    %v1707 = vsel %vm1706, %v1704, %v1696
    %v1708 = vsel %vm1706, %v1705, %v1698
    %1713 = vrot.lane.b32.xlu0 %v238, 32
    %v1714 = vpop.permute.xlu0 %1713
    %1715 = vrot.lane.b32.xlu0 %v240, 32
    %v1716 = vpop.permute.xlu0 %1715
    %1717 = vrot.lane.b32.xlu0 %v242, 32
    %v1718 = vpop.permute.xlu0 %1717
    %1719 = vrot.lane.b32.xlu0 %v244, 32
    %v1720 = vpop.permute.xlu0 %1719
    %1726 = vrot.lane.b32.xlu0 %v250, 32
    %v1727 = vpop.permute.xlu0 %1726
    %v1730 = vsel %vm171, %v1707, 0
    %v1733 = vsel %vm171, %v1708, 0
    %1735 = vmatprep.subr.mxu0 0.0
    %1736 = vmatpush1.msra.mxu0 0.0
    %1737 = vmatprep.subr.mxu0 0.0
    %1738 = vmatpush1.msra.mxu0 0.0
    %1739 = vmatprep.subr.mxu0 0.0
    %1740 = vmatpush1.msra.mxu0 0.0
    %1741 = vmatprep.subr.mxu0 0.0
    %1742 = vmatpush1.msra.mxu0 0.0
    %1743 = vmatprep.subr.mxu0 0.0
    %1744 = vmatpush1.msra.mxu0 0.0
    %1745 = vmatprep.subr.mxu0 0.0
    %1746 = vmatpush1.msra.mxu0 0.0
    %1747 = vmatprep.subr.mxu0 0.0
    %1748 = vmatpush1.msra.mxu0 0.0
    %1749 = vmatprep.subr.mxu0 0.0
    %1750 = vmatpush1.msra.mxu0 0.0
    %1751 = vmatprep.subr.mxu0 0.0
    %1752 = vmatpush1.msra.mxu0 0.0
    %1753 = vmatprep.subr.mxu0 0.0
    %1754 = vmatpush1.msra.mxu0 0.0
    %1755 = vmatprep.subr.mxu0 0.0
    %1756 = vmatpush1.msra.mxu0 0.0
    %1757 = vmatprep.subr.mxu0 0.0
    %1758 = vmatpush1.msra.mxu0 0.0
    %1759 = vmatprep.subr.mxu0 0.0
    %1760 = vmatpush1.msra.mxu0 %v1720
    %1761 = vmatprep.subr.mxu0 0.0
    %1762 = vmatpush1.msra.mxu0 %v1718
    %1763 = vmatprep.subr.mxu0 0.0
    %1764 = vmatpush1.msra.mxu0 %v1716
    %1765 = vmatprep.subr.mxu0 0.0
    %1766 = vmatpush1.msra.mxu0 %v1714
    %1767 = vmatprep.subr.mxu0 0.0
    %1768 = vmatpush2.msra.mxu0 0.0
    %1769 = vmatprep.subr.mxu0 0.0
    %1770 = vmatpush2.msra.mxu0 0.0
    %1771 = vmatprep.subr.mxu0 0.0
    %1772 = vmatpush2.msra.mxu0 0.0
    %1773 = vmatprep.subr.mxu0 0.0
    %1774 = vmatpush2.msra.mxu0 0.0
    %1775 = vmatprep.subr.mxu0 0.0
    %1776 = vmatpush2.msra.mxu0 0.0
    %1777 = vmatprep.subr.mxu0 0.0
    %1778 = vmatpush2.msra.mxu0 0.0
    %1779 = vmatprep.subr.mxu0 0.0
    %1780 = vmatpush2.msra.mxu0 0.0
    %1781 = vmatprep.subr.mxu0 0.0
    %1782 = vmatpush2.msra.mxu0 0.0
    %1783 = vmatprep.subr.mxu0 0.0
    %1784 = vmatpush2.msra.mxu0 0.0
    %1785 = vmatprep.subr.mxu0 0.0
    %1786 = vmatpush2.msra.mxu0 0.0
    %1787 = vmatprep.subr.mxu0 0.0
    %1788 = vmatpush2.msra.mxu0 0.0
    %1789 = vmatprep.subr.mxu0 0.0
    %1790 = vmatpush2.msra.mxu0 0.0
    %1791 = vmatprep.subr.mxu0 0.0
    %1792 = vmatpush2.msra.mxu0 0.0
    %1793 = vmatprep.subr.mxu0 0.0
    %1794 = vmatpush2.msra.mxu0 0.0
    %1795 = vmatprep.subr.mxu0 0.0
    %1796 = vmatpush2.msra.mxu0 0.0
    %1797 = vmatprep.subr.mxu0 0.0
    %1798 = vmatpush2.msra.mxu0 0.0
    %1799 = vmatprep.mubr.f32.mxu0 0.0
    %1800 = vmatmul.mubr.f32.gmra.mxu0 %v1730
    %v1801 = vpop.f32.mrf.mxu0
    %v1802 = vadd.f32 %v1727, %v1801
    %v1803 = vpop.f32.mrf.mxu0
    %1804 = vmatprep.mubr.f32.mxu0 0.0
    %1805 = vmatmul.mubr.f32.gmra.mxu0 %v1733
    %v1806 = vpop.f32.mrf.mxu0
    %v1807 = vadd.f32 %v1727, %v1806
    %v1808 = vpop.f32.mrf.mxu0
    %1809 = vdwg.mxu0
    %v1810 = vadd.f32 %v1802, %v209
    %v1811 = vadd.f32 %v1807, %v210
    %v1812 = vsel %vm171, %v1810, 0.0
    %1813 = vadd.xlane.f32.xlu0 %v1812
    %v1814 = vpop.xlane.xlu0 %1813
    %v1815 = vsel %vm171, %v1811, 0.0
    %1816 = vadd.xlane.f32.xlu0 %v1815
    %v1817 = vpop.xlane.xlu0 %1816
    %v1818 = vmul.f32 %v1814, %v178
    %v1819 = vmul.f32 %v1817, %v178
    %v1820 = vsub.f32 %v1810, %v1818
    %v1821 = vsub.f32 %v1811, %v1819
    %v1822 = vmul.f32 %v1820, %v1820
    %v1823 = vmul.f32 %v1821, %v1821
    %v1824 = vsel %vm171, %v1822, 0.0
    %1825 = vadd.xlane.f32.xlu0 %v1824
    %v1826 = vpop.xlane.xlu0 %1825
    %v1827 = vsel %vm171, %v1823, 0.0
    %1828 = vadd.xlane.f32.xlu0 %v1827
    %v1829 = vpop.xlane.xlu0 %1828
    %v1830 = vmul.f32 %v1826, %v178
    %v1831 = vmul.f32 %v1829, %v178
    %v1832 = vadd.f32 %v1830, 1e-12
    %v1833 = vadd.f32 %v1831, 1e-12
    %v1834 = vrsqrt.pop %v1832
    %v1835 = vrsqrt.pop %v1833
    %v1836 = vmul.f32 %v1820, %v1834
    %v1837 = vmul.f32 %v1821, %v1835
    %v1838 = vlaneseq
    %v1839 = vshrl.u32 %v1838, 7
    %v1840 = vsub.s32 1, %v1839
    %v1841 = vrot.slane %v246, %v1840
    %v1842 = vmul.f32 %v1836, %v1841
    %v1843 = vmul.f32 %v1837, %v1841
    %1845 = vrot.lane.b32.xlu0 %v1841, 96
    %v1846 = vpop.permute.xlu0 %1845
    %v1848 = vadd.f32 %v1842, %v1846
    %v1849 = vadd.f32 %v1843, %v1846
    %1850 = vrot.lane.b32.xlu0 %v1841, 64
    %v1851 = vpop.permute.xlu0 %1850
    %v1854 = vsel %vm171, %v1848, 0
    %v1857 = vsel %vm171, %v1849, 0
    %1859 = vmatprep.subr.mxu0 0.0
    %1860 = vmatpush1.msra.mxu0 0.0
    %1861 = vmatprep.subr.mxu0 0.0
    %1862 = vmatpush1.msra.mxu0 0.0
    %1863 = vmatprep.subr.mxu0 0.0
    %1864 = vmatpush1.msra.mxu0 0.0
    %1865 = vmatprep.subr.mxu0 0.0
    %1866 = vmatpush1.msra.mxu0 0.0
    %1867 = vmatprep.subr.mxu0 0.0
    %1868 = vmatpush1.msra.mxu0 0.0
    %1869 = vmatprep.subr.mxu0 0.0
    %1870 = vmatpush1.msra.mxu0 0.0
    %1871 = vmatprep.subr.mxu0 0.0
    %1872 = vmatpush1.msra.mxu0 0.0
    %1873 = vmatprep.subr.mxu0 0.0
    %1874 = vmatpush1.msra.mxu0 0.0
    %1875 = vmatprep.subr.mxu0 0.0
    %1876 = vmatpush1.msra.mxu0 0.0
    %1877 = vmatprep.subr.mxu0 0.0
    %1878 = vmatpush1.msra.mxu0 0.0
    %1879 = vmatprep.subr.mxu0 0.0
    %1880 = vmatpush1.msra.mxu0 0.0
    %1881 = vmatprep.subr.mxu0 0.0
    %1882 = vmatpush1.msra.mxu0 0.0
    %1883 = vmatprep.subr.mxu0 0.0
    %1884 = vmatpush1.msra.mxu0 %v245
    %1885 = vmatprep.subr.mxu0 0.0
    %1886 = vmatpush1.msra.mxu0 %v243
    %1887 = vmatprep.subr.mxu0 0.0
    %1888 = vmatpush1.msra.mxu0 %v241
    %1889 = vmatprep.subr.mxu0 0.0
    %1890 = vmatpush1.msra.mxu0 %v239
    %1891 = vmatprep.subr.mxu0 0.0
    %1892 = vmatpush2.msra.mxu0 0.0
    %1893 = vmatprep.subr.mxu0 0.0
    %1894 = vmatpush2.msra.mxu0 0.0
    %1895 = vmatprep.subr.mxu0 0.0
    %1896 = vmatpush2.msra.mxu0 0.0
    %1897 = vmatprep.subr.mxu0 0.0
    %1898 = vmatpush2.msra.mxu0 0.0
    %1899 = vmatprep.subr.mxu0 0.0
    %1900 = vmatpush2.msra.mxu0 0.0
    %1901 = vmatprep.subr.mxu0 0.0
    %1902 = vmatpush2.msra.mxu0 0.0
    %1903 = vmatprep.subr.mxu0 0.0
    %1904 = vmatpush2.msra.mxu0 0.0
    %1905 = vmatprep.subr.mxu0 0.0
    %1906 = vmatpush2.msra.mxu0 0.0
    %1907 = vmatprep.subr.mxu0 0.0
    %1908 = vmatpush2.msra.mxu0 0.0
    %1909 = vmatprep.subr.mxu0 0.0
    %1910 = vmatpush2.msra.mxu0 0.0
    %1911 = vmatprep.subr.mxu0 0.0
    %1912 = vmatpush2.msra.mxu0 0.0
    %1913 = vmatprep.subr.mxu0 0.0
    %1914 = vmatpush2.msra.mxu0 0.0
    %1915 = vmatprep.subr.mxu0 0.0
    %1916 = vmatpush2.msra.mxu0 0.0
    %1917 = vmatprep.subr.mxu0 0.0
    %1918 = vmatpush2.msra.mxu0 0.0
    %1919 = vmatprep.subr.mxu0 0.0
    %1920 = vmatpush2.msra.mxu0 0.0
    %1921 = vmatprep.subr.mxu0 0.0
    %1922 = vmatpush2.msra.mxu0 0.0
    %1923 = vmatprep.mubr.f32.mxu0 0.0
    %1924 = vmatmul.mubr.f32.gmra.mxu0 %v1854
    %v1925 = vpop.f32.mrf.mxu0
    %v1926 = vadd.f32 %v1851, %v1925
    %v1927 = vpop.f32.mrf.mxu0
    %1928 = vmatprep.mubr.f32.mxu0 0.0
    %1929 = vmatmul.mubr.f32.gmra.mxu0 %v1857
    %v1930 = vpop.f32.mrf.mxu0
    %v1931 = vadd.f32 %v1851, %v1930
    %v1932 = vpop.f32.mrf.mxu0
    %1933 = vdwg.mxu0
    %v1934 = vmul.f32 %v1926, %v1926
    %v1935 = vmul.f32 %v1931, %v1931
    %v1936 = vmul.f32 %v1926, %v1934
    %v1937 = vmul.f32 %v1931, %v1935
    %v1938 = vmul.f32 %v1936, 0.044715
    %v1939 = vmul.f32 %v1937, 0.044715
    %v1940 = vadd.f32 %v1926, %v1938
    %v1941 = vadd.f32 %v1931, %v1939
    %v1942 = vmul.f32 %v1940, 0.7978846
    %v1943 = vmul.f32 %v1941, 0.7978846
    %v1944 = vtanh.pop %v1942
    %v1945 = vtanh.pop %v1943
    %v1946 = vadd.f32 %v1944, 1.0
    %v1947 = vadd.f32 %v1945, 1.0
    %v1948 = vmul.f32 %v1946, 0.5
    %v1949 = vmul.f32 %v1947, 0.5
    %v1950 = vmul.f32 %v1926, %v1948
    %v1951 = vmul.f32 %v1931, %v1949
    %v1952 = vlaneseq
    %v1953 = vshrl.u32 %v1952, 7
    %v1954 = vsub.s32 2, %v1953
    %v1955 = vrot.slane %v246, %v1954
    %1960 = vrot.lane.b32.xlu0 %v239, 64
    %v1961 = vpop.permute.xlu0 %1960
    %1962 = vrot.lane.b32.xlu0 %v241, 64
    %v1963 = vpop.permute.xlu0 %1962
    %1964 = vrot.lane.b32.xlu0 %v243, 64
    %v1965 = vpop.permute.xlu0 %1964
    %1966 = vrot.lane.b32.xlu0 %v245, 64
    %v1967 = vpop.permute.xlu0 %1966
    %v1969 = vsel %vm80, %v1950, 0
    %v1972 = vsel %vm80, %v1951, 0
    %v1974 = vsel %vm80, %v1961, 0
    %v1976 = vsel %vm80, %v1963, 0
    %v1978 = vsel %vm80, %v1965, 0
    %v1980 = vsel %vm80, %v1967, 0
    %1982 = vmatprep.subr.mxu0 0.0
    %1983 = vmatpush1.xpose.msra.mxu0 0.0
    %1984 = vmatprep.subr.mxu0 0.0
    %1985 = vmatpush1.xpose.msra.mxu0 0.0
    %1986 = vmatprep.subr.mxu0 0.0
    %1987 = vmatpush1.xpose.msra.mxu0 0.0
    %1988 = vmatprep.subr.mxu0 0.0
    %1989 = vmatpush1.xpose.msra.mxu0 0.0
    %1990 = vmatprep.subr.mxu0 0.0
    %1991 = vmatpush1.xpose.msra.mxu0 0.0
    %1992 = vmatprep.subr.mxu0 0.0
    %1993 = vmatpush1.xpose.msra.mxu0 0.0
    %1994 = vmatprep.subr.mxu0 0.0
    %1995 = vmatpush1.xpose.msra.mxu0 0.0
    %1996 = vmatprep.subr.mxu0 0.0
    %1997 = vmatpush1.xpose.msra.mxu0 0.0
    %1998 = vmatprep.subr.mxu0 0.0
    %1999 = vmatpush1.xpose.msra.mxu0 0.0
    %2000 = vmatprep.subr.mxu0 0.0
    %2001 = vmatpush1.xpose.msra.mxu0 0.0
    %2002 = vmatprep.subr.mxu0 0.0
    %2003 = vmatpush1.xpose.msra.mxu0 0.0
    %2004 = vmatprep.subr.mxu0 0.0
    %2005 = vmatpush1.xpose.msra.mxu0 0.0
    %2006 = vmatprep.subr.mxu0 0.0
    %2007 = vmatpush1.xpose.msra.mxu0 %v1980
    %2008 = vmatprep.subr.mxu0 0.0
    %2009 = vmatpush1.xpose.msra.mxu0 %v1978
    %2010 = vmatprep.subr.mxu0 0.0
    %2011 = vmatpush1.xpose.msra.mxu0 %v1976
    %2012 = vmatprep.subr.mxu0 0.0
    %2013 = vmatpush1.xpose.msra.mxu0 %v1974
    %2014 = vmatprep.subr.mxu0 0.0
    %2015 = vmatpush2.xpose.msra.mxu0 0.0
    %2016 = vmatprep.subr.mxu0 0.0
    %2017 = vmatpush2.xpose.msra.mxu0 0.0
    %2018 = vmatprep.subr.mxu0 0.0
    %2019 = vmatpush2.xpose.msra.mxu0 0.0
    %2020 = vmatprep.subr.mxu0 0.0
    %2021 = vmatpush2.xpose.msra.mxu0 0.0
    %2022 = vmatprep.subr.mxu0 0.0
    %2023 = vmatpush2.xpose.msra.mxu0 0.0
    %2024 = vmatprep.subr.mxu0 0.0
    %2025 = vmatpush2.xpose.msra.mxu0 0.0
    %2026 = vmatprep.subr.mxu0 0.0
    %2027 = vmatpush2.xpose.msra.mxu0 0.0
    %2028 = vmatprep.subr.mxu0 0.0
    %2029 = vmatpush2.xpose.msra.mxu0 0.0
    %2030 = vmatprep.subr.mxu0 0.0
    %2031 = vmatpush2.xpose.msra.mxu0 0.0
    %2032 = vmatprep.subr.mxu0 0.0
    %2033 = vmatpush2.xpose.msra.mxu0 0.0
    %2034 = vmatprep.subr.mxu0 0.0
    %2035 = vmatpush2.xpose.msra.mxu0 0.0
    %2036 = vmatprep.subr.mxu0 0.0
    %2037 = vmatpush2.xpose.msra.mxu0 0.0
    %2038 = vmatprep.subr.mxu0 0.0
    %2039 = vmatpush2.xpose.msra.mxu0 0.0
    %2040 = vmatprep.subr.mxu0 0.0
    %2041 = vmatpush2.xpose.msra.mxu0 0.0
    %2042 = vmatprep.subr.mxu0 0.0
    %2043 = vmatpush2.xpose.msra.mxu0 0.0
    %2044 = vmatprep.subr.mxu0 0.0
    %2045 = vmatpush2.xpose.msra.mxu0 0.0
    %2046 = vmatprep.mubr.f32.mxu0 0.0
    %2047 = vmatmul.mubr.f32.gmra.mxu0 %v1969
    %v2048 = vpop.f32.mrf.mxu0
    %v2049 = vadd.f32 %v1955, %v2048
    %v2050 = vpop.f32.mrf.mxu0
    %2051 = vmatprep.mubr.f32.mxu0 0.0
    %2052 = vmatmul.mubr.f32.gmra.mxu0 %v1972
    %v2053 = vpop.f32.mrf.mxu0
    %v2054 = vadd.f32 %v1955, %v2053
    %v2055 = vpop.f32.mrf.mxu0
    %2056 = vdwg.mxu0
    %v2057 = vadd.f32 %v2049, %v1848
    %v2058 = vadd.f32 %v2054, %v1849
    %v2059 = vsel %vm171, %v2057, 0.0
    %2060 = vadd.xlane.f32.xlu0 %v2059
    %v2061 = vpop.xlane.xlu0 %2060
    %v2062 = vsel %vm171, %v2058, 0.0
    %2063 = vadd.xlane.f32.xlu0 %v2062
    %v2064 = vpop.xlane.xlu0 %2063
    %v2065 = vmul.f32 %v2061, %v178
    %v2066 = vmul.f32 %v2064, %v178
    %v2067 = vsub.f32 %v2057, %v2065
    %v2068 = vsub.f32 %v2058, %v2066
    %v2069 = vmul.f32 %v2067, %v2067
    %v2070 = vmul.f32 %v2068, %v2068
    %v2071 = vsel %vm171, %v2069, 0.0
    %2072 = vadd.xlane.f32.xlu0 %v2071
    %v2073 = vpop.xlane.xlu0 %2072
    %v2074 = vsel %vm171, %v2070, 0.0
    %2075 = vadd.xlane.f32.xlu0 %v2074
    %v2076 = vpop.xlane.xlu0 %2075
    %v2077 = vmul.f32 %v2073, %v178
    %v2078 = vmul.f32 %v2076, %v178
    %v2079 = vadd.f32 %v2077, 1e-12
    %v2080 = vadd.f32 %v2078, 1e-12
    %v2081 = vrsqrt.pop %v2079
    %v2082 = vrsqrt.pop %v2080
    %v2083 = vmul.f32 %v2067, %v2081
    %v2084 = vmul.f32 %v2068, %v2082
    %2086 = vrot.lane.b32.xlu0 %v1955, 96
    %v2087 = vpop.permute.xlu0 %2086
    %v2089 = vmul.f32 %v2083, %v2087
    %v2090 = vmul.f32 %v2084, %v2087
    %2091 = vrot.lane.b32.xlu0 %v1955, 64
    %v2092 = vpop.permute.xlu0 %2091
    %v2094 = vadd.f32 %v2089, %v2092
    %v2095 = vadd.f32 %v2090, %v2092
    %s2096 = scalar_lea.vmem %s3, 64
    %v2097 = vld [vmem:[%s2096] sm:$0xff]
    %v2098 = vld [vmem:[%s2096 + $0x8] sm:$0xff]
    %v2099 = vld [vmem:[%s2096 + $0x10] sm:$0xff]
    %v2100 = vld [vmem:[%s2096 + $0x18] sm:$0xff]
    %v2101 = vld [vmem:[%s2096 + $0x20] sm:$0xff]
    %v2102 = vld [vmem:[%s2096 + $0x28] sm:$0xff]
    %v2103 = vld [vmem:[%s2096 + $0x30] sm:$0xff]
    %v2104 = vld [vmem:[%s2096 + $0x38] sm:$0xff]
    %s2105 = scalar_lea.vmem %s4, 4
    %v2106 = vld [vmem:[%s2105] sm:$0x7]
    %v2107 = vlaneseq
    %v2108 = vshrl.u32 %v2107, 7
    %v2109 = vsub.s32 0, %v2108
    %v2110 = vrot.slane %v2106, %v2109
    %v2112 = vsel %vm171, %v2094, 0
    %v2115 = vsel %vm171, %v2095, 0
    %2117 = vmatprep.subr.mxu0 0.0
    %2118 = vmatpush1.msra.mxu0 0.0
    %2119 = vmatprep.subr.mxu0 0.0
    %2120 = vmatpush1.msra.mxu0 0.0
    %2121 = vmatprep.subr.mxu0 0.0
    %2122 = vmatpush1.msra.mxu0 0.0
    %2123 = vmatprep.subr.mxu0 0.0
    %2124 = vmatpush1.msra.mxu0 0.0
    %2125 = vmatprep.subr.mxu0 0.0
    %2126 = vmatpush1.msra.mxu0 0.0
    %2127 = vmatprep.subr.mxu0 0.0
    %2128 = vmatpush1.msra.mxu0 0.0
    %2129 = vmatprep.subr.mxu0 0.0
    %2130 = vmatpush1.msra.mxu0 0.0
    %2131 = vmatprep.subr.mxu0 0.0
    %2132 = vmatpush1.msra.mxu0 0.0
    %2133 = vmatprep.subr.mxu0 0.0
    %2134 = vmatpush1.msra.mxu0 0.0
    %2135 = vmatprep.subr.mxu0 0.0
    %2136 = vmatpush1.msra.mxu0 0.0
    %2137 = vmatprep.subr.mxu0 0.0
    %2138 = vmatpush1.msra.mxu0 0.0
    %2139 = vmatprep.subr.mxu0 0.0
    %2140 = vmatpush1.msra.mxu0 0.0
    %2141 = vmatprep.subr.mxu0 0.0
    %2142 = vmatpush1.msra.mxu0 %v2103
    %2143 = vmatprep.subr.mxu0 0.0
    %2144 = vmatpush1.msra.mxu0 %v2101
    %2145 = vmatprep.subr.mxu0 0.0
    %2146 = vmatpush1.msra.mxu0 %v2099
    %2147 = vmatprep.subr.mxu0 0.0
    %2148 = vmatpush1.msra.mxu0 %v2097
    %2149 = vmatprep.subr.mxu0 0.0
    %2150 = vmatpush2.msra.mxu0 0.0
    %2151 = vmatprep.subr.mxu0 0.0
    %2152 = vmatpush2.msra.mxu0 0.0
    %2153 = vmatprep.subr.mxu0 0.0
    %2154 = vmatpush2.msra.mxu0 0.0
    %2155 = vmatprep.subr.mxu0 0.0
    %2156 = vmatpush2.msra.mxu0 0.0
    %2157 = vmatprep.subr.mxu0 0.0
    %2158 = vmatpush2.msra.mxu0 0.0
    %2159 = vmatprep.subr.mxu0 0.0
    %2160 = vmatpush2.msra.mxu0 0.0
    %2161 = vmatprep.subr.mxu0 0.0
    %2162 = vmatpush2.msra.mxu0 0.0
    %2163 = vmatprep.subr.mxu0 0.0
    %2164 = vmatpush2.msra.mxu0 0.0
    %2165 = vmatprep.subr.mxu0 0.0
    %2166 = vmatpush2.msra.mxu0 0.0
    %2167 = vmatprep.subr.mxu0 0.0
    %2168 = vmatpush2.msra.mxu0 0.0
    %2169 = vmatprep.subr.mxu0 0.0
    %2170 = vmatpush2.msra.mxu0 0.0
    %2171 = vmatprep.subr.mxu0 0.0
    %2172 = vmatpush2.msra.mxu0 0.0
    %2173 = vmatprep.subr.mxu0 0.0
    %2174 = vmatpush2.msra.mxu0 0.0
    %2175 = vmatprep.subr.mxu0 0.0
    %2176 = vmatpush2.msra.mxu0 0.0
    %2177 = vmatprep.subr.mxu0 0.0
    %2178 = vmatpush2.msra.mxu0 0.0
    %2179 = vmatprep.subr.mxu0 0.0
    %2180 = vmatpush2.msra.mxu0 0.0
    %2181 = vmatprep.mubr.f32.mxu0 0.0
    %2182 = vmatmul.mubr.f32.gmra.mxu0 %v2112
    %v2183 = vpop.f32.mrf.mxu0
    %v2184 = vadd.f32 %v2110, %v2183
    %v2185 = vpop.f32.mrf.mxu0
    %2186 = vmatprep.mubr.f32.mxu0 0.0
    %2187 = vmatmul.mubr.f32.gmra.mxu0 %v2115
    %v2188 = vpop.f32.mrf.mxu0
    %v2189 = vadd.f32 %v2110, %v2188
    %v2190 = vpop.f32.mrf.mxu0
    %2191 = vdwg.mxu0
    %2193 = vrot.lane.b32.xlu0 %v2184, 96
    %v2194 = vpop.permute.xlu0 %2193
    %v2195 = vsel %vm335, %v2184, 0
    %v2197 = vsel %vm335, %v2194, 0
    %2199 = vmatprep.subr.mxu0 0.0
    %2200 = vmatpush1.xpose.msra.mxu0 0.0
    %2201 = vmatprep.subr.mxu0 0.0
    %2202 = vmatpush1.xpose.msra.mxu0 0.0
    %2203 = vmatprep.subr.mxu0 0.0
    %2204 = vmatpush1.xpose.msra.mxu0 0.0
    %2205 = vmatprep.subr.mxu0 0.0
    %2206 = vmatpush1.xpose.msra.mxu0 0.0
    %2207 = vmatprep.subr.mxu0 0.0
    %2208 = vmatpush1.xpose.msra.mxu0 0.0
    %2209 = vmatprep.subr.mxu0 0.0
    %2210 = vmatpush1.xpose.msra.mxu0 0.0
    %2211 = vmatprep.subr.mxu0 0.0
    %2212 = vmatpush1.xpose.msra.mxu0 0.0
    %2213 = vmatprep.subr.mxu0 0.0
    %2214 = vmatpush1.xpose.msra.mxu0 0.0
    %2215 = vmatprep.subr.mxu0 0.0
    %2216 = vmatpush1.xpose.msra.mxu0 0.0
    %2217 = vmatprep.subr.mxu0 0.0
    %2218 = vmatpush1.xpose.msra.mxu0 0.0
    %2219 = vmatprep.subr.mxu0 0.0
    %2220 = vmatpush1.xpose.msra.mxu0 0.0
    %2221 = vmatprep.subr.mxu0 0.0
    %2222 = vmatpush1.xpose.msra.mxu0 0.0
    %2223 = vmatprep.subr.mxu0 0.0
    %2224 = vmatpush1.xpose.msra.mxu0 0.0
    %2225 = vmatprep.subr.mxu0 0.0
    %2226 = vmatpush1.xpose.msra.mxu0 0.0
    %2227 = vmatprep.subr.mxu0 0.0
    %2228 = vmatpush1.xpose.msra.mxu0 0.0
    %2229 = vmatprep.subr.mxu0 0.0
    %2230 = vmatpush1.xpose.msra.mxu0 %v2197
    %2231 = vmatprep.subr.mxu0 0.0
    %2232 = vmatpush2.xpose.msra.mxu0 0.0
    %2233 = vmatprep.subr.mxu0 0.0
    %2234 = vmatpush2.xpose.msra.mxu0 0.0
    %2235 = vmatprep.subr.mxu0 0.0
    %2236 = vmatpush2.xpose.msra.mxu0 0.0
    %2237 = vmatprep.subr.mxu0 0.0
    %2238 = vmatpush2.xpose.msra.mxu0 0.0
    %2239 = vmatprep.subr.mxu0 0.0
    %2240 = vmatpush2.xpose.msra.mxu0 0.0
    %2241 = vmatprep.subr.mxu0 0.0
    %2242 = vmatpush2.xpose.msra.mxu0 0.0
    %2243 = vmatprep.subr.mxu0 0.0
    %2244 = vmatpush2.xpose.msra.mxu0 0.0
    %2245 = vmatprep.subr.mxu0 0.0
    %2246 = vmatpush2.xpose.msra.mxu0 0.0
    %2247 = vmatprep.subr.mxu0 0.0
    %2248 = vmatpush2.xpose.msra.mxu0 0.0
    %2249 = vmatprep.subr.mxu0 0.0
    %2250 = vmatpush2.xpose.msra.mxu0 0.0
    %2251 = vmatprep.subr.mxu0 0.0
    %2252 = vmatpush2.xpose.msra.mxu0 0.0
    %2253 = vmatprep.subr.mxu0 0.0
    %2254 = vmatpush2.xpose.msra.mxu0 0.0
    %2255 = vmatprep.subr.mxu0 0.0
    %2256 = vmatpush2.xpose.msra.mxu0 0.0
    %2257 = vmatprep.subr.mxu0 0.0
    %2258 = vmatpush2.xpose.msra.mxu0 0.0
    %2259 = vmatprep.subr.mxu0 0.0
    %2260 = vmatpush2.xpose.msra.mxu0 0.0
    %2261 = vmatprep.subr.mxu0 0.0
    %2262 = vmatpush2.xpose.msra.mxu0 0.0
    %2263 = vmatprep.mubr.f32.mxu0 0.0
    %2264 = vmatmul.mubr.f32.gmra.mxu0 %v2195
    %v2265 = vpop.f32.mrf.mxu0
    %v2266 = vadd.f32 0.0, %v2265
    %v2267 = vpop.f32.mrf.mxu0
    %2268 = vdwg.mxu0
    %2270 = vrot.lane.b32.xlu0 %v2189, 96
    %v2271 = vpop.permute.xlu0 %2270
    %v2272 = vsel %vm335, %v2189, 0
    %v2274 = vsel %vm335, %v2271, 0
    %2276 = vmatprep.subr.mxu0 0.0
    %2277 = vmatpush1.xpose.msra.mxu0 0.0
    %2278 = vmatprep.subr.mxu0 0.0
    %2279 = vmatpush1.xpose.msra.mxu0 0.0
    %2280 = vmatprep.subr.mxu0 0.0
    %2281 = vmatpush1.xpose.msra.mxu0 0.0
    %2282 = vmatprep.subr.mxu0 0.0
    %2283 = vmatpush1.xpose.msra.mxu0 0.0
    %2284 = vmatprep.subr.mxu0 0.0
    %2285 = vmatpush1.xpose.msra.mxu0 0.0
    %2286 = vmatprep.subr.mxu0 0.0
    %2287 = vmatpush1.xpose.msra.mxu0 0.0
    %2288 = vmatprep.subr.mxu0 0.0
    %2289 = vmatpush1.xpose.msra.mxu0 0.0
    %2290 = vmatprep.subr.mxu0 0.0
    %2291 = vmatpush1.xpose.msra.mxu0 0.0
    %2292 = vmatprep.subr.mxu0 0.0
    %2293 = vmatpush1.xpose.msra.mxu0 0.0
    %2294 = vmatprep.subr.mxu0 0.0
    %2295 = vmatpush1.xpose.msra.mxu0 0.0
    %2296 = vmatprep.subr.mxu0 0.0
    %2297 = vmatpush1.xpose.msra.mxu0 0.0
    %2298 = vmatprep.subr.mxu0 0.0
    %2299 = vmatpush1.xpose.msra.mxu0 0.0
    %2300 = vmatprep.subr.mxu0 0.0
    %2301 = vmatpush1.xpose.msra.mxu0 0.0
    %2302 = vmatprep.subr.mxu0 0.0
    %2303 = vmatpush1.xpose.msra.mxu0 0.0
    %2304 = vmatprep.subr.mxu0 0.0
    %2305 = vmatpush1.xpose.msra.mxu0 0.0
    %2306 = vmatprep.subr.mxu0 0.0
    %2307 = vmatpush1.xpose.msra.mxu0 %v2274
    %2308 = vmatprep.subr.mxu0 0.0
    %2309 = vmatpush2.xpose.msra.mxu0 0.0
    %2310 = vmatprep.subr.mxu0 0.0
    %2311 = vmatpush2.xpose.msra.mxu0 0.0
    %2312 = vmatprep.subr.mxu0 0.0
    %2313 = vmatpush2.xpose.msra.mxu0 0.0
    %2314 = vmatprep.subr.mxu0 0.0
    %2315 = vmatpush2.xpose.msra.mxu0 0.0
    %2316 = vmatprep.subr.mxu0 0.0
    %2317 = vmatpush2.xpose.msra.mxu0 0.0
    %2318 = vmatprep.subr.mxu0 0.0
    %2319 = vmatpush2.xpose.msra.mxu0 0.0
    %2320 = vmatprep.subr.mxu0 0.0
    %2321 = vmatpush2.xpose.msra.mxu0 0.0
    %2322 = vmatprep.subr.mxu0 0.0
    %2323 = vmatpush2.xpose.msra.mxu0 0.0
    %2324 = vmatprep.subr.mxu0 0.0
    %2325 = vmatpush2.xpose.msra.mxu0 0.0
    %2326 = vmatprep.subr.mxu0 0.0
    %2327 = vmatpush2.xpose.msra.mxu0 0.0
    %2328 = vmatprep.subr.mxu0 0.0
    %2329 = vmatpush2.xpose.msra.mxu0 0.0
    %2330 = vmatprep.subr.mxu0 0.0
    %2331 = vmatpush2.xpose.msra.mxu0 0.0
    %2332 = vmatprep.subr.mxu0 0.0
    %2333 = vmatpush2.xpose.msra.mxu0 0.0
    %2334 = vmatprep.subr.mxu0 0.0
    %2335 = vmatpush2.xpose.msra.mxu0 0.0
    %2336 = vmatprep.subr.mxu0 0.0
    %2337 = vmatpush2.xpose.msra.mxu0 0.0
    %2338 = vmatprep.subr.mxu0 0.0
    %2339 = vmatpush2.xpose.msra.mxu0 0.0
    %2340 = vmatprep.mubr.f32.mxu0 0.0
    %2341 = vmatmul.mubr.f32.gmra.mxu0 %v2272
    %v2342 = vpop.f32.mrf.mxu0
    %v2343 = vadd.f32 0.0, %v2342
    %v2344 = vpop.f32.mrf.mxu0
    %2345 = vdwg.mxu0
    %v2346 = vmul.f32 %v2266, 0.35355338
    %v2347 = vmul.f32 %v2343, 0.35355338
    %v2348 = vadd.f32 %v2346, %v492
    %v2349 = vadd.f32 %v2347, %v496
    %v2350 = vsel %vm335, %v2348, -inf
    %2351 = vmax.xlane.f32.xlu0 %v2350
    %v2352 = vpop.xlane.xlu0 %2351
    %v2353 = vsel %vm335, %v2349, -inf
    %2354 = vmax.xlane.f32.xlu0 %v2353
    %v2355 = vpop.xlane.xlu0 %2354
    %v2356 = vsub.f32 %v2348, %v2352
    %v2357 = vsub.f32 %v2349, %v2355
    %v2358 = vmul.f32 %v2356, 1.442695
    %v2359 = vpow.pop %v2358
    %v2360 = vmul.f32 %v2357, 1.442695
    %v2361 = vpow.pop %v2360
    %v2362 = vsel %vm335, %v2359, 0.0
    %2363 = vadd.xlane.f32.xlu0 %v2362
    %v2364 = vpop.xlane.xlu0 %2363
    %v2365 = vsel %vm335, %v2361, 0.0
    %2366 = vadd.xlane.f32.xlu0 %v2365
    %v2367 = vpop.xlane.xlu0 %2366
    %v2368 = vrcp.pop %v2364
    %v2369 = vmul.f32 %v2359, %v2368
    %v2370 = vrcp.pop %v2367
    %v2371 = vmul.f32 %v2361, %v2370
    %2372 = vrot.lane.b32.xlu0 %v2184, 64
    %v2373 = vpop.permute.xlu0 %2372
    %v2376 = vsel %vm335, %v2369, 0
    %2378 = vmatprep.subr.mxu0 0.0
    %2379 = vmatpush1.msra.mxu0 0.0
    %2380 = vmatprep.subr.mxu0 0.0
    %2381 = vmatpush1.msra.mxu0 0.0
    %2382 = vmatprep.subr.mxu0 0.0
    %2383 = vmatpush1.msra.mxu0 0.0
    %2384 = vmatprep.subr.mxu0 0.0
    %2385 = vmatpush1.msra.mxu0 0.0
    %2386 = vmatprep.subr.mxu0 0.0
    %2387 = vmatpush1.msra.mxu0 0.0
    %2388 = vmatprep.subr.mxu0 0.0
    %2389 = vmatpush1.msra.mxu0 0.0
    %2390 = vmatprep.subr.mxu0 0.0
    %2391 = vmatpush1.msra.mxu0 0.0
    %2392 = vmatprep.subr.mxu0 0.0
    %2393 = vmatpush1.msra.mxu0 0.0
    %2394 = vmatprep.subr.mxu0 0.0
    %2395 = vmatpush1.msra.mxu0 0.0
    %2396 = vmatprep.subr.mxu0 0.0
    %2397 = vmatpush1.msra.mxu0 0.0
    %2398 = vmatprep.subr.mxu0 0.0
    %2399 = vmatpush1.msra.mxu0 0.0
    %2400 = vmatprep.subr.mxu0 0.0
    %2401 = vmatpush1.msra.mxu0 0.0
    %2402 = vmatprep.subr.mxu0 0.0
    %2403 = vmatpush1.msra.mxu0 0.0
    %2404 = vmatprep.subr.mxu0 0.0
    %2405 = vmatpush1.msra.mxu0 0.0
    %2406 = vmatprep.subr.mxu0 0.0
    %2407 = vmatpush1.msra.mxu0 0.0
    %2408 = vmatprep.subr.mxu0 0.0
    %2409 = vmatpush1.msra.mxu0 %v2373
    %2410 = vmatprep.subr.mxu0 0.0
    %2411 = vmatpush2.msra.mxu0 0.0
    %2412 = vmatprep.subr.mxu0 0.0
    %2413 = vmatpush2.msra.mxu0 0.0
    %2414 = vmatprep.subr.mxu0 0.0
    %2415 = vmatpush2.msra.mxu0 0.0
    %2416 = vmatprep.subr.mxu0 0.0
    %2417 = vmatpush2.msra.mxu0 0.0
    %2418 = vmatprep.subr.mxu0 0.0
    %2419 = vmatpush2.msra.mxu0 0.0
    %2420 = vmatprep.subr.mxu0 0.0
    %2421 = vmatpush2.msra.mxu0 0.0
    %2422 = vmatprep.subr.mxu0 0.0
    %2423 = vmatpush2.msra.mxu0 0.0
    %2424 = vmatprep.subr.mxu0 0.0
    %2425 = vmatpush2.msra.mxu0 0.0
    %2426 = vmatprep.subr.mxu0 0.0
    %2427 = vmatpush2.msra.mxu0 0.0
    %2428 = vmatprep.subr.mxu0 0.0
    %2429 = vmatpush2.msra.mxu0 0.0
    %2430 = vmatprep.subr.mxu0 0.0
    %2431 = vmatpush2.msra.mxu0 0.0
    %2432 = vmatprep.subr.mxu0 0.0
    %2433 = vmatpush2.msra.mxu0 0.0
    %2434 = vmatprep.subr.mxu0 0.0
    %2435 = vmatpush2.msra.mxu0 0.0
    %2436 = vmatprep.subr.mxu0 0.0
    %2437 = vmatpush2.msra.mxu0 0.0
    %2438 = vmatprep.subr.mxu0 0.0
    %2439 = vmatpush2.msra.mxu0 0.0
    %2440 = vmatprep.subr.mxu0 0.0
    %2441 = vmatpush2.msra.mxu0 0.0
    %2442 = vmatprep.mubr.f32.mxu0 0.0
    %2443 = vmatmul.mubr.f32.gmra.mxu0 %v2376
    %v2444 = vpop.f32.mrf.mxu0
    %v2445 = vadd.f32 0.0, %v2444
    %v2446 = vpop.f32.mrf.mxu0
    %2447 = vdwg.mxu0
    %2448 = vrot.lane.b32.xlu0 %v2189, 64
    %v2449 = vpop.permute.xlu0 %2448
    %v2452 = vsel %vm335, %v2371, 0
    %2454 = vmatprep.subr.mxu0 0.0
    %2455 = vmatpush1.msra.mxu0 0.0
    %2456 = vmatprep.subr.mxu0 0.0
    %2457 = vmatpush1.msra.mxu0 0.0
    %2458 = vmatprep.subr.mxu0 0.0
    %2459 = vmatpush1.msra.mxu0 0.0
    %2460 = vmatprep.subr.mxu0 0.0
    %2461 = vmatpush1.msra.mxu0 0.0
    %2462 = vmatprep.subr.mxu0 0.0
    %2463 = vmatpush1.msra.mxu0 0.0
    %2464 = vmatprep.subr.mxu0 0.0
    %2465 = vmatpush1.msra.mxu0 0.0
    %2466 = vmatprep.subr.mxu0 0.0
    %2467 = vmatpush1.msra.mxu0 0.0
    %2468 = vmatprep.subr.mxu0 0.0
    %2469 = vmatpush1.msra.mxu0 0.0
    %2470 = vmatprep.subr.mxu0 0.0
    %2471 = vmatpush1.msra.mxu0 0.0
    %2472 = vmatprep.subr.mxu0 0.0
    %2473 = vmatpush1.msra.mxu0 0.0
    %2474 = vmatprep.subr.mxu0 0.0
    %2475 = vmatpush1.msra.mxu0 0.0
    %2476 = vmatprep.subr.mxu0 0.0
    %2477 = vmatpush1.msra.mxu0 0.0
    %2478 = vmatprep.subr.mxu0 0.0
    %2479 = vmatpush1.msra.mxu0 0.0
    %2480 = vmatprep.subr.mxu0 0.0
    %2481 = vmatpush1.msra.mxu0 0.0
    %2482 = vmatprep.subr.mxu0 0.0
    %2483 = vmatpush1.msra.mxu0 0.0
    %2484 = vmatprep.subr.mxu0 0.0
    %2485 = vmatpush1.msra.mxu0 %v2449
    %2486 = vmatprep.subr.mxu0 0.0
    %2487 = vmatpush2.msra.mxu0 0.0
    %2488 = vmatprep.subr.mxu0 0.0
    %2489 = vmatpush2.msra.mxu0 0.0
    %2490 = vmatprep.subr.mxu0 0.0
    %2491 = vmatpush2.msra.mxu0 0.0
    %2492 = vmatprep.subr.mxu0 0.0
    %2493 = vmatpush2.msra.mxu0 0.0
    %2494 = vmatprep.subr.mxu0 0.0
    %2495 = vmatpush2.msra.mxu0 0.0
    %2496 = vmatprep.subr.mxu0 0.0
    %2497 = vmatpush2.msra.mxu0 0.0
    %2498 = vmatprep.subr.mxu0 0.0
    %2499 = vmatpush2.msra.mxu0 0.0
    %2500 = vmatprep.subr.mxu0 0.0
    %2501 = vmatpush2.msra.mxu0 0.0
    %2502 = vmatprep.subr.mxu0 0.0
    %2503 = vmatpush2.msra.mxu0 0.0
    %2504 = vmatprep.subr.mxu0 0.0
    %2505 = vmatpush2.msra.mxu0 0.0
    %2506 = vmatprep.subr.mxu0 0.0
    %2507 = vmatpush2.msra.mxu0 0.0
    %2508 = vmatprep.subr.mxu0 0.0
    %2509 = vmatpush2.msra.mxu0 0.0
    %2510 = vmatprep.subr.mxu0 0.0
    %2511 = vmatpush2.msra.mxu0 0.0
    %2512 = vmatprep.subr.mxu0 0.0
    %2513 = vmatpush2.msra.mxu0 0.0
    %2514 = vmatprep.subr.mxu0 0.0
    %2515 = vmatpush2.msra.mxu0 0.0
    %2516 = vmatprep.subr.mxu0 0.0
    %2517 = vmatpush2.msra.mxu0 0.0
    %2518 = vmatprep.mubr.f32.mxu0 0.0
    %2519 = vmatmul.mubr.f32.gmra.mxu0 %v2452
    %v2520 = vpop.f32.mrf.mxu0
    %v2521 = vadd.f32 0.0, %v2520
    %v2522 = vpop.f32.mrf.mxu0
    %2523 = vdwg.mxu0
    %2524 = vrot.lane.b32.xlu0 %v2184, 120
    %v2525 = vpop.permute.xlu0 %2524
    %2526 = vrot.lane.b32.xlu0 %v2184, 88
    %v2527 = vpop.permute.xlu0 %2526
    %v2528 = vsel %vm335, %v2525, 0
    %v2530 = vsel %vm335, %v2527, 0
    %2532 = vmatprep.subr.mxu0 0.0
    %2533 = vmatpush1.xpose.msra.mxu0 0.0
    %2534 = vmatprep.subr.mxu0 0.0
    %2535 = vmatpush1.xpose.msra.mxu0 0.0
    %2536 = vmatprep.subr.mxu0 0.0
    %2537 = vmatpush1.xpose.msra.mxu0 0.0
    %2538 = vmatprep.subr.mxu0 0.0
    %2539 = vmatpush1.xpose.msra.mxu0 0.0
    %2540 = vmatprep.subr.mxu0 0.0
    %2541 = vmatpush1.xpose.msra.mxu0 0.0
    %2542 = vmatprep.subr.mxu0 0.0
    %2543 = vmatpush1.xpose.msra.mxu0 0.0
    %2544 = vmatprep.subr.mxu0 0.0
    %2545 = vmatpush1.xpose.msra.mxu0 0.0
    %2546 = vmatprep.subr.mxu0 0.0
    %2547 = vmatpush1.xpose.msra.mxu0 0.0
    %2548 = vmatprep.subr.mxu0 0.0
    %2549 = vmatpush1.xpose.msra.mxu0 0.0
    %2550 = vmatprep.subr.mxu0 0.0
    %2551 = vmatpush1.xpose.msra.mxu0 0.0
    %2552 = vmatprep.subr.mxu0 0.0
    %2553 = vmatpush1.xpose.msra.mxu0 0.0
    %2554 = vmatprep.subr.mxu0 0.0
    %2555 = vmatpush1.xpose.msra.mxu0 0.0
    %2556 = vmatprep.subr.mxu0 0.0
    %2557 = vmatpush1.xpose.msra.mxu0 0.0
    %2558 = vmatprep.subr.mxu0 0.0
    %2559 = vmatpush1.xpose.msra.mxu0 0.0
    %2560 = vmatprep.subr.mxu0 0.0
    %2561 = vmatpush1.xpose.msra.mxu0 0.0
    %2562 = vmatprep.subr.mxu0 0.0
    %2563 = vmatpush1.xpose.msra.mxu0 %v2530
    %2564 = vmatprep.subr.mxu0 0.0
    %2565 = vmatpush2.xpose.msra.mxu0 0.0
    %2566 = vmatprep.subr.mxu0 0.0
    %2567 = vmatpush2.xpose.msra.mxu0 0.0
    %2568 = vmatprep.subr.mxu0 0.0
    %2569 = vmatpush2.xpose.msra.mxu0 0.0
    %2570 = vmatprep.subr.mxu0 0.0
    %2571 = vmatpush2.xpose.msra.mxu0 0.0
    %2572 = vmatprep.subr.mxu0 0.0
    %2573 = vmatpush2.xpose.msra.mxu0 0.0
    %2574 = vmatprep.subr.mxu0 0.0
    %2575 = vmatpush2.xpose.msra.mxu0 0.0
    %2576 = vmatprep.subr.mxu0 0.0
    %2577 = vmatpush2.xpose.msra.mxu0 0.0
    %2578 = vmatprep.subr.mxu0 0.0
    %2579 = vmatpush2.xpose.msra.mxu0 0.0
    %2580 = vmatprep.subr.mxu0 0.0
    %2581 = vmatpush2.xpose.msra.mxu0 0.0
    %2582 = vmatprep.subr.mxu0 0.0
    %2583 = vmatpush2.xpose.msra.mxu0 0.0
    %2584 = vmatprep.subr.mxu0 0.0
    %2585 = vmatpush2.xpose.msra.mxu0 0.0
    %2586 = vmatprep.subr.mxu0 0.0
    %2587 = vmatpush2.xpose.msra.mxu0 0.0
    %2588 = vmatprep.subr.mxu0 0.0
    %2589 = vmatpush2.xpose.msra.mxu0 0.0
    %2590 = vmatprep.subr.mxu0 0.0
    %2591 = vmatpush2.xpose.msra.mxu0 0.0
    %2592 = vmatprep.subr.mxu0 0.0
    %2593 = vmatpush2.xpose.msra.mxu0 0.0
    %2594 = vmatprep.subr.mxu0 0.0
    %2595 = vmatpush2.xpose.msra.mxu0 0.0
    %2596 = vmatprep.mubr.f32.mxu0 0.0
    %2597 = vmatmul.mubr.f32.gmra.mxu0 %v2528
    %v2598 = vpop.f32.mrf.mxu0
    %v2599 = vadd.f32 0.0, %v2598
    %v2600 = vpop.f32.mrf.mxu0
    %2601 = vdwg.mxu0
    %2602 = vrot.lane.b32.xlu0 %v2189, 120
    %v2603 = vpop.permute.xlu0 %2602
    %2604 = vrot.lane.b32.xlu0 %v2189, 88
    %v2605 = vpop.permute.xlu0 %2604
    %v2606 = vsel %vm335, %v2603, 0
    %v2608 = vsel %vm335, %v2605, 0
    %2610 = vmatprep.subr.mxu0 0.0
    %2611 = vmatpush1.xpose.msra.mxu0 0.0
    %2612 = vmatprep.subr.mxu0 0.0
    %2613 = vmatpush1.xpose.msra.mxu0 0.0
    %2614 = vmatprep.subr.mxu0 0.0
    %2615 = vmatpush1.xpose.msra.mxu0 0.0
    %2616 = vmatprep.subr.mxu0 0.0
    %2617 = vmatpush1.xpose.msra.mxu0 0.0
    %2618 = vmatprep.subr.mxu0 0.0
    %2619 = vmatpush1.xpose.msra.mxu0 0.0
    %2620 = vmatprep.subr.mxu0 0.0
    %2621 = vmatpush1.xpose.msra.mxu0 0.0
    %2622 = vmatprep.subr.mxu0 0.0
    %2623 = vmatpush1.xpose.msra.mxu0 0.0
    %2624 = vmatprep.subr.mxu0 0.0
    %2625 = vmatpush1.xpose.msra.mxu0 0.0
    %2626 = vmatprep.subr.mxu0 0.0
    %2627 = vmatpush1.xpose.msra.mxu0 0.0
    %2628 = vmatprep.subr.mxu0 0.0
    %2629 = vmatpush1.xpose.msra.mxu0 0.0
    %2630 = vmatprep.subr.mxu0 0.0
    %2631 = vmatpush1.xpose.msra.mxu0 0.0
    %2632 = vmatprep.subr.mxu0 0.0
    %2633 = vmatpush1.xpose.msra.mxu0 0.0
    %2634 = vmatprep.subr.mxu0 0.0
    %2635 = vmatpush1.xpose.msra.mxu0 0.0
    %2636 = vmatprep.subr.mxu0 0.0
    %2637 = vmatpush1.xpose.msra.mxu0 0.0
    %2638 = vmatprep.subr.mxu0 0.0
    %2639 = vmatpush1.xpose.msra.mxu0 0.0
    %2640 = vmatprep.subr.mxu0 0.0
    %2641 = vmatpush1.xpose.msra.mxu0 %v2608
    %2642 = vmatprep.subr.mxu0 0.0
    %2643 = vmatpush2.xpose.msra.mxu0 0.0
    %2644 = vmatprep.subr.mxu0 0.0
    %2645 = vmatpush2.xpose.msra.mxu0 0.0
    %2646 = vmatprep.subr.mxu0 0.0
    %2647 = vmatpush2.xpose.msra.mxu0 0.0
    %2648 = vmatprep.subr.mxu0 0.0
    %2649 = vmatpush2.xpose.msra.mxu0 0.0
    %2650 = vmatprep.subr.mxu0 0.0
    %2651 = vmatpush2.xpose.msra.mxu0 0.0
    %2652 = vmatprep.subr.mxu0 0.0
    %2653 = vmatpush2.xpose.msra.mxu0 0.0
    %2654 = vmatprep.subr.mxu0 0.0
    %2655 = vmatpush2.xpose.msra.mxu0 0.0
    %2656 = vmatprep.subr.mxu0 0.0
    %2657 = vmatpush2.xpose.msra.mxu0 0.0
    %2658 = vmatprep.subr.mxu0 0.0
    %2659 = vmatpush2.xpose.msra.mxu0 0.0
    %2660 = vmatprep.subr.mxu0 0.0
    %2661 = vmatpush2.xpose.msra.mxu0 0.0
    %2662 = vmatprep.subr.mxu0 0.0
    %2663 = vmatpush2.xpose.msra.mxu0 0.0
    %2664 = vmatprep.subr.mxu0 0.0
    %2665 = vmatpush2.xpose.msra.mxu0 0.0
    %2666 = vmatprep.subr.mxu0 0.0
    %2667 = vmatpush2.xpose.msra.mxu0 0.0
    %2668 = vmatprep.subr.mxu0 0.0
    %2669 = vmatpush2.xpose.msra.mxu0 0.0
    %2670 = vmatprep.subr.mxu0 0.0
    %2671 = vmatpush2.xpose.msra.mxu0 0.0
    %2672 = vmatprep.subr.mxu0 0.0
    %2673 = vmatpush2.xpose.msra.mxu0 0.0
    %2674 = vmatprep.mubr.f32.mxu0 0.0
    %2675 = vmatmul.mubr.f32.gmra.mxu0 %v2606
    %v2676 = vpop.f32.mrf.mxu0
    %v2677 = vadd.f32 0.0, %v2676
    %v2678 = vpop.f32.mrf.mxu0
    %2679 = vdwg.mxu0
    %v2680 = vmul.f32 %v2599, 0.35355338
    %v2681 = vmul.f32 %v2677, 0.35355338
    %v2682 = vadd.f32 %v2680, %v492
    %v2683 = vadd.f32 %v2681, %v496
    %v2684 = vsel %vm335, %v2682, -inf
    %2685 = vmax.xlane.f32.xlu0 %v2684
    %v2686 = vpop.xlane.xlu0 %2685
    %v2687 = vsel %vm335, %v2683, -inf
    %2688 = vmax.xlane.f32.xlu0 %v2687
    %v2689 = vpop.xlane.xlu0 %2688
    %v2690 = vsub.f32 %v2682, %v2686
    %v2691 = vsub.f32 %v2683, %v2689
    %v2692 = vmul.f32 %v2690, 1.442695
    %v2693 = vpow.pop %v2692
    %v2694 = vmul.f32 %v2691, 1.442695
    %v2695 = vpow.pop %v2694
    %v2696 = vsel %vm335, %v2693, 0.0
    %2697 = vadd.xlane.f32.xlu0 %v2696
    %v2698 = vpop.xlane.xlu0 %2697
    %v2699 = vsel %vm335, %v2695, 0.0
    %2700 = vadd.xlane.f32.xlu0 %v2699
    %v2701 = vpop.xlane.xlu0 %2700
    %v2702 = vrcp.pop %v2698
    %v2703 = vmul.f32 %v2693, %v2702
    %v2704 = vrcp.pop %v2701
    %v2705 = vmul.f32 %v2695, %v2704
    %2706 = vrot.lane.b32.xlu0 %v2184, 56
    %v2707 = vpop.permute.xlu0 %2706
    %v2710 = vsel %vm335, %v2703, 0
    %2712 = vmatprep.subr.mxu0 0.0
    %2713 = vmatpush1.msra.mxu0 0.0
    %2714 = vmatprep.subr.mxu0 0.0
    %2715 = vmatpush1.msra.mxu0 0.0
    %2716 = vmatprep.subr.mxu0 0.0
    %2717 = vmatpush1.msra.mxu0 0.0
    %2718 = vmatprep.subr.mxu0 0.0
    %2719 = vmatpush1.msra.mxu0 0.0
    %2720 = vmatprep.subr.mxu0 0.0
    %2721 = vmatpush1.msra.mxu0 0.0
    %2722 = vmatprep.subr.mxu0 0.0
    %2723 = vmatpush1.msra.mxu0 0.0
    %2724 = vmatprep.subr.mxu0 0.0
    %2725 = vmatpush1.msra.mxu0 0.0
    %2726 = vmatprep.subr.mxu0 0.0
    %2727 = vmatpush1.msra.mxu0 0.0
    %2728 = vmatprep.subr.mxu0 0.0
    %2729 = vmatpush1.msra.mxu0 0.0
    %2730 = vmatprep.subr.mxu0 0.0
    %2731 = vmatpush1.msra.mxu0 0.0
    %2732 = vmatprep.subr.mxu0 0.0
    %2733 = vmatpush1.msra.mxu0 0.0
    %2734 = vmatprep.subr.mxu0 0.0
    %2735 = vmatpush1.msra.mxu0 0.0
    %2736 = vmatprep.subr.mxu0 0.0
    %2737 = vmatpush1.msra.mxu0 0.0
    %2738 = vmatprep.subr.mxu0 0.0
    %2739 = vmatpush1.msra.mxu0 0.0
    %2740 = vmatprep.subr.mxu0 0.0
    %2741 = vmatpush1.msra.mxu0 0.0
    %2742 = vmatprep.subr.mxu0 0.0
    %2743 = vmatpush1.msra.mxu0 %v2707
    %2744 = vmatprep.subr.mxu0 0.0
    %2745 = vmatpush2.msra.mxu0 0.0
    %2746 = vmatprep.subr.mxu0 0.0
    %2747 = vmatpush2.msra.mxu0 0.0
    %2748 = vmatprep.subr.mxu0 0.0
    %2749 = vmatpush2.msra.mxu0 0.0
    %2750 = vmatprep.subr.mxu0 0.0
    %2751 = vmatpush2.msra.mxu0 0.0
    %2752 = vmatprep.subr.mxu0 0.0
    %2753 = vmatpush2.msra.mxu0 0.0
    %2754 = vmatprep.subr.mxu0 0.0
    %2755 = vmatpush2.msra.mxu0 0.0
    %2756 = vmatprep.subr.mxu0 0.0
    %2757 = vmatpush2.msra.mxu0 0.0
    %2758 = vmatprep.subr.mxu0 0.0
    %2759 = vmatpush2.msra.mxu0 0.0
    %2760 = vmatprep.subr.mxu0 0.0
    %2761 = vmatpush2.msra.mxu0 0.0
    %2762 = vmatprep.subr.mxu0 0.0
    %2763 = vmatpush2.msra.mxu0 0.0
    %2764 = vmatprep.subr.mxu0 0.0
    %2765 = vmatpush2.msra.mxu0 0.0
    %2766 = vmatprep.subr.mxu0 0.0
    %2767 = vmatpush2.msra.mxu0 0.0
    %2768 = vmatprep.subr.mxu0 0.0
    %2769 = vmatpush2.msra.mxu0 0.0
    %2770 = vmatprep.subr.mxu0 0.0
    %2771 = vmatpush2.msra.mxu0 0.0
    %2772 = vmatprep.subr.mxu0 0.0
    %2773 = vmatpush2.msra.mxu0 0.0
    %2774 = vmatprep.subr.mxu0 0.0
    %2775 = vmatpush2.msra.mxu0 0.0
    %2776 = vmatprep.mubr.f32.mxu0 0.0
    %2777 = vmatmul.mubr.f32.gmra.mxu0 %v2710
    %v2778 = vpop.f32.mrf.mxu0
    %v2779 = vadd.f32 0.0, %v2778
    %v2780 = vpop.f32.mrf.mxu0
    %2781 = vdwg.mxu0
    %2782 = vrot.lane.b32.xlu0 %v2189, 56
    %v2783 = vpop.permute.xlu0 %2782
    %v2786 = vsel %vm335, %v2705, 0
    %2788 = vmatprep.subr.mxu0 0.0
    %2789 = vmatpush1.msra.mxu0 0.0
    %2790 = vmatprep.subr.mxu0 0.0
    %2791 = vmatpush1.msra.mxu0 0.0
    %2792 = vmatprep.subr.mxu0 0.0
    %2793 = vmatpush1.msra.mxu0 0.0
    %2794 = vmatprep.subr.mxu0 0.0
    %2795 = vmatpush1.msra.mxu0 0.0
    %2796 = vmatprep.subr.mxu0 0.0
    %2797 = vmatpush1.msra.mxu0 0.0
    %2798 = vmatprep.subr.mxu0 0.0
    %2799 = vmatpush1.msra.mxu0 0.0
    %2800 = vmatprep.subr.mxu0 0.0
    %2801 = vmatpush1.msra.mxu0 0.0
    %2802 = vmatprep.subr.mxu0 0.0
    %2803 = vmatpush1.msra.mxu0 0.0
    %2804 = vmatprep.subr.mxu0 0.0
    %2805 = vmatpush1.msra.mxu0 0.0
    %2806 = vmatprep.subr.mxu0 0.0
    %2807 = vmatpush1.msra.mxu0 0.0
    %2808 = vmatprep.subr.mxu0 0.0
    %2809 = vmatpush1.msra.mxu0 0.0
    %2810 = vmatprep.subr.mxu0 0.0
    %2811 = vmatpush1.msra.mxu0 0.0
    %2812 = vmatprep.subr.mxu0 0.0
    %2813 = vmatpush1.msra.mxu0 0.0
    %2814 = vmatprep.subr.mxu0 0.0
    %2815 = vmatpush1.msra.mxu0 0.0
    %2816 = vmatprep.subr.mxu0 0.0
    %2817 = vmatpush1.msra.mxu0 0.0
    %2818 = vmatprep.subr.mxu0 0.0
    %2819 = vmatpush1.msra.mxu0 %v2783
    %2820 = vmatprep.subr.mxu0 0.0
    %2821 = vmatpush2.msra.mxu0 0.0
    %2822 = vmatprep.subr.mxu0 0.0
    %2823 = vmatpush2.msra.mxu0 0.0
    %2824 = vmatprep.subr.mxu0 0.0
    %2825 = vmatpush2.msra.mxu0 0.0
    %2826 = vmatprep.subr.mxu0 0.0
    %2827 = vmatpush2.msra.mxu0 0.0
    %2828 = vmatprep.subr.mxu0 0.0
    %2829 = vmatpush2.msra.mxu0 0.0
    %2830 = vmatprep.subr.mxu0 0.0
    %2831 = vmatpush2.msra.mxu0 0.0
    %2832 = vmatprep.subr.mxu0 0.0
    %2833 = vmatpush2.msra.mxu0 0.0
    %2834 = vmatprep.subr.mxu0 0.0
    %2835 = vmatpush2.msra.mxu0 0.0
    %2836 = vmatprep.subr.mxu0 0.0
    %2837 = vmatpush2.msra.mxu0 0.0
    %2838 = vmatprep.subr.mxu0 0.0
    %2839 = vmatpush2.msra.mxu0 0.0
    %2840 = vmatprep.subr.mxu0 0.0
    %2841 = vmatpush2.msra.mxu0 0.0
    %2842 = vmatprep.subr.mxu0 0.0
    %2843 = vmatpush2.msra.mxu0 0.0
    %2844 = vmatprep.subr.mxu0 0.0
    %2845 = vmatpush2.msra.mxu0 0.0
    %2846 = vmatprep.subr.mxu0 0.0
    %2847 = vmatpush2.msra.mxu0 0.0
    %2848 = vmatprep.subr.mxu0 0.0
    %2849 = vmatpush2.msra.mxu0 0.0
    %2850 = vmatprep.subr.mxu0 0.0
    %2851 = vmatpush2.msra.mxu0 0.0
    %2852 = vmatprep.mubr.f32.mxu0 0.0
    %2853 = vmatmul.mubr.f32.gmra.mxu0 %v2786
    %v2854 = vpop.f32.mrf.mxu0
    %v2855 = vadd.f32 0.0, %v2854
    %v2856 = vpop.f32.mrf.mxu0
    %2857 = vdwg.mxu0
    %2858 = vrot.lane.b32.xlu0 %v2184, 112
    %v2859 = vpop.permute.xlu0 %2858
    %2860 = vrot.lane.b32.xlu0 %v2184, 80
    %v2861 = vpop.permute.xlu0 %2860
    %v2862 = vsel %vm335, %v2859, 0
    %v2864 = vsel %vm335, %v2861, 0
    %2866 = vmatprep.subr.mxu0 0.0
    %2867 = vmatpush1.xpose.msra.mxu0 0.0
    %2868 = vmatprep.subr.mxu0 0.0
    %2869 = vmatpush1.xpose.msra.mxu0 0.0
    %2870 = vmatprep.subr.mxu0 0.0
    %2871 = vmatpush1.xpose.msra.mxu0 0.0
    %2872 = vmatprep.subr.mxu0 0.0
    %2873 = vmatpush1.xpose.msra.mxu0 0.0
    %2874 = vmatprep.subr.mxu0 0.0
    %2875 = vmatpush1.xpose.msra.mxu0 0.0
    %2876 = vmatprep.subr.mxu0 0.0
    %2877 = vmatpush1.xpose.msra.mxu0 0.0
    %2878 = vmatprep.subr.mxu0 0.0
    %2879 = vmatpush1.xpose.msra.mxu0 0.0
    %2880 = vmatprep.subr.mxu0 0.0
    %2881 = vmatpush1.xpose.msra.mxu0 0.0
    %2882 = vmatprep.subr.mxu0 0.0
    %2883 = vmatpush1.xpose.msra.mxu0 0.0
    %2884 = vmatprep.subr.mxu0 0.0
    %2885 = vmatpush1.xpose.msra.mxu0 0.0
    %2886 = vmatprep.subr.mxu0 0.0
    %2887 = vmatpush1.xpose.msra.mxu0 0.0
    %2888 = vmatprep.subr.mxu0 0.0
    %2889 = vmatpush1.xpose.msra.mxu0 0.0
    %2890 = vmatprep.subr.mxu0 0.0
    %2891 = vmatpush1.xpose.msra.mxu0 0.0
    %2892 = vmatprep.subr.mxu0 0.0
    %2893 = vmatpush1.xpose.msra.mxu0 0.0
    %2894 = vmatprep.subr.mxu0 0.0
    %2895 = vmatpush1.xpose.msra.mxu0 0.0
    %2896 = vmatprep.subr.mxu0 0.0
    %2897 = vmatpush1.xpose.msra.mxu0 %v2864
    %2898 = vmatprep.subr.mxu0 0.0
    %2899 = vmatpush2.xpose.msra.mxu0 0.0
    %2900 = vmatprep.subr.mxu0 0.0
    %2901 = vmatpush2.xpose.msra.mxu0 0.0
    %2902 = vmatprep.subr.mxu0 0.0
    %2903 = vmatpush2.xpose.msra.mxu0 0.0
    %2904 = vmatprep.subr.mxu0 0.0
    %2905 = vmatpush2.xpose.msra.mxu0 0.0
    %2906 = vmatprep.subr.mxu0 0.0
    %2907 = vmatpush2.xpose.msra.mxu0 0.0
    %2908 = vmatprep.subr.mxu0 0.0
    %2909 = vmatpush2.xpose.msra.mxu0 0.0
    %2910 = vmatprep.subr.mxu0 0.0
    %2911 = vmatpush2.xpose.msra.mxu0 0.0
    %2912 = vmatprep.subr.mxu0 0.0
    %2913 = vmatpush2.xpose.msra.mxu0 0.0
    %2914 = vmatprep.subr.mxu0 0.0
    %2915 = vmatpush2.xpose.msra.mxu0 0.0
    %2916 = vmatprep.subr.mxu0 0.0
    %2917 = vmatpush2.xpose.msra.mxu0 0.0
    %2918 = vmatprep.subr.mxu0 0.0
    %2919 = vmatpush2.xpose.msra.mxu0 0.0
    %2920 = vmatprep.subr.mxu0 0.0
    %2921 = vmatpush2.xpose.msra.mxu0 0.0
    %2922 = vmatprep.subr.mxu0 0.0
    %2923 = vmatpush2.xpose.msra.mxu0 0.0
    %2924 = vmatprep.subr.mxu0 0.0
    %2925 = vmatpush2.xpose.msra.mxu0 0.0
    %2926 = vmatprep.subr.mxu0 0.0
    %2927 = vmatpush2.xpose.msra.mxu0 0.0
    %2928 = vmatprep.subr.mxu0 0.0
    %2929 = vmatpush2.xpose.msra.mxu0 0.0
    %2930 = vmatprep.mubr.f32.mxu0 0.0
    %2931 = vmatmul.mubr.f32.gmra.mxu0 %v2862
    %v2932 = vpop.f32.mrf.mxu0
    %v2933 = vadd.f32 0.0, %v2932
    %v2934 = vpop.f32.mrf.mxu0
    %2935 = vdwg.mxu0
    %2936 = vrot.lane.b32.xlu0 %v2189, 112
    %v2937 = vpop.permute.xlu0 %2936
    %2938 = vrot.lane.b32.xlu0 %v2189, 80
    %v2939 = vpop.permute.xlu0 %2938
    %v2940 = vsel %vm335, %v2937, 0
    %v2942 = vsel %vm335, %v2939, 0
    %2944 = vmatprep.subr.mxu0 0.0
    %2945 = vmatpush1.xpose.msra.mxu0 0.0
    %2946 = vmatprep.subr.mxu0 0.0
    %2947 = vmatpush1.xpose.msra.mxu0 0.0
    %2948 = vmatprep.subr.mxu0 0.0
    %2949 = vmatpush1.xpose.msra.mxu0 0.0
    %2950 = vmatprep.subr.mxu0 0.0
    %2951 = vmatpush1.xpose.msra.mxu0 0.0
    %2952 = vmatprep.subr.mxu0 0.0
    %2953 = vmatpush1.xpose.msra.mxu0 0.0
    %2954 = vmatprep.subr.mxu0 0.0
    %2955 = vmatpush1.xpose.msra.mxu0 0.0
    %2956 = vmatprep.subr.mxu0 0.0
    %2957 = vmatpush1.xpose.msra.mxu0 0.0
    %2958 = vmatprep.subr.mxu0 0.0
    %2959 = vmatpush1.xpose.msra.mxu0 0.0
    %2960 = vmatprep.subr.mxu0 0.0
    %2961 = vmatpush1.xpose.msra.mxu0 0.0
    %2962 = vmatprep.subr.mxu0 0.0
    %2963 = vmatpush1.xpose.msra.mxu0 0.0
    %2964 = vmatprep.subr.mxu0 0.0
    %2965 = vmatpush1.xpose.msra.mxu0 0.0
    %2966 = vmatprep.subr.mxu0 0.0
    %2967 = vmatpush1.xpose.msra.mxu0 0.0
    %2968 = vmatprep.subr.mxu0 0.0
    %2969 = vmatpush1.xpose.msra.mxu0 0.0
    %2970 = vmatprep.subr.mxu0 0.0
    %2971 = vmatpush1.xpose.msra.mxu0 0.0
    %2972 = vmatprep.subr.mxu0 0.0
    %2973 = vmatpush1.xpose.msra.mxu0 0.0
    %2974 = vmatprep.subr.mxu0 0.0
    %2975 = vmatpush1.xpose.msra.mxu0 %v2942
    %2976 = vmatprep.subr.mxu0 0.0
    %2977 = vmatpush2.xpose.msra.mxu0 0.0
    %2978 = vmatprep.subr.mxu0 0.0
    %2979 = vmatpush2.xpose.msra.mxu0 0.0
    %2980 = vmatprep.subr.mxu0 0.0
    %2981 = vmatpush2.xpose.msra.mxu0 0.0
    %2982 = vmatprep.subr.mxu0 0.0
    %2983 = vmatpush2.xpose.msra.mxu0 0.0
    %2984 = vmatprep.subr.mxu0 0.0
    %2985 = vmatpush2.xpose.msra.mxu0 0.0
    %2986 = vmatprep.subr.mxu0 0.0
    %2987 = vmatpush2.xpose.msra.mxu0 0.0
    %2988 = vmatprep.subr.mxu0 0.0
    %2989 = vmatpush2.xpose.msra.mxu0 0.0
    %2990 = vmatprep.subr.mxu0 0.0
    %2991 = vmatpush2.xpose.msra.mxu0 0.0
    %2992 = vmatprep.subr.mxu0 0.0
    %2993 = vmatpush2.xpose.msra.mxu0 0.0
    %2994 = vmatprep.subr.mxu0 0.0
    %2995 = vmatpush2.xpose.msra.mxu0 0.0
    %2996 = vmatprep.subr.mxu0 0.0
    %2997 = vmatpush2.xpose.msra.mxu0 0.0
    %2998 = vmatprep.subr.mxu0 0.0
    %2999 = vmatpush2.xpose.msra.mxu0 0.0
    %3000 = vmatprep.subr.mxu0 0.0
    %3001 = vmatpush2.xpose.msra.mxu0 0.0
    %3002 = vmatprep.subr.mxu0 0.0
    %3003 = vmatpush2.xpose.msra.mxu0 0.0
    %3004 = vmatprep.subr.mxu0 0.0
    %3005 = vmatpush2.xpose.msra.mxu0 0.0
    %3006 = vmatprep.subr.mxu0 0.0
    %3007 = vmatpush2.xpose.msra.mxu0 0.0
    %3008 = vmatprep.mubr.f32.mxu0 0.0
    %3009 = vmatmul.mubr.f32.gmra.mxu0 %v2940
    %v3010 = vpop.f32.mrf.mxu0
    %v3011 = vadd.f32 0.0, %v3010
    %v3012 = vpop.f32.mrf.mxu0
    %3013 = vdwg.mxu0
    %v3014 = vmul.f32 %v2933, 0.35355338
    %v3015 = vmul.f32 %v3011, 0.35355338
    %v3016 = vadd.f32 %v3014, %v492
    %v3017 = vadd.f32 %v3015, %v496
    %v3018 = vsel %vm335, %v3016, -inf
    %3019 = vmax.xlane.f32.xlu0 %v3018
    %v3020 = vpop.xlane.xlu0 %3019
    %v3021 = vsel %vm335, %v3017, -inf
    %3022 = vmax.xlane.f32.xlu0 %v3021
    %v3023 = vpop.xlane.xlu0 %3022
    %v3024 = vsub.f32 %v3016, %v3020
    %v3025 = vsub.f32 %v3017, %v3023
    %v3026 = vmul.f32 %v3024, 1.442695
    %v3027 = vpow.pop %v3026
    %v3028 = vmul.f32 %v3025, 1.442695
    %v3029 = vpow.pop %v3028
    %v3030 = vsel %vm335, %v3027, 0.0
    %3031 = vadd.xlane.f32.xlu0 %v3030
    %v3032 = vpop.xlane.xlu0 %3031
    %v3033 = vsel %vm335, %v3029, 0.0
    %3034 = vadd.xlane.f32.xlu0 %v3033
    %v3035 = vpop.xlane.xlu0 %3034
    %v3036 = vrcp.pop %v3032
    %v3037 = vmul.f32 %v3027, %v3036
    %v3038 = vrcp.pop %v3035
    %v3039 = vmul.f32 %v3029, %v3038
    %3040 = vrot.lane.b32.xlu0 %v2184, 48
    %v3041 = vpop.permute.xlu0 %3040
    %v3044 = vsel %vm335, %v3037, 0
    %3046 = vmatprep.subr.mxu0 0.0
    %3047 = vmatpush1.msra.mxu0 0.0
    %3048 = vmatprep.subr.mxu0 0.0
    %3049 = vmatpush1.msra.mxu0 0.0
    %3050 = vmatprep.subr.mxu0 0.0
    %3051 = vmatpush1.msra.mxu0 0.0
    %3052 = vmatprep.subr.mxu0 0.0
    %3053 = vmatpush1.msra.mxu0 0.0
    %3054 = vmatprep.subr.mxu0 0.0
    %3055 = vmatpush1.msra.mxu0 0.0
    %3056 = vmatprep.subr.mxu0 0.0
    %3057 = vmatpush1.msra.mxu0 0.0
    %3058 = vmatprep.subr.mxu0 0.0
    %3059 = vmatpush1.msra.mxu0 0.0
    %3060 = vmatprep.subr.mxu0 0.0
    %3061 = vmatpush1.msra.mxu0 0.0
    %3062 = vmatprep.subr.mxu0 0.0
    %3063 = vmatpush1.msra.mxu0 0.0
    %3064 = vmatprep.subr.mxu0 0.0
    %3065 = vmatpush1.msra.mxu0 0.0
    %3066 = vmatprep.subr.mxu0 0.0
    %3067 = vmatpush1.msra.mxu0 0.0
    %3068 = vmatprep.subr.mxu0 0.0
    %3069 = vmatpush1.msra.mxu0 0.0
    %3070 = vmatprep.subr.mxu0 0.0
    %3071 = vmatpush1.msra.mxu0 0.0
    %3072 = vmatprep.subr.mxu0 0.0
    %3073 = vmatpush1.msra.mxu0 0.0
    %3074 = vmatprep.subr.mxu0 0.0
    %3075 = vmatpush1.msra.mxu0 0.0
    %3076 = vmatprep.subr.mxu0 0.0
    %3077 = vmatpush1.msra.mxu0 %v3041
    %3078 = vmatprep.subr.mxu0 0.0
    %3079 = vmatpush2.msra.mxu0 0.0
    %3080 = vmatprep.subr.mxu0 0.0
    %3081 = vmatpush2.msra.mxu0 0.0
    %3082 = vmatprep.subr.mxu0 0.0
    %3083 = vmatpush2.msra.mxu0 0.0
    %3084 = vmatprep.subr.mxu0 0.0
    %3085 = vmatpush2.msra.mxu0 0.0
    %3086 = vmatprep.subr.mxu0 0.0
    %3087 = vmatpush2.msra.mxu0 0.0
    %3088 = vmatprep.subr.mxu0 0.0
    %3089 = vmatpush2.msra.mxu0 0.0
    %3090 = vmatprep.subr.mxu0 0.0
    %3091 = vmatpush2.msra.mxu0 0.0
    %3092 = vmatprep.subr.mxu0 0.0
    %3093 = vmatpush2.msra.mxu0 0.0
    %3094 = vmatprep.subr.mxu0 0.0
    %3095 = vmatpush2.msra.mxu0 0.0
    %3096 = vmatprep.subr.mxu0 0.0
    %3097 = vmatpush2.msra.mxu0 0.0
    %3098 = vmatprep.subr.mxu0 0.0
    %3099 = vmatpush2.msra.mxu0 0.0
    %3100 = vmatprep.subr.mxu0 0.0
    %3101 = vmatpush2.msra.mxu0 0.0
    %3102 = vmatprep.subr.mxu0 0.0
    %3103 = vmatpush2.msra.mxu0 0.0
    %3104 = vmatprep.subr.mxu0 0.0
    %3105 = vmatpush2.msra.mxu0 0.0
    %3106 = vmatprep.subr.mxu0 0.0
    %3107 = vmatpush2.msra.mxu0 0.0
    %3108 = vmatprep.subr.mxu0 0.0
    %3109 = vmatpush2.msra.mxu0 0.0
    %3110 = vmatprep.mubr.f32.mxu0 0.0
    %3111 = vmatmul.mubr.f32.gmra.mxu0 %v3044
    %v3112 = vpop.f32.mrf.mxu0
    %v3113 = vadd.f32 0.0, %v3112
    %v3114 = vpop.f32.mrf.mxu0
    %3115 = vdwg.mxu0
    %3116 = vrot.lane.b32.xlu0 %v2189, 48
    %v3117 = vpop.permute.xlu0 %3116
    %v3120 = vsel %vm335, %v3039, 0
    %3122 = vmatprep.subr.mxu0 0.0
    %3123 = vmatpush1.msra.mxu0 0.0
    %3124 = vmatprep.subr.mxu0 0.0
    %3125 = vmatpush1.msra.mxu0 0.0
    %3126 = vmatprep.subr.mxu0 0.0
    %3127 = vmatpush1.msra.mxu0 0.0
    %3128 = vmatprep.subr.mxu0 0.0
    %3129 = vmatpush1.msra.mxu0 0.0
    %3130 = vmatprep.subr.mxu0 0.0
    %3131 = vmatpush1.msra.mxu0 0.0
    %3132 = vmatprep.subr.mxu0 0.0
    %3133 = vmatpush1.msra.mxu0 0.0
    %3134 = vmatprep.subr.mxu0 0.0
    %3135 = vmatpush1.msra.mxu0 0.0
    %3136 = vmatprep.subr.mxu0 0.0
    %3137 = vmatpush1.msra.mxu0 0.0
    %3138 = vmatprep.subr.mxu0 0.0
    %3139 = vmatpush1.msra.mxu0 0.0
    %3140 = vmatprep.subr.mxu0 0.0
    %3141 = vmatpush1.msra.mxu0 0.0
    %3142 = vmatprep.subr.mxu0 0.0
    %3143 = vmatpush1.msra.mxu0 0.0
    %3144 = vmatprep.subr.mxu0 0.0
    %3145 = vmatpush1.msra.mxu0 0.0
    %3146 = vmatprep.subr.mxu0 0.0
    %3147 = vmatpush1.msra.mxu0 0.0
    %3148 = vmatprep.subr.mxu0 0.0
    %3149 = vmatpush1.msra.mxu0 0.0
    %3150 = vmatprep.subr.mxu0 0.0
    %3151 = vmatpush1.msra.mxu0 0.0
    %3152 = vmatprep.subr.mxu0 0.0
    %3153 = vmatpush1.msra.mxu0 %v3117
    %3154 = vmatprep.subr.mxu0 0.0
    %3155 = vmatpush2.msra.mxu0 0.0
    %3156 = vmatprep.subr.mxu0 0.0
    %3157 = vmatpush2.msra.mxu0 0.0
    %3158 = vmatprep.subr.mxu0 0.0
    %3159 = vmatpush2.msra.mxu0 0.0
    %3160 = vmatprep.subr.mxu0 0.0
    %3161 = vmatpush2.msra.mxu0 0.0
    %3162 = vmatprep.subr.mxu0 0.0
    %3163 = vmatpush2.msra.mxu0 0.0
    %3164 = vmatprep.subr.mxu0 0.0
    %3165 = vmatpush2.msra.mxu0 0.0
    %3166 = vmatprep.subr.mxu0 0.0
    %3167 = vmatpush2.msra.mxu0 0.0
    %3168 = vmatprep.subr.mxu0 0.0
    %3169 = vmatpush2.msra.mxu0 0.0
    %3170 = vmatprep.subr.mxu0 0.0
    %3171 = vmatpush2.msra.mxu0 0.0
    %3172 = vmatprep.subr.mxu0 0.0
    %3173 = vmatpush2.msra.mxu0 0.0
    %3174 = vmatprep.subr.mxu0 0.0
    %3175 = vmatpush2.msra.mxu0 0.0
    %3176 = vmatprep.subr.mxu0 0.0
    %3177 = vmatpush2.msra.mxu0 0.0
    %3178 = vmatprep.subr.mxu0 0.0
    %3179 = vmatpush2.msra.mxu0 0.0
    %3180 = vmatprep.subr.mxu0 0.0
    %3181 = vmatpush2.msra.mxu0 0.0
    %3182 = vmatprep.subr.mxu0 0.0
    %3183 = vmatpush2.msra.mxu0 0.0
    %3184 = vmatprep.subr.mxu0 0.0
    %3185 = vmatpush2.msra.mxu0 0.0
    %3186 = vmatprep.mubr.f32.mxu0 0.0
    %3187 = vmatmul.mubr.f32.gmra.mxu0 %v3120
    %v3188 = vpop.f32.mrf.mxu0
    %v3189 = vadd.f32 0.0, %v3188
    %v3190 = vpop.f32.mrf.mxu0
    %3191 = vdwg.mxu0
    %3192 = vrot.lane.b32.xlu0 %v2184, 104
    %v3193 = vpop.permute.xlu0 %3192
    %3194 = vrot.lane.b32.xlu0 %v2184, 72
    %v3195 = vpop.permute.xlu0 %3194
    %v3196 = vsel %vm335, %v3193, 0
    %v3198 = vsel %vm335, %v3195, 0
    %3200 = vmatprep.subr.mxu0 0.0
    %3201 = vmatpush1.xpose.msra.mxu0 0.0
    %3202 = vmatprep.subr.mxu0 0.0
    %3203 = vmatpush1.xpose.msra.mxu0 0.0
    %3204 = vmatprep.subr.mxu0 0.0
    %3205 = vmatpush1.xpose.msra.mxu0 0.0
    %3206 = vmatprep.subr.mxu0 0.0
    %3207 = vmatpush1.xpose.msra.mxu0 0.0
    %3208 = vmatprep.subr.mxu0 0.0
    %3209 = vmatpush1.xpose.msra.mxu0 0.0
    %3210 = vmatprep.subr.mxu0 0.0
    %3211 = vmatpush1.xpose.msra.mxu0 0.0
    %3212 = vmatprep.subr.mxu0 0.0
    %3213 = vmatpush1.xpose.msra.mxu0 0.0
    %3214 = vmatprep.subr.mxu0 0.0
    %3215 = vmatpush1.xpose.msra.mxu0 0.0
    %3216 = vmatprep.subr.mxu0 0.0
    %3217 = vmatpush1.xpose.msra.mxu0 0.0
    %3218 = vmatprep.subr.mxu0 0.0
    %3219 = vmatpush1.xpose.msra.mxu0 0.0
    %3220 = vmatprep.subr.mxu0 0.0
    %3221 = vmatpush1.xpose.msra.mxu0 0.0
    %3222 = vmatprep.subr.mxu0 0.0
    %3223 = vmatpush1.xpose.msra.mxu0 0.0
    %3224 = vmatprep.subr.mxu0 0.0
    %3225 = vmatpush1.xpose.msra.mxu0 0.0
    %3226 = vmatprep.subr.mxu0 0.0
    %3227 = vmatpush1.xpose.msra.mxu0 0.0
    %3228 = vmatprep.subr.mxu0 0.0
    %3229 = vmatpush1.xpose.msra.mxu0 0.0
    %3230 = vmatprep.subr.mxu0 0.0
    %3231 = vmatpush1.xpose.msra.mxu0 %v3198
    %3232 = vmatprep.subr.mxu0 0.0
    %3233 = vmatpush2.xpose.msra.mxu0 0.0
    %3234 = vmatprep.subr.mxu0 0.0
    %3235 = vmatpush2.xpose.msra.mxu0 0.0
    %3236 = vmatprep.subr.mxu0 0.0
    %3237 = vmatpush2.xpose.msra.mxu0 0.0
    %3238 = vmatprep.subr.mxu0 0.0
    %3239 = vmatpush2.xpose.msra.mxu0 0.0
    %3240 = vmatprep.subr.mxu0 0.0
    %3241 = vmatpush2.xpose.msra.mxu0 0.0
    %3242 = vmatprep.subr.mxu0 0.0
    %3243 = vmatpush2.xpose.msra.mxu0 0.0
    %3244 = vmatprep.subr.mxu0 0.0
    %3245 = vmatpush2.xpose.msra.mxu0 0.0
    %3246 = vmatprep.subr.mxu0 0.0
    %3247 = vmatpush2.xpose.msra.mxu0 0.0
    %3248 = vmatprep.subr.mxu0 0.0
    %3249 = vmatpush2.xpose.msra.mxu0 0.0
    %3250 = vmatprep.subr.mxu0 0.0
    %3251 = vmatpush2.xpose.msra.mxu0 0.0
    %3252 = vmatprep.subr.mxu0 0.0
    %3253 = vmatpush2.xpose.msra.mxu0 0.0
    %3254 = vmatprep.subr.mxu0 0.0
    %3255 = vmatpush2.xpose.msra.mxu0 0.0
    %3256 = vmatprep.subr.mxu0 0.0
    %3257 = vmatpush2.xpose.msra.mxu0 0.0
    %3258 = vmatprep.subr.mxu0 0.0
    %3259 = vmatpush2.xpose.msra.mxu0 0.0
    %3260 = vmatprep.subr.mxu0 0.0
    %3261 = vmatpush2.xpose.msra.mxu0 0.0
    %3262 = vmatprep.subr.mxu0 0.0
    %3263 = vmatpush2.xpose.msra.mxu0 0.0
    %3264 = vmatprep.mubr.f32.mxu0 0.0
    %3265 = vmatmul.mubr.f32.gmra.mxu0 %v3196
    %v3266 = vpop.f32.mrf.mxu0
    %v3267 = vadd.f32 0.0, %v3266
    %v3268 = vpop.f32.mrf.mxu0
    %3269 = vdwg.mxu0
    %3270 = vrot.lane.b32.xlu0 %v2189, 104
    %v3271 = vpop.permute.xlu0 %3270
    %3272 = vrot.lane.b32.xlu0 %v2189, 72
    %v3273 = vpop.permute.xlu0 %3272
    %v3274 = vsel %vm335, %v3271, 0
    %v3276 = vsel %vm335, %v3273, 0
    %3278 = vmatprep.subr.mxu0 0.0
    %3279 = vmatpush1.xpose.msra.mxu0 0.0
    %3280 = vmatprep.subr.mxu0 0.0
    %3281 = vmatpush1.xpose.msra.mxu0 0.0
    %3282 = vmatprep.subr.mxu0 0.0
    %3283 = vmatpush1.xpose.msra.mxu0 0.0
    %3284 = vmatprep.subr.mxu0 0.0
    %3285 = vmatpush1.xpose.msra.mxu0 0.0
    %3286 = vmatprep.subr.mxu0 0.0
    %3287 = vmatpush1.xpose.msra.mxu0 0.0
    %3288 = vmatprep.subr.mxu0 0.0
    %3289 = vmatpush1.xpose.msra.mxu0 0.0
    %3290 = vmatprep.subr.mxu0 0.0
    %3291 = vmatpush1.xpose.msra.mxu0 0.0
    %3292 = vmatprep.subr.mxu0 0.0
    %3293 = vmatpush1.xpose.msra.mxu0 0.0
    %3294 = vmatprep.subr.mxu0 0.0
    %3295 = vmatpush1.xpose.msra.mxu0 0.0
    %3296 = vmatprep.subr.mxu0 0.0
    %3297 = vmatpush1.xpose.msra.mxu0 0.0
    %3298 = vmatprep.subr.mxu0 0.0
    %3299 = vmatpush1.xpose.msra.mxu0 0.0
    %3300 = vmatprep.subr.mxu0 0.0
    %3301 = vmatpush1.xpose.msra.mxu0 0.0
    %3302 = vmatprep.subr.mxu0 0.0
    %3303 = vmatpush1.xpose.msra.mxu0 0.0
    %3304 = vmatprep.subr.mxu0 0.0
    %3305 = vmatpush1.xpose.msra.mxu0 0.0
    %3306 = vmatprep.subr.mxu0 0.0
    %3307 = vmatpush1.xpose.msra.mxu0 0.0
    %3308 = vmatprep.subr.mxu0 0.0
    %3309 = vmatpush1.xpose.msra.mxu0 %v3276
    %3310 = vmatprep.subr.mxu0 0.0
    %3311 = vmatpush2.xpose.msra.mxu0 0.0
    %3312 = vmatprep.subr.mxu0 0.0
    %3313 = vmatpush2.xpose.msra.mxu0 0.0
    %3314 = vmatprep.subr.mxu0 0.0
    %3315 = vmatpush2.xpose.msra.mxu0 0.0
    %3316 = vmatprep.subr.mxu0 0.0
    %3317 = vmatpush2.xpose.msra.mxu0 0.0
    %3318 = vmatprep.subr.mxu0 0.0
    %3319 = vmatpush2.xpose.msra.mxu0 0.0
    %3320 = vmatprep.subr.mxu0 0.0
    %3321 = vmatpush2.xpose.msra.mxu0 0.0
    %3322 = vmatprep.subr.mxu0 0.0
    %3323 = vmatpush2.xpose.msra.mxu0 0.0
    %3324 = vmatprep.subr.mxu0 0.0
    %3325 = vmatpush2.xpose.msra.mxu0 0.0
    %3326 = vmatprep.subr.mxu0 0.0
    %3327 = vmatpush2.xpose.msra.mxu0 0.0
    %3328 = vmatprep.subr.mxu0 0.0
    %3329 = vmatpush2.xpose.msra.mxu0 0.0
    %3330 = vmatprep.subr.mxu0 0.0
    %3331 = vmatpush2.xpose.msra.mxu0 0.0
    %3332 = vmatprep.subr.mxu0 0.0
    %3333 = vmatpush2.xpose.msra.mxu0 0.0
    %3334 = vmatprep.subr.mxu0 0.0
    %3335 = vmatpush2.xpose.msra.mxu0 0.0
    %3336 = vmatprep.subr.mxu0 0.0
    %3337 = vmatpush2.xpose.msra.mxu0 0.0
    %3338 = vmatprep.subr.mxu0 0.0
    %3339 = vmatpush2.xpose.msra.mxu0 0.0
    %3340 = vmatprep.subr.mxu0 0.0
    %3341 = vmatpush2.xpose.msra.mxu0 0.0
    %3342 = vmatprep.mubr.f32.mxu0 0.0
    %3343 = vmatmul.mubr.f32.gmra.mxu0 %v3274
    %v3344 = vpop.f32.mrf.mxu0
    %v3345 = vadd.f32 0.0, %v3344
    %v3346 = vpop.f32.mrf.mxu0
    %3347 = vdwg.mxu0
    %v3348 = vmul.f32 %v3267, 0.35355338
    %v3349 = vmul.f32 %v3345, 0.35355338
    %v3350 = vadd.f32 %v3348, %v492
    %v3351 = vadd.f32 %v3349, %v496
    %v3352 = vsel %vm335, %v3350, -inf
    %3353 = vmax.xlane.f32.xlu0 %v3352
    %v3354 = vpop.xlane.xlu0 %3353
    %v3355 = vsel %vm335, %v3351, -inf
    %3356 = vmax.xlane.f32.xlu0 %v3355
    %v3357 = vpop.xlane.xlu0 %3356
    %v3358 = vsub.f32 %v3350, %v3354
    %v3359 = vsub.f32 %v3351, %v3357
    %v3360 = vmul.f32 %v3358, 1.442695
    %v3361 = vpow.pop %v3360
    %v3362 = vmul.f32 %v3359, 1.442695
    %v3363 = vpow.pop %v3362
    %v3364 = vsel %vm335, %v3361, 0.0
    %3365 = vadd.xlane.f32.xlu0 %v3364
    %v3366 = vpop.xlane.xlu0 %3365
    %v3367 = vsel %vm335, %v3363, 0.0
    %3368 = vadd.xlane.f32.xlu0 %v3367
    %v3369 = vpop.xlane.xlu0 %3368
    %v3370 = vrcp.pop %v3366
    %v3371 = vmul.f32 %v3361, %v3370
    %v3372 = vrcp.pop %v3369
    %v3373 = vmul.f32 %v3363, %v3372
    %3374 = vrot.lane.b32.xlu0 %v2184, 40
    %v3375 = vpop.permute.xlu0 %3374
    %v3378 = vsel %vm335, %v3371, 0
    %3380 = vmatprep.subr.mxu0 0.0
    %3381 = vmatpush1.msra.mxu0 0.0
    %3382 = vmatprep.subr.mxu0 0.0
    %3383 = vmatpush1.msra.mxu0 0.0
    %3384 = vmatprep.subr.mxu0 0.0
    %3385 = vmatpush1.msra.mxu0 0.0
    %3386 = vmatprep.subr.mxu0 0.0
    %3387 = vmatpush1.msra.mxu0 0.0
    %3388 = vmatprep.subr.mxu0 0.0
    %3389 = vmatpush1.msra.mxu0 0.0
    %3390 = vmatprep.subr.mxu0 0.0
    %3391 = vmatpush1.msra.mxu0 0.0
    %3392 = vmatprep.subr.mxu0 0.0
    %3393 = vmatpush1.msra.mxu0 0.0
    %3394 = vmatprep.subr.mxu0 0.0
    %3395 = vmatpush1.msra.mxu0 0.0
    %3396 = vmatprep.subr.mxu0 0.0
    %3397 = vmatpush1.msra.mxu0 0.0
    %3398 = vmatprep.subr.mxu0 0.0
    %3399 = vmatpush1.msra.mxu0 0.0
    %3400 = vmatprep.subr.mxu0 0.0
    %3401 = vmatpush1.msra.mxu0 0.0
    %3402 = vmatprep.subr.mxu0 0.0
    %3403 = vmatpush1.msra.mxu0 0.0
    %3404 = vmatprep.subr.mxu0 0.0
    %3405 = vmatpush1.msra.mxu0 0.0
    %3406 = vmatprep.subr.mxu0 0.0
    %3407 = vmatpush1.msra.mxu0 0.0
    %3408 = vmatprep.subr.mxu0 0.0
    %3409 = vmatpush1.msra.mxu0 0.0
    %3410 = vmatprep.subr.mxu0 0.0
    %3411 = vmatpush1.msra.mxu0 %v3375
    %3412 = vmatprep.subr.mxu0 0.0
    %3413 = vmatpush2.msra.mxu0 0.0
    %3414 = vmatprep.subr.mxu0 0.0
    %3415 = vmatpush2.msra.mxu0 0.0
    %3416 = vmatprep.subr.mxu0 0.0
    %3417 = vmatpush2.msra.mxu0 0.0
    %3418 = vmatprep.subr.mxu0 0.0
    %3419 = vmatpush2.msra.mxu0 0.0
    %3420 = vmatprep.subr.mxu0 0.0
    %3421 = vmatpush2.msra.mxu0 0.0
    %3422 = vmatprep.subr.mxu0 0.0
    %3423 = vmatpush2.msra.mxu0 0.0
    %3424 = vmatprep.subr.mxu0 0.0
    %3425 = vmatpush2.msra.mxu0 0.0
    %3426 = vmatprep.subr.mxu0 0.0
    %3427 = vmatpush2.msra.mxu0 0.0
    %3428 = vmatprep.subr.mxu0 0.0
    %3429 = vmatpush2.msra.mxu0 0.0
    %3430 = vmatprep.subr.mxu0 0.0
    %3431 = vmatpush2.msra.mxu0 0.0
    %3432 = vmatprep.subr.mxu0 0.0
    %3433 = vmatpush2.msra.mxu0 0.0
    %3434 = vmatprep.subr.mxu0 0.0
    %3435 = vmatpush2.msra.mxu0 0.0
    %3436 = vmatprep.subr.mxu0 0.0
    %3437 = vmatpush2.msra.mxu0 0.0
    %3438 = vmatprep.subr.mxu0 0.0
    %3439 = vmatpush2.msra.mxu0 0.0
    %3440 = vmatprep.subr.mxu0 0.0
    %3441 = vmatpush2.msra.mxu0 0.0
    %3442 = vmatprep.subr.mxu0 0.0
    %3443 = vmatpush2.msra.mxu0 0.0
    %3444 = vmatprep.mubr.f32.mxu0 0.0
    %3445 = vmatmul.mubr.f32.gmra.mxu0 %v3378
    %v3446 = vpop.f32.mrf.mxu0
    %v3447 = vadd.f32 0.0, %v3446
    %v3448 = vpop.f32.mrf.mxu0
    %3449 = vdwg.mxu0
    %3450 = vrot.lane.b32.xlu0 %v2189, 40
    %v3451 = vpop.permute.xlu0 %3450
    %v3454 = vsel %vm335, %v3373, 0
    %3456 = vmatprep.subr.mxu0 0.0
    %3457 = vmatpush1.msra.mxu0 0.0
    %3458 = vmatprep.subr.mxu0 0.0
    %3459 = vmatpush1.msra.mxu0 0.0
    %3460 = vmatprep.subr.mxu0 0.0
    %3461 = vmatpush1.msra.mxu0 0.0
    %3462 = vmatprep.subr.mxu0 0.0
    %3463 = vmatpush1.msra.mxu0 0.0
    %3464 = vmatprep.subr.mxu0 0.0
    %3465 = vmatpush1.msra.mxu0 0.0
    %3466 = vmatprep.subr.mxu0 0.0
    %3467 = vmatpush1.msra.mxu0 0.0
    %3468 = vmatprep.subr.mxu0 0.0
    %3469 = vmatpush1.msra.mxu0 0.0
    %3470 = vmatprep.subr.mxu0 0.0
    %3471 = vmatpush1.msra.mxu0 0.0
    %3472 = vmatprep.subr.mxu0 0.0
    %3473 = vmatpush1.msra.mxu0 0.0
    %3474 = vmatprep.subr.mxu0 0.0
    %3475 = vmatpush1.msra.mxu0 0.0
    %3476 = vmatprep.subr.mxu0 0.0
    %3477 = vmatpush1.msra.mxu0 0.0
    %3478 = vmatprep.subr.mxu0 0.0
    %3479 = vmatpush1.msra.mxu0 0.0
    %3480 = vmatprep.subr.mxu0 0.0
    %3481 = vmatpush1.msra.mxu0 0.0
    %3482 = vmatprep.subr.mxu0 0.0
    %3483 = vmatpush1.msra.mxu0 0.0
    %3484 = vmatprep.subr.mxu0 0.0
    %3485 = vmatpush1.msra.mxu0 0.0
    %3486 = vmatprep.subr.mxu0 0.0
    %3487 = vmatpush1.msra.mxu0 %v3451
    %3488 = vmatprep.subr.mxu0 0.0
    %3489 = vmatpush2.msra.mxu0 0.0
    %3490 = vmatprep.subr.mxu0 0.0
    %3491 = vmatpush2.msra.mxu0 0.0
    %3492 = vmatprep.subr.mxu0 0.0
    %3493 = vmatpush2.msra.mxu0 0.0
    %3494 = vmatprep.subr.mxu0 0.0
    %3495 = vmatpush2.msra.mxu0 0.0
    %3496 = vmatprep.subr.mxu0 0.0
    %3497 = vmatpush2.msra.mxu0 0.0
    %3498 = vmatprep.subr.mxu0 0.0
    %3499 = vmatpush2.msra.mxu0 0.0
    %3500 = vmatprep.subr.mxu0 0.0
    %3501 = vmatpush2.msra.mxu0 0.0
    %3502 = vmatprep.subr.mxu0 0.0
    %3503 = vmatpush2.msra.mxu0 0.0
    %3504 = vmatprep.subr.mxu0 0.0
    %3505 = vmatpush2.msra.mxu0 0.0
    %3506 = vmatprep.subr.mxu0 0.0
    %3507 = vmatpush2.msra.mxu0 0.0
    %3508 = vmatprep.subr.mxu0 0.0
    %3509 = vmatpush2.msra.mxu0 0.0
    %3510 = vmatprep.subr.mxu0 0.0
    %3511 = vmatpush2.msra.mxu0 0.0
    %3512 = vmatprep.subr.mxu0 0.0
    %3513 = vmatpush2.msra.mxu0 0.0
    %3514 = vmatprep.subr.mxu0 0.0
    %3515 = vmatpush2.msra.mxu0 0.0
    %3516 = vmatprep.subr.mxu0 0.0
    %3517 = vmatpush2.msra.mxu0 0.0
    %3518 = vmatprep.subr.mxu0 0.0
    %3519 = vmatpush2.msra.mxu0 0.0
    %3520 = vmatprep.mubr.f32.mxu0 0.0
    %3521 = vmatmul.mubr.f32.gmra.mxu0 %v3454
    %v3522 = vpop.f32.mrf.mxu0
    %v3523 = vadd.f32 0.0, %v3522
    %v3524 = vpop.f32.mrf.mxu0
    %3525 = vdwg.mxu0
    %3528 = vrot.lane.b32.xlu0 %v2779, 8
    %v3529 = vpop.permute.xlu0 %3528
    %3530 = vrot.lane.b32.xlu0 %v2855, 8
    %v3531 = vpop.permute.xlu0 %3530
    %3536 = vrot.lane.b32.xlu0 %v3113, 16
    %v3537 = vpop.permute.xlu0 %3536
    %3538 = vrot.lane.b32.xlu0 %v3189, 16
    %v3539 = vpop.permute.xlu0 %3538
    %3544 = vrot.lane.b32.xlu0 %v3447, 24
    %v3545 = vpop.permute.xlu0 %3544
    %3546 = vrot.lane.b32.xlu0 %v3523, 24
    %v3547 = vpop.permute.xlu0 %3546
    %v3550 = vsel %vm335, %v2445, %v3529
    %v3551 = vsel %vm335, %v2521, %v3531
    %v3552 = vsel %vm1703, %v3550, %v3537
    %v3553 = vsel %vm1703, %v3551, %v3539
    %v3554 = vsel %vm1706, %v3552, %v3545
    %v3555 = vsel %vm1706, %v3553, %v3547
    %3560 = vrot.lane.b32.xlu0 %v2097, 32
    %v3561 = vpop.permute.xlu0 %3560
    %3562 = vrot.lane.b32.xlu0 %v2099, 32
    %v3563 = vpop.permute.xlu0 %3562
    %3564 = vrot.lane.b32.xlu0 %v2101, 32
    %v3565 = vpop.permute.xlu0 %3564
    %3566 = vrot.lane.b32.xlu0 %v2103, 32
    %v3567 = vpop.permute.xlu0 %3566
    %3573 = vrot.lane.b32.xlu0 %v2110, 32
    %v3574 = vpop.permute.xlu0 %3573
    %v3577 = vsel %vm171, %v3554, 0
    %v3580 = vsel %vm171, %v3555, 0
    %3582 = vmatprep.subr.mxu0 0.0
    %3583 = vmatpush1.msra.mxu0 0.0
    %3584 = vmatprep.subr.mxu0 0.0
    %3585 = vmatpush1.msra.mxu0 0.0
    %3586 = vmatprep.subr.mxu0 0.0
    %3587 = vmatpush1.msra.mxu0 0.0
    %3588 = vmatprep.subr.mxu0 0.0
    %3589 = vmatpush1.msra.mxu0 0.0
    %3590 = vmatprep.subr.mxu0 0.0
    %3591 = vmatpush1.msra.mxu0 0.0
    %3592 = vmatprep.subr.mxu0 0.0
    %3593 = vmatpush1.msra.mxu0 0.0
    %3594 = vmatprep.subr.mxu0 0.0
    %3595 = vmatpush1.msra.mxu0 0.0
    %3596 = vmatprep.subr.mxu0 0.0
    %3597 = vmatpush1.msra.mxu0 0.0
    %3598 = vmatprep.subr.mxu0 0.0
    %3599 = vmatpush1.msra.mxu0 0.0
    %3600 = vmatprep.subr.mxu0 0.0
    %3601 = vmatpush1.msra.mxu0 0.0
    %3602 = vmatprep.subr.mxu0 0.0
    %3603 = vmatpush1.msra.mxu0 0.0
    %3604 = vmatprep.subr.mxu0 0.0
    %3605 = vmatpush1.msra.mxu0 0.0
    %3606 = vmatprep.subr.mxu0 0.0
    %3607 = vmatpush1.msra.mxu0 %v3567
    %3608 = vmatprep.subr.mxu0 0.0
    %3609 = vmatpush1.msra.mxu0 %v3565
    %3610 = vmatprep.subr.mxu0 0.0
    %3611 = vmatpush1.msra.mxu0 %v3563
    %3612 = vmatprep.subr.mxu0 0.0
    %3613 = vmatpush1.msra.mxu0 %v3561
    %3614 = vmatprep.subr.mxu0 0.0
    %3615 = vmatpush2.msra.mxu0 0.0
    %3616 = vmatprep.subr.mxu0 0.0
    %3617 = vmatpush2.msra.mxu0 0.0
    %3618 = vmatprep.subr.mxu0 0.0
    %3619 = vmatpush2.msra.mxu0 0.0
    %3620 = vmatprep.subr.mxu0 0.0
    %3621 = vmatpush2.msra.mxu0 0.0
    %3622 = vmatprep.subr.mxu0 0.0
    %3623 = vmatpush2.msra.mxu0 0.0
    %3624 = vmatprep.subr.mxu0 0.0
    %3625 = vmatpush2.msra.mxu0 0.0
    %3626 = vmatprep.subr.mxu0 0.0
    %3627 = vmatpush2.msra.mxu0 0.0
    %3628 = vmatprep.subr.mxu0 0.0
    %3629 = vmatpush2.msra.mxu0 0.0
    %3630 = vmatprep.subr.mxu0 0.0
    %3631 = vmatpush2.msra.mxu0 0.0
    %3632 = vmatprep.subr.mxu0 0.0
    %3633 = vmatpush2.msra.mxu0 0.0
    %3634 = vmatprep.subr.mxu0 0.0
    %3635 = vmatpush2.msra.mxu0 0.0
    %3636 = vmatprep.subr.mxu0 0.0
    %3637 = vmatpush2.msra.mxu0 0.0
    %3638 = vmatprep.subr.mxu0 0.0
    %3639 = vmatpush2.msra.mxu0 0.0
    %3640 = vmatprep.subr.mxu0 0.0
    %3641 = vmatpush2.msra.mxu0 0.0
    %3642 = vmatprep.subr.mxu0 0.0
    %3643 = vmatpush2.msra.mxu0 0.0
    %3644 = vmatprep.subr.mxu0 0.0
    %3645 = vmatpush2.msra.mxu0 0.0
    %3646 = vmatprep.mubr.f32.mxu0 0.0
    %3647 = vmatmul.mubr.f32.gmra.mxu0 %v3577
    %v3648 = vpop.f32.mrf.mxu0
    %v3649 = vadd.f32 %v3574, %v3648
    %v3650 = vpop.f32.mrf.mxu0
    %3651 = vmatprep.mubr.f32.mxu0 0.0
    %3652 = vmatmul.mubr.f32.gmra.mxu0 %v3580
    %v3653 = vpop.f32.mrf.mxu0
    %v3654 = vadd.f32 %v3574, %v3653
    %v3655 = vpop.f32.mrf.mxu0
    %3656 = vdwg.mxu0
    %v3657 = vadd.f32 %v3649, %v2094
    %v3658 = vadd.f32 %v3654, %v2095
    %v3659 = vsel %vm171, %v3657, 0.0
    %3660 = vadd.xlane.f32.xlu0 %v3659
    %v3661 = vpop.xlane.xlu0 %3660
    %v3662 = vsel %vm171, %v3658, 0.0
    %3663 = vadd.xlane.f32.xlu0 %v3662
    %v3664 = vpop.xlane.xlu0 %3663
    %v3665 = vmul.f32 %v3661, %v178
    %v3666 = vmul.f32 %v3664, %v178
    %v3667 = vsub.f32 %v3657, %v3665
    %v3668 = vsub.f32 %v3658, %v3666
    %v3669 = vmul.f32 %v3667, %v3667
    %v3670 = vmul.f32 %v3668, %v3668
    %v3671 = vsel %vm171, %v3669, 0.0
    %3672 = vadd.xlane.f32.xlu0 %v3671
    %v3673 = vpop.xlane.xlu0 %3672
    %v3674 = vsel %vm171, %v3670, 0.0
    %3675 = vadd.xlane.f32.xlu0 %v3674
    %v3676 = vpop.xlane.xlu0 %3675
    %v3677 = vmul.f32 %v3673, %v178
    %v3678 = vmul.f32 %v3676, %v178
    %v3679 = vadd.f32 %v3677, 1e-12
    %v3680 = vadd.f32 %v3678, 1e-12
    %v3681 = vrsqrt.pop %v3679
    %v3682 = vrsqrt.pop %v3680
    %v3683 = vmul.f32 %v3667, %v3681
    %v3684 = vmul.f32 %v3668, %v3682
    %v3685 = vlaneseq
    %v3686 = vshrl.u32 %v3685, 7
    %v3687 = vsub.s32 1, %v3686
    %v3688 = vrot.slane %v2106, %v3687
    %v3689 = vmul.f32 %v3683, %v3688
    %v3690 = vmul.f32 %v3684, %v3688
    %3692 = vrot.lane.b32.xlu0 %v3688, 96
    %v3693 = vpop.permute.xlu0 %3692
    %v3695 = vadd.f32 %v3689, %v3693
    %v3696 = vadd.f32 %v3690, %v3693
    %3697 = vrot.lane.b32.xlu0 %v3688, 64
    %v3698 = vpop.permute.xlu0 %3697
    %v3701 = vsel %vm171, %v3695, 0
    %v3704 = vsel %vm171, %v3696, 0
    %3706 = vmatprep.subr.mxu0 0.0
    %3707 = vmatpush1.msra.mxu0 0.0
    %3708 = vmatprep.subr.mxu0 0.0
    %3709 = vmatpush1.msra.mxu0 0.0
    %3710 = vmatprep.subr.mxu0 0.0
    %3711 = vmatpush1.msra.mxu0 0.0
    %3712 = vmatprep.subr.mxu0 0.0
    %3713 = vmatpush1.msra.mxu0 0.0
    %3714 = vmatprep.subr.mxu0 0.0
    %3715 = vmatpush1.msra.mxu0 0.0
    %3716 = vmatprep.subr.mxu0 0.0
    %3717 = vmatpush1.msra.mxu0 0.0
    %3718 = vmatprep.subr.mxu0 0.0
    %3719 = vmatpush1.msra.mxu0 0.0
    %3720 = vmatprep.subr.mxu0 0.0
    %3721 = vmatpush1.msra.mxu0 0.0
    %3722 = vmatprep.subr.mxu0 0.0
    %3723 = vmatpush1.msra.mxu0 0.0
    %3724 = vmatprep.subr.mxu0 0.0
    %3725 = vmatpush1.msra.mxu0 0.0
    %3726 = vmatprep.subr.mxu0 0.0
    %3727 = vmatpush1.msra.mxu0 0.0
    %3728 = vmatprep.subr.mxu0 0.0
    %3729 = vmatpush1.msra.mxu0 0.0
    %3730 = vmatprep.subr.mxu0 0.0
    %3731 = vmatpush1.msra.mxu0 %v2104
    %3732 = vmatprep.subr.mxu0 0.0
    %3733 = vmatpush1.msra.mxu0 %v2102
    %3734 = vmatprep.subr.mxu0 0.0
    %3735 = vmatpush1.msra.mxu0 %v2100
    %3736 = vmatprep.subr.mxu0 0.0
    %3737 = vmatpush1.msra.mxu0 %v2098
    %3738 = vmatprep.subr.mxu0 0.0
    %3739 = vmatpush2.msra.mxu0 0.0
    %3740 = vmatprep.subr.mxu0 0.0
    %3741 = vmatpush2.msra.mxu0 0.0
    %3742 = vmatprep.subr.mxu0 0.0
    %3743 = vmatpush2.msra.mxu0 0.0
    %3744 = vmatprep.subr.mxu0 0.0
    %3745 = vmatpush2.msra.mxu0 0.0
    %3746 = vmatprep.subr.mxu0 0.0
    %3747 = vmatpush2.msra.mxu0 0.0
    %3748 = vmatprep.subr.mxu0 0.0
    %3749 = vmatpush2.msra.mxu0 0.0
    %3750 = vmatprep.subr.mxu0 0.0
    %3751 = vmatpush2.msra.mxu0 0.0
    %3752 = vmatprep.subr.mxu0 0.0
    %3753 = vmatpush2.msra.mxu0 0.0
    %3754 = vmatprep.subr.mxu0 0.0
    %3755 = vmatpush2.msra.mxu0 0.0
    %3756 = vmatprep.subr.mxu0 0.0
    %3757 = vmatpush2.msra.mxu0 0.0
    %3758 = vmatprep.subr.mxu0 0.0
    %3759 = vmatpush2.msra.mxu0 0.0
    %3760 = vmatprep.subr.mxu0 0.0
    %3761 = vmatpush2.msra.mxu0 0.0
    %3762 = vmatprep.subr.mxu0 0.0
    %3763 = vmatpush2.msra.mxu0 0.0
    %3764 = vmatprep.subr.mxu0 0.0
    %3765 = vmatpush2.msra.mxu0 0.0
    %3766 = vmatprep.subr.mxu0 0.0
    %3767 = vmatpush2.msra.mxu0 0.0
    %3768 = vmatprep.subr.mxu0 0.0
    %3769 = vmatpush2.msra.mxu0 0.0
    %3770 = vmatprep.mubr.f32.mxu0 0.0
    %3771 = vmatmul.mubr.f32.gmra.mxu0 %v3701
    %v3772 = vpop.f32.mrf.mxu0
    %v3773 = vadd.f32 %v3698, %v3772
    %v3774 = vpop.f32.mrf.mxu0
    %3775 = vmatprep.mubr.f32.mxu0 0.0
    %3776 = vmatmul.mubr.f32.gmra.mxu0 %v3704
    %v3777 = vpop.f32.mrf.mxu0
    %v3778 = vadd.f32 %v3698, %v3777
    %v3779 = vpop.f32.mrf.mxu0
    %3780 = vdwg.mxu0
    %v3781 = vmul.f32 %v3773, %v3773
    %v3782 = vmul.f32 %v3778, %v3778
    %v3783 = vmul.f32 %v3773, %v3781
    %v3784 = vmul.f32 %v3778, %v3782
    %v3785 = vmul.f32 %v3783, 0.044715
    %v3786 = vmul.f32 %v3784, 0.044715
    %v3787 = vadd.f32 %v3773, %v3785
    %v3788 = vadd.f32 %v3778, %v3786
    %v3789 = vmul.f32 %v3787, 0.7978846
    %v3790 = vmul.f32 %v3788, 0.7978846
    %v3791 = vtanh.pop %v3789
    %v3792 = vtanh.pop %v3790
    %v3793 = vadd.f32 %v3791, 1.0
    %v3794 = vadd.f32 %v3792, 1.0
    %v3795 = vmul.f32 %v3793, 0.5
    %v3796 = vmul.f32 %v3794, 0.5
    %v3797 = vmul.f32 %v3773, %v3795
    %v3798 = vmul.f32 %v3778, %v3796
    %v3799 = vlaneseq
    %v3800 = vshrl.u32 %v3799, 7
    %v3801 = vsub.s32 2, %v3800
    %v3802 = vrot.slane %v2106, %v3801
    %3807 = vrot.lane.b32.xlu0 %v2098, 64
    %v3808 = vpop.permute.xlu0 %3807
    %3809 = vrot.lane.b32.xlu0 %v2100, 64
    %v3810 = vpop.permute.xlu0 %3809
    %3811 = vrot.lane.b32.xlu0 %v2102, 64
    %v3812 = vpop.permute.xlu0 %3811
    %3813 = vrot.lane.b32.xlu0 %v2104, 64
    %v3814 = vpop.permute.xlu0 %3813
    %v3816 = vsel %vm80, %v3797, 0
    %v3819 = vsel %vm80, %v3798, 0
    %v3821 = vsel %vm80, %v3808, 0
    %v3823 = vsel %vm80, %v3810, 0
    %v3825 = vsel %vm80, %v3812, 0
    %v3827 = vsel %vm80, %v3814, 0
    %3829 = vmatprep.subr.mxu0 0.0
    %3830 = vmatpush1.xpose.msra.mxu0 0.0
    %3831 = vmatprep.subr.mxu0 0.0
    %3832 = vmatpush1.xpose.msra.mxu0 0.0
    %3833 = vmatprep.subr.mxu0 0.0
    %3834 = vmatpush1.xpose.msra.mxu0 0.0
    %3835 = vmatprep.subr.mxu0 0.0
    %3836 = vmatpush1.xpose.msra.mxu0 0.0
    %3837 = vmatprep.subr.mxu0 0.0
    %3838 = vmatpush1.xpose.msra.mxu0 0.0
    %3839 = vmatprep.subr.mxu0 0.0
    %3840 = vmatpush1.xpose.msra.mxu0 0.0
    %3841 = vmatprep.subr.mxu0 0.0
    %3842 = vmatpush1.xpose.msra.mxu0 0.0
    %3843 = vmatprep.subr.mxu0 0.0
    %3844 = vmatpush1.xpose.msra.mxu0 0.0
    %3845 = vmatprep.subr.mxu0 0.0
    %3846 = vmatpush1.xpose.msra.mxu0 0.0
    %3847 = vmatprep.subr.mxu0 0.0
    %3848 = vmatpush1.xpose.msra.mxu0 0.0
    %3849 = vmatprep.subr.mxu0 0.0
    %3850 = vmatpush1.xpose.msra.mxu0 0.0
    %3851 = vmatprep.subr.mxu0 0.0
    %3852 = vmatpush1.xpose.msra.mxu0 0.0
    %3853 = vmatprep.subr.mxu0 0.0
    %3854 = vmatpush1.xpose.msra.mxu0 %v3827
    %3855 = vmatprep.subr.mxu0 0.0
    %3856 = vmatpush1.xpose.msra.mxu0 %v3825
    %3857 = vmatprep.subr.mxu0 0.0
    %3858 = vmatpush1.xpose.msra.mxu0 %v3823
    %3859 = vmatprep.subr.mxu0 0.0
    %3860 = vmatpush1.xpose.msra.mxu0 %v3821
    %3861 = vmatprep.subr.mxu0 0.0
    %3862 = vmatpush2.xpose.msra.mxu0 0.0
    %3863 = vmatprep.subr.mxu0 0.0
    %3864 = vmatpush2.xpose.msra.mxu0 0.0
    %3865 = vmatprep.subr.mxu0 0.0
    %3866 = vmatpush2.xpose.msra.mxu0 0.0
    %3867 = vmatprep.subr.mxu0 0.0
    %3868 = vmatpush2.xpose.msra.mxu0 0.0
    %3869 = vmatprep.subr.mxu0 0.0
    %3870 = vmatpush2.xpose.msra.mxu0 0.0
    %3871 = vmatprep.subr.mxu0 0.0
    %3872 = vmatpush2.xpose.msra.mxu0 0.0
    %3873 = vmatprep.subr.mxu0 0.0
    %3874 = vmatpush2.xpose.msra.mxu0 0.0
    %3875 = vmatprep.subr.mxu0 0.0
    %3876 = vmatpush2.xpose.msra.mxu0 0.0
    %3877 = vmatprep.subr.mxu0 0.0
    %3878 = vmatpush2.xpose.msra.mxu0 0.0
    %3879 = vmatprep.subr.mxu0 0.0
    %3880 = vmatpush2.xpose.msra.mxu0 0.0
    %3881 = vmatprep.subr.mxu0 0.0
    %3882 = vmatpush2.xpose.msra.mxu0 0.0
    %3883 = vmatprep.subr.mxu0 0.0
    %3884 = vmatpush2.xpose.msra.mxu0 0.0
    %3885 = vmatprep.subr.mxu0 0.0
    %3886 = vmatpush2.xpose.msra.mxu0 0.0
    %3887 = vmatprep.subr.mxu0 0.0
    %3888 = vmatpush2.xpose.msra.mxu0 0.0
    %3889 = vmatprep.subr.mxu0 0.0
    %3890 = vmatpush2.xpose.msra.mxu0 0.0
    %3891 = vmatprep.subr.mxu0 0.0
    %3892 = vmatpush2.xpose.msra.mxu0 0.0
    %3893 = vmatprep.mubr.f32.mxu0 0.0
    %3894 = vmatmul.mubr.f32.gmra.mxu0 %v3816
    %v3895 = vpop.f32.mrf.mxu0
    %v3896 = vadd.f32 %v3802, %v3895
    %v3897 = vpop.f32.mrf.mxu0
    %3898 = vmatprep.mubr.f32.mxu0 0.0
    %3899 = vmatmul.mubr.f32.gmra.mxu0 %v3819
    %v3900 = vpop.f32.mrf.mxu0
    %v3901 = vadd.f32 %v3802, %v3900
    %v3902 = vpop.f32.mrf.mxu0
    %3903 = vdwg.mxu0
    %v3904 = vadd.f32 %v3896, %v3695
    %v3905 = vadd.f32 %v3901, %v3696
    %v3906 = vsel %vm171, %v3904, 0.0
    %3907 = vadd.xlane.f32.xlu0 %v3906
    %v3908 = vpop.xlane.xlu0 %3907
    %v3909 = vsel %vm171, %v3905, 0.0
    %3910 = vadd.xlane.f32.xlu0 %v3909
    %v3911 = vpop.xlane.xlu0 %3910
    %v3912 = vmul.f32 %v3908, %v178
    %v3913 = vmul.f32 %v3911, %v178
    %v3914 = vsub.f32 %v3904, %v3912
    %v3915 = vsub.f32 %v3905, %v3913
    %v3916 = vmul.f32 %v3914, %v3914
    %v3917 = vmul.f32 %v3915, %v3915
    %v3918 = vsel %vm171, %v3916, 0.0
    %3919 = vadd.xlane.f32.xlu0 %v3918
    %v3920 = vpop.xlane.xlu0 %3919
    %v3921 = vsel %vm171, %v3917, 0.0
    %3922 = vadd.xlane.f32.xlu0 %v3921
    %v3923 = vpop.xlane.xlu0 %3922
    %v3924 = vmul.f32 %v3920, %v178
    %v3925 = vmul.f32 %v3923, %v178
    %v3926 = vadd.f32 %v3924, 1e-12
    %v3927 = vadd.f32 %v3925, 1e-12
    %v3928 = vrsqrt.pop %v3926
    %v3929 = vrsqrt.pop %v3927
    %v3930 = vmul.f32 %v3914, %v3928
    %v3931 = vmul.f32 %v3915, %v3929
    %3933 = vrot.lane.b32.xlu0 %v3802, 96
    %v3934 = vpop.permute.xlu0 %3933
    %v3936 = vmul.f32 %v3930, %v3934
    %v3937 = vmul.f32 %v3931, %v3934
    %3938 = vrot.lane.b32.xlu0 %v3802, 64
    %v3939 = vpop.permute.xlu0 %3938
    %v3941 = vadd.f32 %v3936, %v3939
    %v3942 = vadd.f32 %v3937, %v3939
    %v3943 = vld [vmem:[%s2 + $0x54] sm:$0xff]
    %v3944 = vld [vmem:[%s2 + $0x5c] sm:$0xff]
    %v3945 = vld [vmem:[%s2 + $0x64] sm:$0xff]
    %v3946 = vld [vmem:[%s2 + $0x6c] sm:$0xff]
    %v3947 = vld [vmem:[%s2 + $0x74] sm:$0x1]
    %v3948 = vlaneseq
    %v3949 = vshrl.u32 %v3948, 7
    %v3950 = vsub.s32 0, %v3949
    %v3951 = vrot.slane %v3947, %v3950
    %v3954 = vrot.slane %v3942, 7
    %vm3955 = vcmask 1041409
    %v3956 = vsel %vm3955, %v3954, %v3941
    %v3957 = vsel %vm171, %v3956, 0
    %3959 = vmatprep.subr.mxu0 0.0
    %3960 = vmatpush1.msra.mxu0 0.0
    %3961 = vmatprep.subr.mxu0 0.0
    %3962 = vmatpush1.msra.mxu0 0.0
    %3963 = vmatprep.subr.mxu0 0.0
    %3964 = vmatpush1.msra.mxu0 0.0
    %3965 = vmatprep.subr.mxu0 0.0
    %3966 = vmatpush1.msra.mxu0 0.0
    %3967 = vmatprep.subr.mxu0 0.0
    %3968 = vmatpush1.msra.mxu0 0.0
    %3969 = vmatprep.subr.mxu0 0.0
    %3970 = vmatpush1.msra.mxu0 0.0
    %3971 = vmatprep.subr.mxu0 0.0
    %3972 = vmatpush1.msra.mxu0 0.0
    %3973 = vmatprep.subr.mxu0 0.0
    %3974 = vmatpush1.msra.mxu0 0.0
    %3975 = vmatprep.subr.mxu0 0.0
    %3976 = vmatpush1.msra.mxu0 0.0
    %3977 = vmatprep.subr.mxu0 0.0
    %3978 = vmatpush1.msra.mxu0 0.0
    %3979 = vmatprep.subr.mxu0 0.0
    %3980 = vmatpush1.msra.mxu0 0.0
    %3981 = vmatprep.subr.mxu0 0.0
    %3982 = vmatpush1.msra.mxu0 0.0
    %3983 = vmatprep.subr.mxu0 0.0
    %3984 = vmatpush1.msra.mxu0 %v3946
    %3985 = vmatprep.subr.mxu0 0.0
    %3986 = vmatpush1.msra.mxu0 %v3945
    %3987 = vmatprep.subr.mxu0 0.0
    %3988 = vmatpush1.msra.mxu0 %v3944
    %3989 = vmatprep.subr.mxu0 0.0
    %3990 = vmatpush1.msra.mxu0 %v3943
    %3991 = vmatprep.subr.mxu0 0.0
    %3992 = vmatpush2.msra.mxu0 0.0
    %3993 = vmatprep.subr.mxu0 0.0
    %3994 = vmatpush2.msra.mxu0 0.0
    %3995 = vmatprep.subr.mxu0 0.0
    %3996 = vmatpush2.msra.mxu0 0.0
    %3997 = vmatprep.subr.mxu0 0.0
    %3998 = vmatpush2.msra.mxu0 0.0
    %3999 = vmatprep.subr.mxu0 0.0
    %4000 = vmatpush2.msra.mxu0 0.0
    %4001 = vmatprep.subr.mxu0 0.0
    %4002 = vmatpush2.msra.mxu0 0.0
    %4003 = vmatprep.subr.mxu0 0.0
    %4004 = vmatpush2.msra.mxu0 0.0
    %4005 = vmatprep.subr.mxu0 0.0
    %4006 = vmatpush2.msra.mxu0 0.0
    %4007 = vmatprep.subr.mxu0 0.0
    %4008 = vmatpush2.msra.mxu0 0.0
    %4009 = vmatprep.subr.mxu0 0.0
    %4010 = vmatpush2.msra.mxu0 0.0
    %4011 = vmatprep.subr.mxu0 0.0
    %4012 = vmatpush2.msra.mxu0 0.0
    %4013 = vmatprep.subr.mxu0 0.0
    %4014 = vmatpush2.msra.mxu0 0.0
    %4015 = vmatprep.subr.mxu0 0.0
    %4016 = vmatpush2.msra.mxu0 0.0
    %4017 = vmatprep.subr.mxu0 0.0
    %4018 = vmatpush2.msra.mxu0 0.0
    %4019 = vmatprep.subr.mxu0 0.0
    %4020 = vmatpush2.msra.mxu0 0.0
    %4021 = vmatprep.subr.mxu0 0.0
    %4022 = vmatpush2.msra.mxu0 0.0
    %4023 = vmatprep.mubr.f32.mxu0 0.0
    %4024 = vmatmul.mubr.f32.gmra.mxu0 %v3957
    %v4025 = vpop.f32.mrf.mxu0
    %v4026 = vadd.f32 %v3951, %v4025
    %v4027 = vpop.f32.mrf.mxu0
    %4028 = vdwg.mxu0
    %v4029 = vtanh.pop %v4026
    %v4030 = vld [vmem:[#allocation2] sm:$0xff]
    %v4031 = vld [vmem:[#allocation2 + $0x8] sm:$0xff]
    %v4032 = vld [vmem:[#allocation2 + $0x10] sm:$0xff]
    %v4033 = vld [vmem:[#allocation2 + $0x18] sm:$0xff]
    %v4034 = vld [vmem:[#allocation2 + $0x20] sm:$0xff]
    %v4035 = vld [vmem:[#allocation2 + $0x28] sm:$0xff]
    %v4036 = vld [vmem:[#allocation2 + $0x30] sm:$0xff]
    %v4037 = vld [vmem:[#allocation2 + $0x38] sm:$0xff]
    %v4038 = vld [vmem:[#allocation2 + $0x40] sm:$0xff]
    %v4039 = vld [vmem:[#allocation2 + $0x48] sm:$0xff]
    %v4040 = vld [vmem:[#allocation2 + $0x50] sm:$0xff]
    %v4041 = vld [vmem:[#allocation2 + $0x58] sm:$0xff]
    %v4042 = vld [vmem:[#allocation2 + $0x60] sm:$0xff]
    %v4043 = vld [vmem:[#allocation2 + $0x68] sm:$0xff]
    %v4044 = vld [vmem:[#allocation2 + $0x70] sm:$0xff]
    %v4045 = vld [vmem:[#allocation2 + $0x78] sm:$0xff]
    %v4046 = vld [vmem:[#allocation2 + $0x80] sm:$0xff]
    %v4047 = vld [vmem:[#allocation2 + $0x88] sm:$0xff]
    %v4048 = vld [vmem:[#allocation2 + $0x90] sm:$0xff]
    %v4049 = vld [vmem:[#allocation2 + $0x98] sm:$0xff]
    %v4050 = vld [vmem:[#allocation2 + $0xa0] sm:$0xff]
    %v4051 = vld [vmem:[#allocation2 + $0xa8] sm:$0xff]
    %v4052 = vld [vmem:[#allocation2 + $0xb0] sm:$0xff]
    %v4053 = vld [vmem:[#allocation2 + $0xb8] sm:$0xff]
    %v4054 = vld [vmem:[#allocation2 + $0xc0] sm:$0xff]
    %v4055 = vld [vmem:[#allocation2 + $0xc8] sm:$0xff]
    %v4056 = vld [vmem:[#allocation2 + $0xd0] sm:$0xff]
    %v4057 = vld [vmem:[#allocation2 + $0xd8] sm:$0xff]
    %v4058 = vld [vmem:[#allocation2 + $0xe0] sm:$0xff]
    %v4059 = vld [vmem:[#allocation2 + $0xe8] sm:$0xff]
    %v4060 = vld [vmem:[#allocation2 + $0xf0] sm:$0xff]
    %v4061 = vld [vmem:[#allocation2 + $0xf8] sm:$0xff]
    %s4062 = scalar_lea.vmem [#allocation2], 256
    %v4063 = vld [vmem:[%s4062] ss:$8 sm:$0xf]
    %v4064 = vld [vmem:[%s4062] ss:$8 sm:$0xf0]
    %v4065 = vor.u32 %v4063, %v4064
    %v4067 = vlaneseq
    %v4068 = vshrl.u32 %v4067, 7
    %v4069 = vsub.s32 0, %v4068
    %v4070 = vrot.slane %v4065, %v4069
    %v4071 = vlaneseq
    %v4072 = vshrl.u32 %v4071, 7
    %v4073 = vsub.s32 1, %v4072
    %v4074 = vrot.slane %v4065, %v4073
    %v4075 = vlaneseq
    %v4076 = vshrl.u32 %v4075, 7
    %v4077 = vsub.s32 2, %v4076
    %v4078 = vrot.slane %v4065, %v4077
    %v4079 = vlaneseq
    %v4080 = vshrl.u32 %v4079, 7
    %v4081 = vsub.s32 3, %v4080
    %v4082 = vrot.slane %v4065, %v4081
    %v4083 = vlaneseq
    %v4084 = vshrl.u32 %v4083, 7
    %v4085 = vsub.s32 4, %v4084
    %v4086 = vrot.slane %v4065, %v4085
    %v4087 = vlaneseq
    %v4088 = vshrl.u32 %v4087, 7
    %v4089 = vsub.s32 5, %v4088
    %v4090 = vrot.slane %v4065, %v4089
    %v4091 = vlaneseq
    %v4092 = vshrl.u32 %v4091, 7
    %v4093 = vsub.s32 6, %v4092
    %v4094 = vrot.slane %v4065, %v4093
    %v4095 = vlaneseq
    %v4096 = vshrl.u32 %v4095, 7
    %v4097 = vsub.s32 7, %v4096
    %v4098 = vrot.slane %v4065, %v4097
    %v4108 = vsel %vm171, %v4029, 0
    %4110 = vmatprep.subr.mxu0 0.0
    %4111 = vmatpush1.msra.mxu0 0.0
    %4112 = vmatprep.subr.mxu0 0.0
    %4113 = vmatpush1.msra.mxu0 0.0
    %4114 = vmatprep.subr.mxu0 0.0
    %4115 = vmatpush1.msra.mxu0 0.0
    %4116 = vmatprep.subr.mxu0 0.0
    %4117 = vmatpush1.msra.mxu0 0.0
    %4118 = vmatprep.subr.mxu0 0.0
    %4119 = vmatpush1.msra.mxu0 0.0
    %4120 = vmatprep.subr.mxu0 0.0
    %4121 = vmatpush1.msra.mxu0 0.0
    %4122 = vmatprep.subr.mxu0 0.0
    %4123 = vmatpush1.msra.mxu0 0.0
    %4124 = vmatprep.subr.mxu0 0.0
    %4125 = vmatpush1.msra.mxu0 0.0
    %4126 = vmatprep.subr.mxu0 0.0
    %4127 = vmatpush1.msra.mxu0 0.0
    %4128 = vmatprep.subr.mxu0 0.0
    %4129 = vmatpush1.msra.mxu0 0.0
    %4130 = vmatprep.subr.mxu0 0.0
    %4131 = vmatpush1.msra.mxu0 0.0
    %4132 = vmatprep.subr.mxu0 0.0
    %4133 = vmatpush1.msra.mxu0 0.0
    %4134 = vmatprep.subr.mxu0 %v4055
    %4135 = vmatpush1.msra.mxu0 %v4054
    %4136 = vmatprep.subr.mxu0 %v4047
    %4137 = vmatpush1.msra.mxu0 %v4046
    %4138 = vmatprep.subr.mxu0 %v4039
    %4139 = vmatpush1.msra.mxu0 %v4038
    %4140 = vmatprep.subr.mxu0 %v4031
    %4141 = vmatpush1.msra.mxu0 %v4030
    %4142 = vmatprep.subr.mxu0 0.0
    %4143 = vmatpush2.msra.mxu0 0.0
    %4144 = vmatprep.subr.mxu0 0.0
    %4145 = vmatpush2.msra.mxu0 0.0
    %4146 = vmatprep.subr.mxu0 0.0
    %4147 = vmatpush2.msra.mxu0 0.0
    %4148 = vmatprep.subr.mxu0 0.0
    %4149 = vmatpush2.msra.mxu0 0.0
    %4150 = vmatprep.subr.mxu0 0.0
    %4151 = vmatpush2.msra.mxu0 0.0
    %4152 = vmatprep.subr.mxu0 0.0
    %4153 = vmatpush2.msra.mxu0 0.0
    %4154 = vmatprep.subr.mxu0 0.0
    %4155 = vmatpush2.msra.mxu0 0.0
    %4156 = vmatprep.subr.mxu0 0.0
    %4157 = vmatpush2.msra.mxu0 0.0
    %4158 = vmatprep.subr.mxu0 0.0
    %4159 = vmatpush2.msra.mxu0 0.0
    %4160 = vmatprep.subr.mxu0 0.0
    %4161 = vmatpush2.msra.mxu0 0.0
    %4162 = vmatprep.subr.mxu0 0.0
    %4163 = vmatpush2.msra.mxu0 0.0
    %4164 = vmatprep.subr.mxu0 0.0
    %4165 = vmatpush2.msra.mxu0 0.0
    %4166 = vmatprep.subr.mxu0 0.0
    %4167 = vmatpush2.msra.mxu0 0.0
    %4168 = vmatprep.subr.mxu0 0.0
    %4169 = vmatpush2.msra.mxu0 0.0
    %4170 = vmatprep.subr.mxu0 0.0
    %4171 = vmatpush2.msra.mxu0 0.0
    %4172 = vmatprep.subr.mxu0 0.0
    %4173 = vmatpush2.msra.mxu0 0.0
    %4174 = vmatprep.mubr.f32.mxu0 0.0
    %4175 = vmatmul.mubr.f32.gmra.mxu0 %v4108
    %v4176 = vpop.f32.mrf.mxu0
    %v4177 = vadd.f32 %v4070, %v4176
    %v4178 = vpop.f32.mrf.mxu0
    %v4179 = vadd.f32 %v4074, %v4178
    %4180 = vdwg.mxu0
    %4181 = vmatprep.subr.mxu0 0.0
    %4182 = vmatpush1.msra.mxu0 0.0
    %4183 = vmatprep.subr.mxu0 0.0
    %4184 = vmatpush1.msra.mxu0 0.0
    %4185 = vmatprep.subr.mxu0 0.0
    %4186 = vmatpush1.msra.mxu0 0.0
    %4187 = vmatprep.subr.mxu0 0.0
    %4188 = vmatpush1.msra.mxu0 0.0
    %4189 = vmatprep.subr.mxu0 0.0
    %4190 = vmatpush1.msra.mxu0 0.0
    %4191 = vmatprep.subr.mxu0 0.0
    %4192 = vmatpush1.msra.mxu0 0.0
    %4193 = vmatprep.subr.mxu0 0.0
    %4194 = vmatpush1.msra.mxu0 0.0
    %4195 = vmatprep.subr.mxu0 0.0
    %4196 = vmatpush1.msra.mxu0 0.0
    %4197 = vmatprep.subr.mxu0 0.0
    %4198 = vmatpush1.msra.mxu0 0.0
    %4199 = vmatprep.subr.mxu0 0.0
    %4200 = vmatpush1.msra.mxu0 0.0
    %4201 = vmatprep.subr.mxu0 0.0
    %4202 = vmatpush1.msra.mxu0 0.0
    %4203 = vmatprep.subr.mxu0 0.0
    %4204 = vmatpush1.msra.mxu0 0.0
    %4205 = vmatprep.subr.mxu0 %v4057
    %4206 = vmatpush1.msra.mxu0 %v4056
    %4207 = vmatprep.subr.mxu0 %v4049
    %4208 = vmatpush1.msra.mxu0 %v4048
    %4209 = vmatprep.subr.mxu0 %v4041
    %4210 = vmatpush1.msra.mxu0 %v4040
    %4211 = vmatprep.subr.mxu0 %v4033
    %4212 = vmatpush1.msra.mxu0 %v4032
    %4213 = vmatprep.subr.mxu0 0.0
    %4214 = vmatpush2.msra.mxu0 0.0
    %4215 = vmatprep.subr.mxu0 0.0
    %4216 = vmatpush2.msra.mxu0 0.0
    %4217 = vmatprep.subr.mxu0 0.0
    %4218 = vmatpush2.msra.mxu0 0.0
    %4219 = vmatprep.subr.mxu0 0.0
    %4220 = vmatpush2.msra.mxu0 0.0
    %4221 = vmatprep.subr.mxu0 0.0
    %4222 = vmatpush2.msra.mxu0 0.0
    %4223 = vmatprep.subr.mxu0 0.0
    %4224 = vmatpush2.msra.mxu0 0.0
    %4225 = vmatprep.subr.mxu0 0.0
    %4226 = vmatpush2.msra.mxu0 0.0
    %4227 = vmatprep.subr.mxu0 0.0
    %4228 = vmatpush2.msra.mxu0 0.0
    %4229 = vmatprep.subr.mxu0 0.0
    %4230 = vmatpush2.msra.mxu0 0.0
    %4231 = vmatprep.subr.mxu0 0.0
    %4232 = vmatpush2.msra.mxu0 0.0
    %4233 = vmatprep.subr.mxu0 0.0
    %4234 = vmatpush2.msra.mxu0 0.0
    %4235 = vmatprep.subr.mxu0 0.0
    %4236 = vmatpush2.msra.mxu0 0.0
    %4237 = vmatprep.subr.mxu0 0.0
    %4238 = vmatpush2.msra.mxu0 0.0
    %4239 = vmatprep.subr.mxu0 0.0
    %4240 = vmatpush2.msra.mxu0 0.0
    %4241 = vmatprep.subr.mxu0 0.0
    %4242 = vmatpush2.msra.mxu0 0.0
    %4243 = vmatprep.subr.mxu0 0.0
    %4244 = vmatpush2.msra.mxu0 0.0
    %4245 = vmatprep.mubr.f32.mxu0 0.0
    %4246 = vmatmul.mubr.f32.gmra.mxu0 %v4108
    %v4247 = vpop.f32.mrf.mxu0
    %v4248 = vadd.f32 %v4078, %v4247
    %v4249 = vpop.f32.mrf.mxu0
    %v4250 = vadd.f32 %v4082, %v4249
    %4251 = vdwg.mxu0
    %4252 = vmatprep.subr.mxu0 0.0
    %4253 = vmatpush1.msra.mxu0 0.0
    %4254 = vmatprep.subr.mxu0 0.0
    %4255 = vmatpush1.msra.mxu0 0.0
    %4256 = vmatprep.subr.mxu0 0.0
    %4257 = vmatpush1.msra.mxu0 0.0
    %4258 = vmatprep.subr.mxu0 0.0
    %4259 = vmatpush1.msra.mxu0 0.0
    %4260 = vmatprep.subr.mxu0 0.0
    %4261 = vmatpush1.msra.mxu0 0.0
    %4262 = vmatprep.subr.mxu0 0.0
    %4263 = vmatpush1.msra.mxu0 0.0
    %4264 = vmatprep.subr.mxu0 0.0
    %4265 = vmatpush1.msra.mxu0 0.0
    %4266 = vmatprep.subr.mxu0 0.0
    %4267 = vmatpush1.msra.mxu0 0.0
    %4268 = vmatprep.subr.mxu0 0.0
    %4269 = vmatpush1.msra.mxu0 0.0
    %4270 = vmatprep.subr.mxu0 0.0
    %4271 = vmatpush1.msra.mxu0 0.0
    %4272 = vmatprep.subr.mxu0 0.0
    %4273 = vmatpush1.msra.mxu0 0.0
    %4274 = vmatprep.subr.mxu0 0.0
    %4275 = vmatpush1.msra.mxu0 0.0
    %4276 = vmatprep.subr.mxu0 %v4059
    %4277 = vmatpush1.msra.mxu0 %v4058
    %4278 = vmatprep.subr.mxu0 %v4051
    %4279 = vmatpush1.msra.mxu0 %v4050
    %4280 = vmatprep.subr.mxu0 %v4043
    %4281 = vmatpush1.msra.mxu0 %v4042
    %4282 = vmatprep.subr.mxu0 %v4035
    %4283 = vmatpush1.msra.mxu0 %v4034
    %4284 = vmatprep.subr.mxu0 0.0
    %4285 = vmatpush2.msra.mxu0 0.0
    %4286 = vmatprep.subr.mxu0 0.0
    %4287 = vmatpush2.msra.mxu0 0.0
    %4288 = vmatprep.subr.mxu0 0.0
    %4289 = vmatpush2.msra.mxu0 0.0
    %4290 = vmatprep.subr.mxu0 0.0
    %4291 = vmatpush2.msra.mxu0 0.0
    %4292 = vmatprep.subr.mxu0 0.0
    %4293 = vmatpush2.msra.mxu0 0.0
    %4294 = vmatprep.subr.mxu0 0.0
    %4295 = vmatpush2.msra.mxu0 0.0
    %4296 = vmatprep.subr.mxu0 0.0
    %4297 = vmatpush2.msra.mxu0 0.0
    %4298 = vmatprep.subr.mxu0 0.0
    %4299 = vmatpush2.msra.mxu0 0.0
    %4300 = vmatprep.subr.mxu0 0.0
    %4301 = vmatpush2.msra.mxu0 0.0
    %4302 = vmatprep.subr.mxu0 0.0
    %4303 = vmatpush2.msra.mxu0 0.0
    %4304 = vmatprep.subr.mxu0 0.0
    %4305 = vmatpush2.msra.mxu0 0.0
    %4306 = vmatprep.subr.mxu0 0.0
    %4307 = vmatpush2.msra.mxu0 0.0
    %4308 = vmatprep.subr.mxu0 0.0
    %4309 = vmatpush2.msra.mxu0 0.0
    %4310 = vmatprep.subr.mxu0 0.0
    %4311 = vmatpush2.msra.mxu0 0.0
    %4312 = vmatprep.subr.mxu0 0.0
    %4313 = vmatpush2.msra.mxu0 0.0
    %4314 = vmatprep.subr.mxu0 0.0
    %4315 = vmatpush2.msra.mxu0 0.0
    %4316 = vmatprep.mubr.f32.mxu0 0.0
    %4317 = vmatmul.mubr.f32.gmra.mxu0 %v4108
    %v4318 = vpop.f32.mrf.mxu0
    %v4319 = vadd.f32 %v4086, %v4318
    %v4320 = vpop.f32.mrf.mxu0
    %v4321 = vadd.f32 %v4090, %v4320
    %4322 = vdwg.mxu0
    %4323 = vmatprep.subr.mxu0 0.0
    %4324 = vmatpush1.msra.mxu0 0.0
    %4325 = vmatprep.subr.mxu0 0.0
    %4326 = vmatpush1.msra.mxu0 0.0
    %4327 = vmatprep.subr.mxu0 0.0
    %4328 = vmatpush1.msra.mxu0 0.0
    %4329 = vmatprep.subr.mxu0 0.0
    %4330 = vmatpush1.msra.mxu0 0.0
    %4331 = vmatprep.subr.mxu0 0.0
    %4332 = vmatpush1.msra.mxu0 0.0
    %4333 = vmatprep.subr.mxu0 0.0
    %4334 = vmatpush1.msra.mxu0 0.0
    %4335 = vmatprep.subr.mxu0 0.0
    %4336 = vmatpush1.msra.mxu0 0.0
    %4337 = vmatprep.subr.mxu0 0.0
    %4338 = vmatpush1.msra.mxu0 0.0
    %4339 = vmatprep.subr.mxu0 0.0
    %4340 = vmatpush1.msra.mxu0 0.0
    %4341 = vmatprep.subr.mxu0 0.0
    %4342 = vmatpush1.msra.mxu0 0.0
    %4343 = vmatprep.subr.mxu0 0.0
    %4344 = vmatpush1.msra.mxu0 0.0
    %4345 = vmatprep.subr.mxu0 0.0
    %4346 = vmatpush1.msra.mxu0 0.0
    %4347 = vmatprep.subr.mxu0 %v4061
    %4348 = vmatpush1.msra.mxu0 %v4060
    %4349 = vmatprep.subr.mxu0 %v4053
    %4350 = vmatpush1.msra.mxu0 %v4052
    %4351 = vmatprep.subr.mxu0 %v4045
    %4352 = vmatpush1.msra.mxu0 %v4044
    %4353 = vmatprep.subr.mxu0 %v4037
    %4354 = vmatpush1.msra.mxu0 %v4036
    %4355 = vmatprep.subr.mxu0 0.0
    %4356 = vmatpush2.msra.mxu0 0.0
    %4357 = vmatprep.subr.mxu0 0.0
    %4358 = vmatpush2.msra.mxu0 0.0
    %4359 = vmatprep.subr.mxu0 0.0
    %4360 = vmatpush2.msra.mxu0 0.0
    %4361 = vmatprep.subr.mxu0 0.0
    %4362 = vmatpush2.msra.mxu0 0.0
    %4363 = vmatprep.subr.mxu0 0.0
    %4364 = vmatpush2.msra.mxu0 0.0
    %4365 = vmatprep.subr.mxu0 0.0
    %4366 = vmatpush2.msra.mxu0 0.0
    %4367 = vmatprep.subr.mxu0 0.0
    %4368 = vmatpush2.msra.mxu0 0.0
    %4369 = vmatprep.subr.mxu0 0.0
    %4370 = vmatpush2.msra.mxu0 0.0
    %4371 = vmatprep.subr.mxu0 0.0
    %4372 = vmatpush2.msra.mxu0 0.0
    %4373 = vmatprep.subr.mxu0 0.0
    %4374 = vmatpush2.msra.mxu0 0.0
    %4375 = vmatprep.subr.mxu0 0.0
    %4376 = vmatpush2.msra.mxu0 0.0
    %4377 = vmatprep.subr.mxu0 0.0
    %4378 = vmatpush2.msra.mxu0 0.0
    %4379 = vmatprep.subr.mxu0 0.0
    %4380 = vmatpush2.msra.mxu0 0.0
    %4381 = vmatprep.subr.mxu0 0.0
    %4382 = vmatpush2.msra.mxu0 0.0
    %4383 = vmatprep.subr.mxu0 0.0
    %4384 = vmatpush2.msra.mxu0 0.0
    %4385 = vmatprep.subr.mxu0 0.0
    %4386 = vmatpush2.msra.mxu0 0.0
    %4387 = vmatprep.mubr.f32.mxu0 0.0
    %4388 = vmatmul.mubr.f32.gmra.mxu0 %v4108
    %v4389 = vpop.f32.mrf.mxu0
    %v4390 = vadd.f32 %v4094, %v4389
    %v4391 = vpop.f32.mrf.mxu0
    %v4392 = vadd.f32 %v4098, %v4391
    %4393 = vdwg.mxu0
    %v4394 = vmax.f32 %v4177, 0.0
    %v4395 = vmax.f32 %v4179, 0.0
    %v4396 = vmax.f32 %v4248, 0.0
    %v4397 = vmax.f32 %v4250, 0.0
    %v4398 = vmax.f32 %v4319, 0.0
    %v4399 = vmax.f32 %v4321, 0.0
    %v4400 = vmax.f32 %v4390, 0.0
    %v4401 = vmax.f32 %v4392, 0.0
    %v4402 = vld [vmem:[#allocation5] sm:$0xff]
    %v4403 = vld [vmem:[#allocation5 + $0x8] sm:$0xff]
    %v4404 = vld [vmem:[#allocation5 + $0x10] sm:$0xff]
    %v4405 = vld [vmem:[#allocation5 + $0x18] sm:$0xff]
    %v4406 = vld [vmem:[#allocation5 + $0x20] sm:$0xff]
    %v4407 = vld [vmem:[#allocation5 + $0x28] sm:$0xff]
    %v4408 = vld [vmem:[#allocation5 + $0x30] sm:$0xff]
    %v4409 = vld [vmem:[#allocation5 + $0x38] sm:$0xff]
    %v4410 = vld [vmem:[#allocation5 + $0x40] sm:$0xff]
    %v4411 = vld [vmem:[#allocation5 + $0x48] sm:$0xff]
    %v4412 = vld [vmem:[#allocation5 + $0x50] sm:$0xff]
    %v4413 = vld [vmem:[#allocation5 + $0x58] sm:$0xff]
    %v4414 = vld [vmem:[#allocation5 + $0x60] sm:$0xff]
    %v4415 = vld [vmem:[#allocation5 + $0x68] sm:$0xff]
    %v4416 = vld [vmem:[#allocation5 + $0x70] sm:$0xff]
    %v4417 = vld [vmem:[#allocation5 + $0x78] sm:$0xff]
    %v4418 = vld [vmem:[#allocation5 + $0x80] sm:$0xff]
    %v4419 = vld [vmem:[#allocation5 + $0x88] sm:$0xff]
    %v4420 = vld [vmem:[#allocation5 + $0x90] sm:$0xff]
    %v4421 = vld [vmem:[#allocation5 + $0x98] sm:$0xff]
    %v4422 = vld [vmem:[#allocation5 + $0xa0] sm:$0xff]
    %v4423 = vld [vmem:[#allocation5 + $0xa8] sm:$0xff]
    %v4424 = vld [vmem:[#allocation5 + $0xb0] sm:$0xff]
    %v4425 = vld [vmem:[#allocation5 + $0xb8] sm:$0xff]
    %v4426 = vld [vmem:[#allocation5 + $0xc0] sm:$0xff]
    %v4427 = vld [vmem:[#allocation5 + $0xc8] sm:$0xff]
    %v4428 = vld [vmem:[#allocation5 + $0xd0] sm:$0xff]
    %v4429 = vld [vmem:[#allocation5 + $0xd8] sm:$0xff]
    %v4430 = vld [vmem:[#allocation5 + $0xe0] sm:$0xff]
    %v4431 = vld [vmem:[#allocation5 + $0xe8] sm:$0xff]
    %v4432 = vld [vmem:[#allocation5 + $0xf0] sm:$0xff]
    %v4433 = vld [vmem:[#allocation5 + $0xf8] sm:$0xff]
    %v4434 = vld [vmem:[#allocation5 + $0x100] sm:$0xff]
    %v4435 = vld [vmem:[#allocation5 + $0x108] sm:$0xff]
    %v4436 = vld [vmem:[#allocation5 + $0x110] sm:$0xff]
    %v4437 = vld [vmem:[#allocation5 + $0x118] sm:$0xff]
    %v4438 = vld [vmem:[#allocation5 + $0x120] sm:$0xff]
    %v4439 = vld [vmem:[#allocation5 + $0x128] sm:$0xff]
    %v4440 = vld [vmem:[#allocation5 + $0x130] sm:$0xff]
    %v4441 = vld [vmem:[#allocation5 + $0x138] sm:$0xff]
    %v4442 = vld [vmem:[#allocation5 + $0x140] sm:$0xff]
    %v4443 = vld [vmem:[#allocation5 + $0x148] sm:$0xff]
    %v4444 = vld [vmem:[#allocation5 + $0x150] sm:$0xff]
    %v4445 = vld [vmem:[#allocation5 + $0x158] sm:$0xff]
    %v4446 = vld [vmem:[#allocation5 + $0x160] sm:$0xff]
    %v4447 = vld [vmem:[#allocation5 + $0x168] sm:$0xff]
    %v4448 = vld [vmem:[#allocation5 + $0x170] sm:$0xff]
    %v4449 = vld [vmem:[#allocation5 + $0x178] sm:$0xff]
    %v4450 = vld [vmem:[#allocation5 + $0x180] sm:$0xff]
    %v4451 = vld [vmem:[#allocation5 + $0x188] sm:$0xff]
    %v4452 = vld [vmem:[#allocation5 + $0x190] sm:$0xff]
    %v4453 = vld [vmem:[#allocation5 + $0x198] sm:$0xff]
    %v4454 = vld [vmem:[#allocation5 + $0x1a0] sm:$0xff]
    %v4455 = vld [vmem:[#allocation5 + $0x1a8] sm:$0xff]
    %v4456 = vld [vmem:[#allocation5 + $0x1b0] sm:$0xff]
    %v4457 = vld [vmem:[#allocation5 + $0x1b8] sm:$0xff]
    %v4458 = vld [vmem:[#allocation5 + $0x1c0] sm:$0xff]
    %v4459 = vld [vmem:[#allocation5 + $0x1c8] sm:$0xff]
    %v4460 = vld [vmem:[#allocation5 + $0x1d0] sm:$0xff]
    %v4461 = vld [vmem:[#allocation5 + $0x1d8] sm:$0xff]
    %v4462 = vld [vmem:[#allocation5 + $0x1e0] sm:$0xff]
    %v4463 = vld [vmem:[#allocation5 + $0x1e8] sm:$0xff]
    %v4464 = vld [vmem:[#allocation5 + $0x1f0] sm:$0xff]
    %v4465 = vld [vmem:[#allocation5 + $0x1f8] sm:$0xff]
    %v4466 = vld [vmem:[#allocation5 + $0x200] sm:$0xff]
    %v4467 = vld [vmem:[#allocation5 + $0x208] sm:$0xff]
    %v4468 = vld [vmem:[#allocation5 + $0x210] sm:$0xff]
    %v4469 = vld [vmem:[#allocation5 + $0x218] sm:$0xff]
    %v4470 = vld [vmem:[#allocation5 + $0x220] sm:$0xff]
    %v4471 = vld [vmem:[#allocation5 + $0x228] sm:$0xff]
    %v4472 = vld [vmem:[#allocation5 + $0x230] sm:$0xff]
    %v4473 = vld [vmem:[#allocation5 + $0x238] sm:$0xff]
    %v4474 = vld [vmem:[#allocation5 + $0x240] sm:$0xff]
    %v4475 = vld [vmem:[#allocation5 + $0x248] sm:$0xff]
    %v4476 = vld [vmem:[#allocation5 + $0x250] sm:$0xff]
    %v4477 = vld [vmem:[#allocation5 + $0x258] sm:$0xff]
    %v4478 = vld [vmem:[#allocation5 + $0x260] sm:$0xff]
    %v4479 = vld [vmem:[#allocation5 + $0x268] sm:$0xff]
    %v4480 = vld [vmem:[#allocation5 + $0x270] sm:$0xff]
    %v4481 = vld [vmem:[#allocation5 + $0x278] sm:$0xff]
    %v4482 = vld [vmem:[#allocation5 + $0x280] sm:$0xff]
    %v4483 = vld [vmem:[#allocation5 + $0x288] sm:$0xff]
    %v4484 = vld [vmem:[#allocation5 + $0x290] sm:$0xff]
    %v4485 = vld [vmem:[#allocation5 + $0x298] sm:$0xff]
    %v4486 = vld [vmem:[#allocation5 + $0x2a0] sm:$0xff]
    %v4487 = vld [vmem:[#allocation5 + $0x2a8] sm:$0xff]
    %v4488 = vld [vmem:[#allocation5 + $0x2b0] sm:$0xff]
    %v4489 = vld [vmem:[#allocation5 + $0x2b8] sm:$0xff]
    %v4490 = vld [vmem:[#allocation5 + $0x2c0] sm:$0xff]
    %v4491 = vld [vmem:[#allocation5 + $0x2c8] sm:$0xff]
    %v4492 = vld [vmem:[#allocation5 + $0x2d0] sm:$0xff]
    %v4493 = vld [vmem:[#allocation5 + $0x2d8] sm:$0xff]
    %v4494 = vld [vmem:[#allocation5 + $0x2e0] sm:$0xff]
    %v4495 = vld [vmem:[#allocation5 + $0x2e8] sm:$0xff]
    %v4496 = vld [vmem:[#allocation5 + $0x2f0] sm:$0xff]
    %v4497 = vld [vmem:[#allocation5 + $0x2f8] sm:$0xff]
    %v4498 = vld [vmem:[#allocation5 + $0x300] sm:$0xff]
    %v4499 = vld [vmem:[#allocation5 + $0x308] sm:$0xff]
    %v4500 = vld [vmem:[#allocation5 + $0x310] sm:$0xff]
    %v4501 = vld [vmem:[#allocation5 + $0x318] sm:$0xff]
    %v4502 = vld [vmem:[#allocation5 + $0x320] sm:$0xff]
    %v4503 = vld [vmem:[#allocation5 + $0x328] sm:$0xff]
    %v4504 = vld [vmem:[#allocation5 + $0x330] sm:$0xff]
    %v4505 = vld [vmem:[#allocation5 + $0x338] sm:$0xff]
    %v4506 = vld [vmem:[#allocation5 + $0x340] sm:$0xff]
    %v4507 = vld [vmem:[#allocation5 + $0x348] sm:$0xff]
    %v4508 = vld [vmem:[#allocation5 + $0x350] sm:$0xff]
    %v4509 = vld [vmem:[#allocation5 + $0x358] sm:$0xff]
    %v4510 = vld [vmem:[#allocation5 + $0x360] sm:$0xff]
    %v4511 = vld [vmem:[#allocation5 + $0x368] sm:$0xff]
    %v4512 = vld [vmem:[#allocation5 + $0x370] sm:$0xff]
    %v4513 = vld [vmem:[#allocation5 + $0x378] sm:$0xff]
    %v4514 = vld [vmem:[#allocation5 + $0x380] sm:$0xff]
    %v4515 = vld [vmem:[#allocation5 + $0x388] sm:$0xff]
    %v4516 = vld [vmem:[#allocation5 + $0x390] sm:$0xff]
    %v4517 = vld [vmem:[#allocation5 + $0x398] sm:$0xff]
    %v4518 = vld [vmem:[#allocation5 + $0x3a0] sm:$0xff]
    %v4519 = vld [vmem:[#allocation5 + $0x3a8] sm:$0xff]
    %v4520 = vld [vmem:[#allocation5 + $0x3b0] sm:$0xff]
    %v4521 = vld [vmem:[#allocation5 + $0x3b8] sm:$0xff]
    %v4522 = vld [vmem:[#allocation5 + $0x3c0] sm:$0xff]
    %v4523 = vld [vmem:[#allocation5 + $0x3c8] sm:$0xff]
    %v4524 = vld [vmem:[#allocation5 + $0x3d0] sm:$0xff]
    %v4525 = vld [vmem:[#allocation5 + $0x3d8] sm:$0xff]
    %v4526 = vld [vmem:[#allocation5 + $0x3e0] sm:$0xff]
    %v4527 = vld [vmem:[#allocation5 + $0x3e8] sm:$0xff]
    %v4528 = vld [vmem:[#allocation5 + $0x3f0] sm:$0xff]
    %v4529 = vld [vmem:[#allocation5 + $0x3f8] sm:$0xff]
    %v4530 = vld [vmem:[#allocation5 + $0x400] sm:$0x1]
    %v4531 = vlaneseq
    %v4532 = vshrl.u32 %v4531, 7
    %v4533 = vsub.s32 0, %v4532
    %v4534 = vrot.slane %v4530, %v4533
    %4535 = vmatprep.subr.mxu0 0.0
    %4536 = vmatpush1.msra.mxu0 %v4417
    %4537 = vmatprep.subr.mxu0 0.0
    %4538 = vmatpush1.msra.mxu0 %v4416
    %4539 = vmatprep.subr.mxu0 0.0
    %4540 = vmatpush1.msra.mxu0 %v4415
    %4541 = vmatprep.subr.mxu0 0.0
    %4542 = vmatpush1.msra.mxu0 %v4414
    %4543 = vmatprep.subr.mxu0 0.0
    %4544 = vmatpush1.msra.mxu0 %v4413
    %4545 = vmatprep.subr.mxu0 0.0
    %4546 = vmatpush1.msra.mxu0 %v4412
    %4547 = vmatprep.subr.mxu0 0.0
    %4548 = vmatpush1.msra.mxu0 %v4411
    %4549 = vmatprep.subr.mxu0 0.0
    %4550 = vmatpush1.msra.mxu0 %v4410
    %4551 = vmatprep.subr.mxu0 0.0
    %4552 = vmatpush1.msra.mxu0 %v4409
    %4553 = vmatprep.subr.mxu0 0.0
    %4554 = vmatpush1.msra.mxu0 %v4408
    %4555 = vmatprep.subr.mxu0 0.0
    %4556 = vmatpush1.msra.mxu0 %v4407
    %4557 = vmatprep.subr.mxu0 0.0
    %4558 = vmatpush1.msra.mxu0 %v4406
    %4559 = vmatprep.subr.mxu0 0.0
    %4560 = vmatpush1.msra.mxu0 %v4405
    %4561 = vmatprep.subr.mxu0 0.0
    %4562 = vmatpush1.msra.mxu0 %v4404
    %4563 = vmatprep.subr.mxu0 0.0
    %4564 = vmatpush1.msra.mxu0 %v4403
    %4565 = vmatprep.subr.mxu0 0.0
    %4566 = vmatpush1.msra.mxu0 %v4402
    %4567 = vmatprep.subr.mxu0 0.0
    %4568 = vmatpush2.msra.mxu0 %v4433
    %4569 = vmatprep.subr.mxu0 0.0
    %4570 = vmatpush2.msra.mxu0 %v4432
    %4571 = vmatprep.subr.mxu0 0.0
    %4572 = vmatpush2.msra.mxu0 %v4431
    %4573 = vmatprep.subr.mxu0 0.0
    %4574 = vmatpush2.msra.mxu0 %v4430
    %4575 = vmatprep.subr.mxu0 0.0
    %4576 = vmatpush2.msra.mxu0 %v4429
    %4577 = vmatprep.subr.mxu0 0.0
    %4578 = vmatpush2.msra.mxu0 %v4428
    %4579 = vmatprep.subr.mxu0 0.0
    %4580 = vmatpush2.msra.mxu0 %v4427
    %4581 = vmatprep.subr.mxu0 0.0
    %4582 = vmatpush2.msra.mxu0 %v4426
    %4583 = vmatprep.subr.mxu0 0.0
    %4584 = vmatpush2.msra.mxu0 %v4425
    %4585 = vmatprep.subr.mxu0 0.0
    %4586 = vmatpush2.msra.mxu0 %v4424
    %4587 = vmatprep.subr.mxu0 0.0
    %4588 = vmatpush2.msra.mxu0 %v4423
    %4589 = vmatprep.subr.mxu0 0.0
    %4590 = vmatpush2.msra.mxu0 %v4422
    %4591 = vmatprep.subr.mxu0 0.0
    %4592 = vmatpush2.msra.mxu0 %v4421
    %4593 = vmatprep.subr.mxu0 0.0
    %4594 = vmatpush2.msra.mxu0 %v4420
    %4595 = vmatprep.subr.mxu0 0.0
    %4596 = vmatpush2.msra.mxu0 %v4419
    %4597 = vmatprep.subr.mxu0 0.0
    %4598 = vmatpush2.msra.mxu0 %v4418
    %4599 = vmatprep.mubr.f32.mxu0 %v4395
    %4600 = vmatmul.mubr.f32.gmra.mxu0 %v4394
    %v4601 = vpop.f32.mrf.mxu0
    %v4602 = vadd.f32 %v4534, %v4601
    %v4603 = vpop.f32.mrf.mxu0
    %4604 = vdwg.mxu0
    %4605 = vmatprep.subr.mxu0 0.0
    %4606 = vmatpush1.msra.mxu0 %v4449
    %4607 = vmatprep.subr.mxu0 0.0
    %4608 = vmatpush1.msra.mxu0 %v4448
    %4609 = vmatprep.subr.mxu0 0.0
    %4610 = vmatpush1.msra.mxu0 %v4447
    %4611 = vmatprep.subr.mxu0 0.0
    %4612 = vmatpush1.msra.mxu0 %v4446
    %4613 = vmatprep.subr.mxu0 0.0
    %4614 = vmatpush1.msra.mxu0 %v4445
    %4615 = vmatprep.subr.mxu0 0.0
    %4616 = vmatpush1.msra.mxu0 %v4444
    %4617 = vmatprep.subr.mxu0 0.0
    %4618 = vmatpush1.msra.mxu0 %v4443
    %4619 = vmatprep.subr.mxu0 0.0
    %4620 = vmatpush1.msra.mxu0 %v4442
    %4621 = vmatprep.subr.mxu0 0.0
    %4622 = vmatpush1.msra.mxu0 %v4441
    %4623 = vmatprep.subr.mxu0 0.0
    %4624 = vmatpush1.msra.mxu0 %v4440
    %4625 = vmatprep.subr.mxu0 0.0
    %4626 = vmatpush1.msra.mxu0 %v4439
    %4627 = vmatprep.subr.mxu0 0.0
    %4628 = vmatpush1.msra.mxu0 %v4438
    %4629 = vmatprep.subr.mxu0 0.0
    %4630 = vmatpush1.msra.mxu0 %v4437
    %4631 = vmatprep.subr.mxu0 0.0
    %4632 = vmatpush1.msra.mxu0 %v4436
    %4633 = vmatprep.subr.mxu0 0.0
    %4634 = vmatpush1.msra.mxu0 %v4435
    %4635 = vmatprep.subr.mxu0 0.0
    %4636 = vmatpush1.msra.mxu0 %v4434
    %4637 = vmatprep.subr.mxu0 0.0
    %4638 = vmatpush2.msra.mxu0 %v4465
    %4639 = vmatprep.subr.mxu0 0.0
    %4640 = vmatpush2.msra.mxu0 %v4464
    %4641 = vmatprep.subr.mxu0 0.0
    %4642 = vmatpush2.msra.mxu0 %v4463
    %4643 = vmatprep.subr.mxu0 0.0
    %4644 = vmatpush2.msra.mxu0 %v4462
    %4645 = vmatprep.subr.mxu0 0.0
    %4646 = vmatpush2.msra.mxu0 %v4461
    %4647 = vmatprep.subr.mxu0 0.0
    %4648 = vmatpush2.msra.mxu0 %v4460
    %4649 = vmatprep.subr.mxu0 0.0
    %4650 = vmatpush2.msra.mxu0 %v4459
    %4651 = vmatprep.subr.mxu0 0.0
    %4652 = vmatpush2.msra.mxu0 %v4458
    %4653 = vmatprep.subr.mxu0 0.0
    %4654 = vmatpush2.msra.mxu0 %v4457
    %4655 = vmatprep.subr.mxu0 0.0
    %4656 = vmatpush2.msra.mxu0 %v4456
    %4657 = vmatprep.subr.mxu0 0.0
    %4658 = vmatpush2.msra.mxu0 %v4455
    %4659 = vmatprep.subr.mxu0 0.0
    %4660 = vmatpush2.msra.mxu0 %v4454
    %4661 = vmatprep.subr.mxu0 0.0
    %4662 = vmatpush2.msra.mxu0 %v4453
    %4663 = vmatprep.subr.mxu0 0.0
    %4664 = vmatpush2.msra.mxu0 %v4452
    %4665 = vmatprep.subr.mxu0 0.0
    %4666 = vmatpush2.msra.mxu0 %v4451
    %4667 = vmatprep.subr.mxu0 0.0
    %4668 = vmatpush2.msra.mxu0 %v4450
    %4669 = vmatprep.mubr.f32.mxu0 %v4397
    %4670 = vmatmul.mubr.f32.gmra.mxu0 %v4396
    %v4671 = vpop.f32.mrf.mxu0
    %v4672 = vadd.f32 %v4602, %v4671
    %v4673 = vpop.f32.mrf.mxu0
    %4674 = vdwg.mxu0
    %4675 = vmatprep.subr.mxu0 0.0
    %4676 = vmatpush1.msra.mxu0 %v4481
    %4677 = vmatprep.subr.mxu0 0.0
    %4678 = vmatpush1.msra.mxu0 %v4480
    %4679 = vmatprep.subr.mxu0 0.0
    %4680 = vmatpush1.msra.mxu0 %v4479
    %4681 = vmatprep.subr.mxu0 0.0
    %4682 = vmatpush1.msra.mxu0 %v4478
    %4683 = vmatprep.subr.mxu0 0.0
    %4684 = vmatpush1.msra.mxu0 %v4477
    %4685 = vmatprep.subr.mxu0 0.0
    %4686 = vmatpush1.msra.mxu0 %v4476
    %4687 = vmatprep.subr.mxu0 0.0
    %4688 = vmatpush1.msra.mxu0 %v4475
    %4689 = vmatprep.subr.mxu0 0.0
    %4690 = vmatpush1.msra.mxu0 %v4474
    %4691 = vmatprep.subr.mxu0 0.0
    %4692 = vmatpush1.msra.mxu0 %v4473
    %4693 = vmatprep.subr.mxu0 0.0
    %4694 = vmatpush1.msra.mxu0 %v4472
    %4695 = vmatprep.subr.mxu0 0.0
    %4696 = vmatpush1.msra.mxu0 %v4471
    %4697 = vmatprep.subr.mxu0 0.0
    %4698 = vmatpush1.msra.mxu0 %v4470
    %4699 = vmatprep.subr.mxu0 0.0
    %4700 = vmatpush1.msra.mxu0 %v4469
    %4701 = vmatprep.subr.mxu0 0.0
    %4702 = vmatpush1.msra.mxu0 %v4468
    %4703 = vmatprep.subr.mxu0 0.0
    %4704 = vmatpush1.msra.mxu0 %v4467
    %4705 = vmatprep.subr.mxu0 0.0
    %4706 = vmatpush1.msra.mxu0 %v4466
    %4707 = vmatprep.subr.mxu0 0.0
    %4708 = vmatpush2.msra.mxu0 %v4497
    %4709 = vmatprep.subr.mxu0 0.0
    %4710 = vmatpush2.msra.mxu0 %v4496
    %4711 = vmatprep.subr.mxu0 0.0
    %4712 = vmatpush2.msra.mxu0 %v4495
    %4713 = vmatprep.subr.mxu0 0.0
    %4714 = vmatpush2.msra.mxu0 %v4494
    %4715 = vmatprep.subr.mxu0 0.0
    %4716 = vmatpush2.msra.mxu0 %v4493
    %4717 = vmatprep.subr.mxu0 0.0
    %4718 = vmatpush2.msra.mxu0 %v4492
    %4719 = vmatprep.subr.mxu0 0.0
    %4720 = vmatpush2.msra.mxu0 %v4491
    %4721 = vmatprep.subr.mxu0 0.0
    %4722 = vmatpush2.msra.mxu0 %v4490
    %4723 = vmatprep.subr.mxu0 0.0
    %4724 = vmatpush2.msra.mxu0 %v4489
    %4725 = vmatprep.subr.mxu0 0.0
    %4726 = vmatpush2.msra.mxu0 %v4488
    %4727 = vmatprep.subr.mxu0 0.0
    %4728 = vmatpush2.msra.mxu0 %v4487
    %4729 = vmatprep.subr.mxu0 0.0
    %4730 = vmatpush2.msra.mxu0 %v4486
    %4731 = vmatprep.subr.mxu0 0.0
    %4732 = vmatpush2.msra.mxu0 %v4485
    %4733 = vmatprep.subr.mxu0 0.0
    %4734 = vmatpush2.msra.mxu0 %v4484
    %4735 = vmatprep.subr.mxu0 0.0
    %4736 = vmatpush2.msra.mxu0 %v4483
    %4737 = vmatprep.subr.mxu0 0.0
    %4738 = vmatpush2.msra.mxu0 %v4482
    %4739 = vmatprep.mubr.f32.mxu0 %v4399
    %4740 = vmatmul.mubr.f32.gmra.mxu0 %v4398
    %v4741 = vpop.f32.mrf.mxu0
    %v4742 = vadd.f32 %v4672, %v4741
    %v4743 = vpop.f32.mrf.mxu0
    %4744 = vdwg.mxu0
    %4745 = vmatprep.subr.mxu0 0.0
    %4746 = vmatpush1.msra.mxu0 %v4513
    %4747 = vmatprep.subr.mxu0 0.0
    %4748 = vmatpush1.msra.mxu0 %v4512
    %4749 = vmatprep.subr.mxu0 0.0
    %4750 = vmatpush1.msra.mxu0 %v4511
    %4751 = vmatprep.subr.mxu0 0.0
    %4752 = vmatpush1.msra.mxu0 %v4510
    %4753 = vmatprep.subr.mxu0 0.0
    %4754 = vmatpush1.msra.mxu0 %v4509
    %4755 = vmatprep.subr.mxu0 0.0
    %4756 = vmatpush1.msra.mxu0 %v4508
    %4757 = vmatprep.subr.mxu0 0.0
    %4758 = vmatpush1.msra.mxu0 %v4507
    %4759 = vmatprep.subr.mxu0 0.0
    %4760 = vmatpush1.msra.mxu0 %v4506
    %4761 = vmatprep.subr.mxu0 0.0
    %4762 = vmatpush1.msra.mxu0 %v4505
    %4763 = vmatprep.subr.mxu0 0.0
    %4764 = vmatpush1.msra.mxu0 %v4504
    %4765 = vmatprep.subr.mxu0 0.0
    %4766 = vmatpush1.msra.mxu0 %v4503
    %4767 = vmatprep.subr.mxu0 0.0
    %4768 = vmatpush1.msra.mxu0 %v4502
    %4769 = vmatprep.subr.mxu0 0.0
    %4770 = vmatpush1.msra.mxu0 %v4501
    %4771 = vmatprep.subr.mxu0 0.0
    %4772 = vmatpush1.msra.mxu0 %v4500
    %4773 = vmatprep.subr.mxu0 0.0
    %4774 = vmatpush1.msra.mxu0 %v4499
    %4775 = vmatprep.subr.mxu0 0.0
    %4776 = vmatpush1.msra.mxu0 %v4498
    %4777 = vmatprep.subr.mxu0 0.0
    %4778 = vmatpush2.msra.mxu0 %v4529
    %4779 = vmatprep.subr.mxu0 0.0
    %4780 = vmatpush2.msra.mxu0 %v4528
    %4781 = vmatprep.subr.mxu0 0.0
    %4782 = vmatpush2.msra.mxu0 %v4527
    %4783 = vmatprep.subr.mxu0 0.0
    %4784 = vmatpush2.msra.mxu0 %v4526
    %4785 = vmatprep.subr.mxu0 0.0
    %4786 = vmatpush2.msra.mxu0 %v4525
    %4787 = vmatprep.subr.mxu0 0.0
    %4788 = vmatpush2.msra.mxu0 %v4524
    %4789 = vmatprep.subr.mxu0 0.0
    %4790 = vmatpush2.msra.mxu0 %v4523
    %4791 = vmatprep.subr.mxu0 0.0
    %4792 = vmatpush2.msra.mxu0 %v4522
    %4793 = vmatprep.subr.mxu0 0.0
    %4794 = vmatpush2.msra.mxu0 %v4521
    %4795 = vmatprep.subr.mxu0 0.0
    %4796 = vmatpush2.msra.mxu0 %v4520
    %4797 = vmatprep.subr.mxu0 0.0
    %4798 = vmatpush2.msra.mxu0 %v4519
    %4799 = vmatprep.subr.mxu0 0.0
    %4800 = vmatpush2.msra.mxu0 %v4518
    %4801 = vmatprep.subr.mxu0 0.0
    %4802 = vmatpush2.msra.mxu0 %v4517
    %4803 = vmatprep.subr.mxu0 0.0
    %4804 = vmatpush2.msra.mxu0 %v4516
    %4805 = vmatprep.subr.mxu0 0.0
    %4806 = vmatpush2.msra.mxu0 %v4515
    %4807 = vmatprep.subr.mxu0 0.0
    %4808 = vmatpush2.msra.mxu0 %v4514
    %4809 = vmatprep.mubr.f32.mxu0 %v4401
    %4810 = vmatmul.mubr.f32.gmra.mxu0 %v4400
    %v4811 = vpop.f32.mrf.mxu0
    %v4812 = vadd.f32 %v4742, %v4811
    %v4813 = vpop.f32.mrf.mxu0
    %4814 = vdwg.mxu0
    %v4815 = vld [vmem:[%s1] sm:$0x3]
    %4816 = vset.pattern.permute.xlu0 8
    %4817 = vperm.xlu0 %4816, %v4815
    %v4818 = vpop.permute.xlu0 %4817
    %vm4819 = vcmp.eq.s32.totalorder %v58, %v4818
    %v4820 = vsel %vm4819, 1, 0
    %v4821 = vcvt.s32.f32 %v4820
    %v4822 = vld [vmem:[%s2 + $0x75] sm:$0x1]
    %v4823 = vlaneseq
    %v4824 = vshrl.u32 %v4823, 7
    %v4825 = vsub.s32 0, %v4824
    %v4826 = vrot.slane %v4822, %v4825
    %v4827 = vmul.f32 %v4826, %v4821
    %v4828 = vsub.f32 0.0, %v4812
    %v4829 = vmax.f32 %v4828, 0.0
    %v4830 = vand.u32 2147483647, %v4812
    %v4831 = vsub.f32 0.0, %v4830
    %v4832 = vmul.f32 %v4831, 1.442695
    %v4833 = vpow.pop %v4832
    %v4834 = vadd.f32 %v4833, 1.0
    %v4835 = vlog2.pop %v4834
    %v4836 = vmul.f32 %v4835, 0.6931472
    %v4837 = vadd.f32 %v4829, %v4836
    %v4838 = vsub.f32 0.0, %v4837
    %v4839 = vmul.f32 %v4827, %v4838
    %v4840 = vsub.f32 1.0, %v4821
    %v4841 = vsub.f32 0.0, %v4828
    %v4842 = vmax.f32 %v4841, 0.0
    %v4843 = vand.u32 2147483647, %v4828
    %v4844 = vsub.f32 0.0, %v4843
    %v4845 = vmul.f32 %v4844, 1.442695
    %v4846 = vpow.pop %v4845
    %v4847 = vadd.f32 %v4846, 1.0
    %v4848 = vlog2.pop %v4847
    %v4849 = vmul.f32 %v4848, 0.6931472
    %v4850 = vadd.f32 %v4842, %v4849
    %v4851 = vsub.f32 0.0, %v4850
    %v4852 = vmul.f32 %v4840, %v4851
    %v4853 = vadd.f32 %v4839, %v4852
    %v4854 = vsub.f32 0.0, %v4853
    %vm4855 = vcmask 58368
    %v4856 = vsel %vm4855, %v4854, 0.0
    %4857 = vadd.xlane.f32.xlu0 %v4856
    %v4858 = vpop.xlane.xlu0 %4857
    %v4859 = vrot.slane %v4858, 4
    %v4860 = vadd.f32 %v4858, %v4859
    %v4861 = vrot.slane %v4860, 2
    %v4862 = vadd.f32 %v4860, %v4861
    %v4863 = vrot.slane %v4862, 1
    %v4864 = vadd.f32 %v4862, %v4863
    %s4865 = vtos %v4864
    %v4866 = vrcp.pop 16.0
    %s4867 = vtos %v4866
    %s4868 = smul.f32 %s4865, %s4867
    %s4869 = sadd.f32 %s4868, 0.0
    %4870 = vset.pattern.permute.xlu0 9
    %4871 = vperm.xlu0 %4870, %v4815
    %v4872 = vpop.permute.xlu0 %4871
    %vm4873 = vcmp.eq.s32.totalorder %v58, %v4872
    %v4874 = vsel %vm4873, 1, 0
    %v4875 = vcvt.s32.f32 %v4874
    %vm4876 = vcmask 74816
    %v4877 = vsel %vm4876, %v4812, -inf
    %4878 = vmax.xlane.f32.xlu0 %v4877
    %v4879 = vpop.xlane.xlu0 %4878
    %v4880 = vsub.f32 %v4812, %v4879
    %v4881 = vmul.f32 %v4880, 1.442695
    %v4882 = vpow.pop %v4881
    %4884 = vrot.lane.b32.xlu0 %v4882, 120
    %v4885 = vpop.permute.xlu0 %4884
    %vm4887 = vcmask 9216
    %v4888 = vsel %vm4887, %v4885, 0.0
    %4889 = vadd.xlane.f32.xlu0 %v4888
    %v4890 = vpop.xlane.xlu0 %4889
    %v4891 = vlog2.pop %v4890
    %v4892 = vmul.f32 %v4891, 0.6931472
    %v4893 = vsub.f32 %v4880, %v4892
    %4895 = vrot.lane.b32.xlu0 %v4893, 120
    %v4896 = vpop.permute.xlu0 %4895
    %v4898 = vmul.f32 %v4875, %v4896
    %v4899 = vsel %vm4887, %v4898, 0.0
    %4900 = vadd.xlane.f32.xlu0 %v4899
    %v4901 = vpop.xlane.xlu0 %4900
    %v4902 = vsub.f32 0.0, %v4901
    %4904 = vrot.lane.b32.xlu0 %v4826, 120
    %v4905 = vpop.permute.xlu0 %4904
    %v4907 = vmul.f32 %v4875, %v4905
    %v4908 = vsel %vm4887, %v4907, 0.0
    %4909 = vadd.xlane.f32.xlu0 %v4908
    %v4910 = vpop.xlane.xlu0 %4909
    %v4911 = vmul.f32 %v4910, %v4902
    %vm4912 = vcmask 1024
    %v4913 = vsel %vm4912, %v4911, 0.0
    %4914 = vadd.xlane.f32.xlu0 %v4913
    %v4915 = vpop.xlane.xlu0 %4914
    %v4916 = vrot.slane %v4915, 4
    %v4917 = vadd.f32 %v4915, %v4916
    %v4918 = vrot.slane %v4917, 2
    %v4919 = vadd.f32 %v4917, %v4918
    %v4920 = vrot.slane %v4919, 1
    %v4921 = vadd.f32 %v4919, %v4920
    %s4922 = vtos %v4921
    %v4923 = vsel %vm4912, %v4910, 0.0
    %4924 = vadd.xlane.f32.xlu0 %v4923
    %v4925 = vpop.xlane.xlu0 %4924
    %v4926 = vrot.slane %v4925, 4
    %v4927 = vadd.f32 %v4925, %v4926
    %v4928 = vrot.slane %v4927, 2
    %v4929 = vadd.f32 %v4927, %v4928
    %v4930 = vrot.slane %v4929, 1
    %v4931 = vadd.f32 %v4929, %v4930
    %s4932 = vtos %v4931
    %v4933 = vstv %s4932
    %v4934 = vrcp.pop %v4933
    %s4935 = vtos %v4934
    %s4936 = smul.f32 %s4922, %s4935
    %s4937 = sadd.f32 %s4869, %s4936
    %vm4938 = vcmask 1041408
    %v4939 = vsel %vm4938, %v4812, 0.0
    %v4940 = vlaneseq
    %v4941 = vshrl.u32 %v4940, 7
    %vm4942 = vcmp.eq.s32.totalorder %v4941, 2
    %vm4943 = vcmp.eq.s32.totalorder %v58, 0
    %vm4944 = vmand %vm4942, %vm4943
    %v4945 = vsel %vm4944, 1, 0
    %v4946 = vcvt.s32.f32 %v4945
    %v4947 = vstv %s4937
    %v4948 = vmul.f32 %v4946, %v4947
    %v4949 = vadd.f32 %v4939, %v4948
    %4950 = vst [vmem:[#allocation7] sm:$0xff] %v4949
    // Predicated region
    $region38: #{tpu_custom_call.1} parent=1 // pred_check
      _
    $region39: #{tpu_custom_call.1} parent=1 // pred_check_branch
      %4952 = sbr.rel (0) target = $region41
    $region40: #{tpu_custom_call.1} parent=1 // pred_region
      %s4954 = ssub.s32 128, 128
      %4955 = vsyncadd [#allocation4], %s4954
      %s4957 = sshll.u32 [#allocation7], 4
      %s4958 = int_to_ptr.vmem [resolvable:$true] %s4957
      %4960 = dma.vmem_to_hbm [thread:$0]  %s4958, 128, %s7, [#allocation4]
    $region41: #{tpu_custom_call.1} parent=1 // pred_fallthru
      _
    // Predicated region
    $region42: #{tpu_custom_call.1} parent=1 // pred_check
      _
    $region43: #{tpu_custom_call.1} parent=1 // pred_check_branch
      %4962 = sbr.rel (0) target = $region45
    $region44: #{tpu_custom_call.1} parent=1 // pred_region
      %4963 = dma.done [#allocation4], 128
    $region45: #{tpu_custom_call.1} parent=1 // pred_fallthru
      _
    %4964 = vsyncpa [#allocation3], 1
    %4965 = vsyncpa [#allocation6], 1
    %4966 = vsyncpa [#allocation4], 1

</llo_original>
